<compile_context>
chip_gen: v5e
topology: v5e:2x2
jax: 0.10.0
libtpu: 0.0.40
codegen_flags: <defaults>
</compile_context>

<pallas_src>
import functools
import math

import jax
import jax.numpy as jnp
from jax.experimental import pallas as pl
from jax.experimental.pallas import tpu as pltpu


_VMEM_LIMIT = 56 * 1024 * 1024   # <= v7x physical 64 MiB, plenty on v5e/v6e


def _layer_norm(x, w, b, eps=1e-5):
    mu = jnp.mean(x, axis=-1, keepdims=True)
    xc = x - mu
    var = jnp.mean(xc * xc, axis=-1, keepdims=True)
    return xc * jax.lax.rsqrt(var + eps) * w + b


def encoder_layer_kernel(x_ref, bias_ref,
                         in_wT_ref, in_b_ref, out_wT_ref, out_b_ref,
                         ln1_w_ref, ln1_b_ref,
                         ff1_wT_ref, ff1_b_ref, ff2_wT_ref, ff2_b_ref,
                         ln2_w_ref, ln2_b_ref,
                         o_ref, *, num_heads, att_l):
    """One nn.TransformerEncoderLayer (post-norm, ReLU, eval mode) on a slab of
    Tn attention-batch elements.

    x_ref / o_ref blocks: (Tn*L, E) token rows, row index = n*L + l.
    bias_ref block:       (Tn, 1, L) additive key-padding bias (0 / -1e30).
    """
    R, E = x_ref.shape
    L = att_l
    Tn = R // L
    H = num_heads
    Dh = E // H

    x = x_ref[...]                                        # (R, E) f32
    xb = x.astype(jnp.bfloat16)

    # ---- fused QKV projection: one big-M bf16 MXU matmul, f32 accumulation ----
    qkv = jnp.dot(xb, in_wT_ref[...],
                  preferred_element_type=jnp.float32) + in_b_ref[...]   # (R, 3E)

    # per-n views for attention (trailing (L, E) tile unchanged -> cheap regroup)
    q = qkv[:, :E].reshape(Tn, L, E)          # 1/sqrt(Dh) already folded into weights
    k = qkv[:, E:2 * E].reshape(Tn, L, E)
    v = qkv[:, 2 * E:].reshape(Tn, L, E)
    bias = bias_ref[...]                       # (Tn, 1, L)

    # ---- multi-head attention: scores batched over the Tn axis per head ----
    heads = []
    for h in range(H):                         # small static head loop
        sl = slice(h * Dh, (h + 1) * Dh)
        qh = q[:, :, sl].astype(jnp.bfloat16)
        kh = k[:, :, sl].astype(jnp.bfloat16)
        vh = v[:, :, sl].astype(jnp.bfloat16)
        s = jax.lax.dot_general(qh, kh, (((2,), (2,)), ((0,), (0,))),
                                preferred_element_type=jnp.float32)     # (Tn, L, L)
        s = s + bias                                                    # mask keys
        s = s - jnp.max(s, axis=-1, keepdims=True)
        p = jnp.exp(s)
        p = p * pl.reciprocal(jnp.sum(p, axis=-1, keepdims=True), approx=True)
        heads.append(jax.lax.dot_general(p.astype(jnp.bfloat16), vh,
                                         (((2,), (1,)), ((0,), (0,))),
                                         preferred_element_type=jnp.float32))

    attn = jnp.concatenate(heads, axis=-1).reshape(R, E)   # concat(h) -> (R, E)

    # ---- single fused output projection (full-E contraction) ----
    attn = jnp.dot(attn.astype(jnp.bfloat16), out_wT_ref[...],
                   preferred_element_type=jnp.float32) + out_b_ref[...]

    # residual + LayerNorm 1 (f32)
    h1 = _layer_norm(x + attn, ln1_w_ref[...], ln1_b_ref[...])

    # feed-forward (ReLU), big-M bf16 matmuls with f32 accumulation
    ff = jnp.dot(h1.astype(jnp.bfloat16), ff1_wT_ref[...],
                 preferred_element_type=jnp.float32) + ff1_b_ref[...]
    ff = jnp.maximum(ff, 0.0)
    ff = jnp.dot(ff.astype(jnp.bfloat16), ff2_wT_ref[...],
                 preferred_element_type=jnp.float32) + ff2_b_ref[...]

    # residual + LayerNorm 2 (f32)
    o_ref[...] = _layer_norm(h1 + ff, ln2_w_ref[...], ln2_b_ref[...]).astype(o_ref.dtype)


def _pick_tn(N, L, target_rows=256):
    """Largest divisor Tn of N keeping the (Tn*L, E) row slab near the
    MXU-friendly target; leaves a clean parallel grid over n-tiles."""
    best = 1
    for cand in range(1, N + 1):
        if N % cand == 0 and cand * L <= max(target_rows, L):
            best = cand
    return best


def encoder_layer(x_nle, bias_n1l, lp, num_heads):
    N, L, E = x_nle.shape
    tn = _pick_tn(N, L)
    rows = tn * L
    x2d = x_nle.reshape(N * L, E)             # wrapper-side reshape (plain XLA)

    weights = [lp['in_wT'], lp['in_b'], lp['out_wT'], lp['out_b'],
               lp['ln1_w'], lp['ln1_b'],
               lp['ff1_wT'], lp['ff1_b'], lp['ff2_wT'], lp['ff2_b'],
               lp['ln2_w'], lp['ln2_b']]
    in_specs = [
        pl.BlockSpec((rows, E), lambda i: (i, 0)),        # token row slab (Tn n's)
        pl.BlockSpec((tn, 1, L), lambda i: (i, 0, 0)),    # key-padding bias rows
    ] + [pl.BlockSpec(w.shape, lambda i: (0, 0)) for w in weights]  # resident weights

    out2d = pl.pallas_call(
        functools.partial(encoder_layer_kernel, num_heads=num_heads, att_l=L),
        out_shape=jax.ShapeDtypeStruct((N * L, E), jnp.float32),
        grid=(N // tn,),
        in_specs=in_specs,
        out_specs=pl.BlockSpec((rows, E), lambda i: (i, 0)),
        compiler_params=pltpu.CompilerParams(
            dimension_semantics=("parallel",),
            vmem_limit_bytes=_VMEM_LIMIT),
    )(x2d, bias_n1l, *weights)
    return out2d.reshape(N, L, E)


def linear_kernel(x_ref, wT_ref, b_ref, o_ref):
    o_ref[...] = (jnp.dot(x_ref[...].astype(jnp.bfloat16), wT_ref[...],
                          preferred_element_type=jnp.float32) + b_ref[...])


def linear(x, wT, b, *, tm=256, tv=512):
    """Tiled LM head: (M, E) @ (E, V) with lane-dense V tiles."""
    M, E = x.shape
    V = wT.shape[1]
    tm = min(tm, M)
    tv = min(tv, V)
    return pl.pallas_call(
        linear_kernel,
        out_shape=jax.ShapeDtypeStruct((M, V), jnp.float32),
        grid=(pl.cdiv(M, tm), pl.cdiv(V, tv)),
        in_specs=[pl.BlockSpec((tm, E), lambda i, j: (i, 0)),
                  pl.BlockSpec((E, tv), lambda i, j: (0, j)),
                  pl.BlockSpec((1, tv), lambda i, j: (0, j))],
        out_specs=pl.BlockSpec((tm, tv), lambda i, j: (i, j)),
        compiler_params=pltpu.CompilerParams(
            dimension_semantics=("parallel", "parallel"),
            vmem_limit_bytes=_VMEM_LIMIT),
    )(x, wT, b)


def init_params(key, vocab_size, embed_dim, num_heads, num_layers, ff_dim, seq_len):
    E, F = embed_dim, ff_dim
    Dh = E // num_heads
    scale = 1.0 / math.sqrt(Dh)
    keys = jax.random.split(key, 4 + num_layers)
    params = {
        'embed': jax.random.normal(keys[0], (vocab_size, E), jnp.float32),
        'pos_embed': jax.random.normal(keys[1], (seq_len, E), jnp.float32),
        # matmul weights stored pre-transposed (x @ W.T == x @ wT) and in bf16
        'fc_wT': (jax.random.normal(keys[2], (E, vocab_size), jnp.float32) * 0.05
                  ).astype(jnp.bfloat16),
        'fc_b': jax.random.normal(keys[3], (1, vocab_size), jnp.float32) * 0.01,
        'layers': [],
    }
    for i in range(num_layers):
        lk = jax.random.split(keys[4 + i], 4)
        in_wT = jax.random.normal(lk[0], (E, 3 * E), jnp.float32) * 0.05
        in_b = jnp.zeros((1, 3 * E), jnp.float32)
        # fold the 1/sqrt(Dh) attention scale into the q columns / q bias
        in_wT = in_wT.at[:, :E].multiply(scale)
        in_b = in_b.at[:, :E].multiply(scale)
        params['layers'].append({
            'in_wT': in_wT.astype(jnp.bfloat16),
            'in_b': in_b,
            'out_wT': (jax.random.normal(lk[1], (E, E), jnp.float32) * 0.05
                       ).astype(jnp.bfloat16),
            'out_b': jnp.zeros((1, E), jnp.float32),
            'ln1_w': jnp.ones((1, E), jnp.float32),
            'ln1_b': jnp.zeros((1, E), jnp.float32),
            'ff1_wT': (jax.random.normal(lk[2], (E, F), jnp.float32) * 0.05
                       ).astype(jnp.bfloat16),
            'ff1_b': jnp.zeros((1, F), jnp.float32),
            'ff2_wT': (jax.random.normal(lk[3], (F, E), jnp.float32) * 0.05
                       ).astype(jnp.bfloat16),
            'ff2_b': jnp.zeros((1, E), jnp.float32),
            'ln2_w': jnp.ones((1, E), jnp.float32),
            'ln2_b': jnp.zeros((1, E), jnp.float32),
        })
    return params


def bert_forward(params, x_ids, attention_mask, num_heads):
    B, S = x_ids.shape
    E = params['embed'].shape[1]
    V = params['fc_wT'].shape[1]

    # embedding lookup + learned position embedding (gather = glue, plain JAX)
    tok = jnp.take(params['embed'], x_ids, axis=0)                 # (B, S, E)
    pos = params['pos_embed'][:S]                                  # (S, E)
    h = tok + pos[None, :, :]                                      # (B, S, E)

    # PyTorch layer (batch_first=False) sees (L=B, N=S, E); kernel layout is (N, L, E).
    x = jnp.transpose(h, (1, 0, 2))                                # (S, B, E)
    kpm = jnp.transpose(attention_mask, (1, 0))                    # attention_mask.transpose(0,1)
    # large finite negative (not -inf): no NaN if a row is ever fully masked
    bias = jnp.where(kpm == 0, -1e30, 0.0).astype(jnp.float32)     # (N, L)
    bias = bias[:, None, :]                                        # (N, 1, L)

    for lp in params['layers']:
        x = encoder_layer(x, bias, lp, num_heads)

    x = jnp.transpose(x, (1, 0, 2))                                # (B, S, E)
    logits = linear(x.reshape(B * S, E), params['fc_wT'], params['fc_b'])
    return logits.reshape(B, S, V)

    # TODO(synk): generate() (autoregressive multinomial sampling loop) is host-side
    # control flow and is not implemented as a kernel.


if __name__ == "__main__":
    # Small but TPU-tile-friendly shapes: E = 128 (one lane tile) and batch = 8
    # (one sublane tile) keep every in-kernel view change layout-aligned and the
    # kernel output lane-dense.
    vocab_size, embed_dim, num_heads, num_layers, ff_dim, seq_len = 512, 128, 4, 2, 256, 8
    batch = 8

    key = jax.random.PRNGKey(0)
    pkey, xkey = jax.random.split(key)
    params = init_params(pkey, vocab_size, embed_dim, num_heads, num_layers, ff_dim, seq_len)

    x_ids = jax.random.randint(xkey, (batch, seq_len), 1, vocab_size, dtype=jnp.int32)
    attention_mask = jnp.ones((batch, seq_len), jnp.int32)
    attention_mask = attention_mask.at[1, -2:].set(0)   # pad last 2 tokens of sample 1
    attention_mask = attention_mask.at[5, -3:].set(0)   # pad last 3 tokens of sample 5

    logits = bert_forward(params, x_ids, attention_mask, num_heads)
    logits = jax.block_until_ready(logits)

    assert logits.shape == (batch, seq_len, vocab_size)
    assert bool(jnp.all(jnp.isfinite(logits)))
    print("KERNEL_OK")
</pallas_src>

<mosaic_0001>
module attributes {stable_mosaic.version = 11 : i64} {
  func.func @encoder_layer_kernel(%arg0: i32, %arg1: memref<64x128xf32, #tpu.memory_space<vmem>>, %arg2: memref<8x1x8xf32, #tpu.memory_space<vmem>>, %arg3: memref<128x384xbf16, #tpu.memory_space<vmem>>, %arg4: memref<1x384xf32, #tpu.memory_space<vmem>>, %arg5: memref<128x128xbf16, #tpu.memory_space<vmem>>, %arg6: memref<1x128xf32, #tpu.memory_space<vmem>>, %arg7: memref<1x128xf32, #tpu.memory_space<vmem>>, %arg8: memref<1x128xf32, #tpu.memory_space<vmem>>, %arg9: memref<128x256xbf16, #tpu.memory_space<vmem>>, %arg10: memref<1x256xf32, #tpu.memory_space<vmem>>, %arg11: memref<256x128xbf16, #tpu.memory_space<vmem>>, %arg12: memref<1x128xf32, #tpu.memory_space<vmem>>, %arg13: memref<1x128xf32, #tpu.memory_space<vmem>>, %arg14: memref<1x128xf32, #tpu.memory_space<vmem>>, %arg15: memref<64x128xf32, #tpu.memory_space<vmem>>) attributes {dimension_semantics = [#tpu.dimension_semantics<parallel>], iteration_bounds = array<i64: 1>, scalar_prefetch = 0 : i64, scratch_operands = 0 : i64, tpu.core_type = #tpu.core_type<tc>, window_params = [{transform_indices = @transform_0, window_bounds = array<i64: 64, 128>}, {transform_indices = @transform_1, window_bounds = array<i64: 8, 1, 8>}, {pipeline_mode = #tpu.pipeline_mode<synchronous>, transform_indices = @transform_2, window_bounds = array<i64: 128, 384>}, {pipeline_mode = #tpu.pipeline_mode<synchronous>, transform_indices = @transform_3, window_bounds = array<i64: 1, 384>}, {pipeline_mode = #tpu.pipeline_mode<synchronous>, transform_indices = @transform_4, window_bounds = array<i64: 128, 128>}, {pipeline_mode = #tpu.pipeline_mode<synchronous>, transform_indices = @transform_5, window_bounds = array<i64: 1, 128>}, {pipeline_mode = #tpu.pipeline_mode<synchronous>, transform_indices = @transform_6, window_bounds = array<i64: 1, 128>}, {pipeline_mode = #tpu.pipeline_mode<synchronous>, transform_indices = @transform_7, window_bounds = array<i64: 1, 128>}, {pipeline_mode = #tpu.pipeline_mode<synchronous>, transform_indices = @transform_8, window_bounds = array<i64: 128, 256>}, {pipeline_mode = #tpu.pipeline_mode<synchronous>, transform_indices = @transform_9, window_bounds = array<i64: 1, 256>}, {pipeline_mode = #tpu.pipeline_mode<synchronous>, transform_indices = @transform_10, window_bounds = array<i64: 256, 128>}, {pipeline_mode = #tpu.pipeline_mode<synchronous>, transform_indices = @transform_11, window_bounds = array<i64: 1, 128>}, {pipeline_mode = #tpu.pipeline_mode<synchronous>, transform_indices = @transform_12, window_bounds = array<i64: 1, 128>}, {pipeline_mode = #tpu.pipeline_mode<synchronous>, transform_indices = @transform_13, window_bounds = array<i64: 1, 128>}, {transform_indices = @transform_14, window_bounds = array<i64: 64, 128>}]} {
    %c0 = arith.constant 0 : index
    %c0_0 = arith.constant 0 : index
    %0 = vector.load %arg1[%c0, %c0_0] : memref<64x128xf32, #tpu.memory_space<vmem>>, vector<64x128xf32>
    %1 = arith.truncf %0 : vector<64x128xf32> to vector<64x128xbf16>
    %c0_1 = arith.constant 0 : index
    %c0_2 = arith.constant 0 : index
    %2 = vector.load %arg3[%c0_1, %c0_2] : memref<128x384xbf16, #tpu.memory_space<vmem>>, vector<128x384xbf16>
    %cst = arith.constant dense<0.000000e+00> : vector<64x384xf32>
    %3 = tpu.matmul %1, %2, %cst {dimension_numbers = #tpu.dot_dimension_numbers<[1], [0], [0], [1], [0, 0, 1, 1], [], []>} : vector<64x128xbf16>, vector<128x384xbf16>, vector<64x384xf32> -> vector<64x384xf32>
    %c0_3 = arith.constant 0 : index
    %c0_4 = arith.constant 0 : index
    %4 = vector.load %arg4[%c0_3, %c0_4] : memref<1x384xf32, #tpu.memory_space<vmem>>, vector<1x384xf32>
    %5 = vector.broadcast %4 : vector<1x384xf32> to vector<64x384xf32>
    %6 = arith.addf %3, %5 : vector<64x384xf32>
    %7 = vector.extract_strided_slice %6 {offsets = [0, 0], sizes = [64, 128], strides = [1, 1]} : vector<64x384xf32> to vector<64x128xf32>
    %8 = vector.shape_cast %7 : vector<64x128xf32> to vector<8x8x128xf32>
    %9 = vector.extract_strided_slice %6 {offsets = [0, 128], sizes = [64, 128], strides = [1, 1]} : vector<64x384xf32> to vector<64x128xf32>
    %10 = vector.shape_cast %9 : vector<64x128xf32> to vector<8x8x128xf32>
    %11 = vector.extract_strided_slice %6 {offsets = [0, 256], sizes = [64, 128], strides = [1, 1]} : vector<64x384xf32> to vector<64x128xf32>
    %12 = vector.shape_cast %11 : vector<64x128xf32> to vector<8x8x128xf32>
    %c0_5 = arith.constant 0 : index
    %c0_6 = arith.constant 0 : index
    %c0_7 = arith.constant 0 : index
    %13 = vector.load %arg2[%c0_5, %c0_6, %c0_7] : memref<8x1x8xf32, #tpu.memory_space<vmem>>, vector<8x1x8xf32>
    %14 = vector.extract_strided_slice %8 {offsets = [0, 0, 0], sizes = [8, 8, 32], strides = [1, 1, 1]} : vector<8x8x128xf32> to vector<8x8x32xf32>
    %15 = arith.truncf %14 : vector<8x8x32xf32> to vector<8x8x32xbf16>
    %16 = vector.extract_strided_slice %10 {offsets = [0, 0, 0], sizes = [8, 8, 32], strides = [1, 1, 1]} : vector<8x8x128xf32> to vector<8x8x32xf32>
    %17 = arith.truncf %16 : vector<8x8x32xf32> to vector<8x8x32xbf16>
    %18 = vector.extract_strided_slice %12 {offsets = [0, 0, 0], sizes = [8, 8, 32], strides = [1, 1, 1]} : vector<8x8x128xf32> to vector<8x8x32xf32>
    %19 = arith.truncf %18 : vector<8x8x32xf32> to vector<8x8x32xbf16>
    %cst_8 = arith.constant dense<0.000000e+00> : vector<8x8x8xf32>
    %20 = tpu.matmul %15, %17, %cst_8 {dimension_numbers = #tpu.dot_dimension_numbers<[2], [2], [1], [1], [0, 0, 0, 1, 1, 1], [0], [0]>} : vector<8x8x32xbf16>, vector<8x8x32xbf16>, vector<8x8x8xf32> -> vector<8x8x8xf32>
    %21 = vector.broadcast %13 : vector<8x1x8xf32> to vector<8x8x8xf32>
    %22 = arith.addf %20, %21 : vector<8x8x8xf32>
    %cst_9 = arith.constant dense<0xFF800000> : vector<8x8xf32>
    %23 = vector.multi_reduction <maximumf>, %22, %cst_9 [2] : vector<8x8x8xf32> to vector<8x8xf32>
    %24 = vector.shape_cast %23 : vector<8x8xf32> to vector<8x8x1xf32>
    %25 = vector.broadcast %24 : vector<8x8x1xf32> to vector<8x8x8xf32>
    %26 = arith.subf %22, %25 : vector<8x8x8xf32>
    %27 = math.exp %26 : vector<8x8x8xf32>
    %cst_10 = arith.constant dense<0.000000e+00> : vector<8x8xf32>
    %28 = vector.multi_reduction <add>, %27, %cst_10 [2] : vector<8x8x8xf32> to vector<8x8xf32>
    %29 = vector.shape_cast %28 : vector<8x8xf32> to vector<8x8x1xf32>
    %30 = tpu.reciprocal %29 {approx = true} : vector<8x8x1xf32> -> vector<8x8x1xf32>
    %31 = vector.broadcast %30 : vector<8x8x1xf32> to vector<8x8x8xf32>
    %32 = arith.mulf %27, %31 : vector<8x8x8xf32>
    %33 = arith.truncf %32 : vector<8x8x8xf32> to vector<8x8x8xbf16>
    %cst_11 = arith.constant dense<0.000000e+00> : vector<8x8x32xf32>
    %34 = tpu.matmul %33, %19, %cst_11 {dimension_numbers = #tpu.dot_dimension_numbers<[2], [1], [1], [2], [0, 0, 0, 1, 1, 2], [0], [0]>} : vector<8x8x8xbf16>, vector<8x8x32xbf16>, vector<8x8x32xf32> -> vector<8x8x32xf32>
    %35 = vector.extract_strided_slice %8 {offsets = [0, 0, 32], sizes = [8, 8, 32], strides = [1, 1, 1]} : vector<8x8x128xf32> to vector<8x8x32xf32>
    %36 = arith.truncf %35 : vector<8x8x32xf32> to vector<8x8x32xbf16>
    %37 = vector.extract_strided_slice %10 {offsets = [0, 0, 32], sizes = [8, 8, 32], strides = [1, 1, 1]} : vector<8x8x128xf32> to vector<8x8x32xf32>
    %38 = arith.truncf %37 : vector<8x8x32xf32> to vector<8x8x32xbf16>
    %39 = vector.extract_strided_slice %12 {offsets = [0, 0, 32], sizes = [8, 8, 32], strides = [1, 1, 1]} : vector<8x8x128xf32> to vector<8x8x32xf32>
    %40 = arith.truncf %39 : vector<8x8x32xf32> to vector<8x8x32xbf16>
    %cst_12 = arith.constant dense<0.000000e+00> : vector<8x8x8xf32>
    %41 = tpu.matmul %36, %38, %cst_12 {dimension_numbers = #tpu.dot_dimension_numbers<[2], [2], [1], [1], [0, 0, 0, 1, 1, 1], [0], [0]>} : vector<8x8x32xbf16>, vector<8x8x32xbf16>, vector<8x8x8xf32> -> vector<8x8x8xf32>
    %42 = vector.broadcast %13 : vector<8x1x8xf32> to vector<8x8x8xf32>
    %43 = arith.addf %41, %42 : vector<8x8x8xf32>
    %cst_13 = arith.constant dense<0xFF800000> : vector<8x8xf32>
    %44 = vector.multi_reduction <maximumf>, %43, %cst_13 [2] : vector<8x8x8xf32> to vector<8x8xf32>
    %45 = vector.shape_cast %44 : vector<8x8xf32> to vector<8x8x1xf32>
    %46 = vector.broadcast %45 : vector<8x8x1xf32> to vector<8x8x8xf32>
    %47 = arith.subf %43, %46 : vector<8x8x8xf32>
    %48 = math.exp %47 : vector<8x8x8xf32>
    %cst_14 = arith.constant dense<0.000000e+00> : vector<8x8xf32>
    %49 = vector.multi_reduction <add>, %48, %cst_14 [2] : vector<8x8x8xf32> to vector<8x8xf32>
    %50 = vector.shape_cast %49 : vector<8x8xf32> to vector<8x8x1xf32>
    %51 = tpu.reciprocal %50 {approx = true} : vector<8x8x1xf32> -> vector<8x8x1xf32>
    %52 = vector.broadcast %51 : vector<8x8x1xf32> to vector<8x8x8xf32>
    %53 = arith.mulf %48, %52 : vector<8x8x8xf32>
    %54 = arith.truncf %53 : vector<8x8x8xf32> to vector<8x8x8xbf16>
    %cst_15 = arith.constant dense<0.000000e+00> : vector<8x8x32xf32>
    %55 = tpu.matmul %54, %40, %cst_15 {dimension_numbers = #tpu.dot_dimension_numbers<[2], [1], [1], [2], [0, 0, 0, 1, 1, 2], [0], [0]>} : vector<8x8x8xbf16>, vector<8x8x32xbf16>, vector<8x8x32xf32> -> vector<8x8x32xf32>
    %56 = vector.extract_strided_slice %8 {offsets = [0, 0, 64], sizes = [8, 8, 32], strides = [1, 1, 1]} : vector<8x8x128xf32> to vector<8x8x32xf32>
    %57 = arith.truncf %56 : vector<8x8x32xf32> to vector<8x8x32xbf16>
    %58 = vector.extract_strided_slice %10 {offsets = [0, 0, 64], sizes = [8, 8, 32], strides = [1, 1, 1]} : vector<8x8x128xf32> to vector<8x8x32xf32>
    %59 = arith.truncf %58 : vector<8x8x32xf32> to vector<8x8x32xbf16>
    %60 = vector.extract_strided_slice %12 {offsets = [0, 0, 64], sizes = [8, 8, 32], strides = [1, 1, 1]} : vector<8x8x128xf32> to vector<8x8x32xf32>
    %61 = arith.truncf %60 : vector<8x8x32xf32> to vector<8x8x32xbf16>
    %cst_16 = arith.constant dense<0.000000e+00> : vector<8x8x8xf32>
    %62 = tpu.matmul %57, %59, %cst_16 {dimension_numbers = #tpu.dot_dimension_numbers<[2], [2], [1], [1], [0, 0, 0, 1, 1, 1], [0], [0]>} : vector<8x8x32xbf16>, vector<8x8x32xbf16>, vector<8x8x8xf32> -> vector<8x8x8xf32>
    %63 = vector.broadcast %13 : vector<8x1x8xf32> to vector<8x8x8xf32>
    %64 = arith.addf %62, %63 : vector<8x8x8xf32>
    %cst_17 = arith.constant dense<0xFF800000> : vector<8x8xf32>
    %65 = vector.multi_reduction <maximumf>, %64, %cst_17 [2] : vector<8x8x8xf32> to vector<8x8xf32>
    %66 = vector.shape_cast %65 : vector<8x8xf32> to vector<8x8x1xf32>
    %67 = vector.broadcast %66 : vector<8x8x1xf32> to vector<8x8x8xf32>
    %68 = arith.subf %64, %67 : vector<8x8x8xf32>
    %69 = math.exp %68 : vector<8x8x8xf32>
    %cst_18 = arith.constant dense<0.000000e+00> : vector<8x8xf32>
    %70 = vector.multi_reduction <add>, %69, %cst_18 [2] : vector<8x8x8xf32> to vector<8x8xf32>
    %71 = vector.shape_cast %70 : vector<8x8xf32> to vector<8x8x1xf32>
    %72 = tpu.reciprocal %71 {approx = true} : vector<8x8x1xf32> -> vector<8x8x1xf32>
    %73 = vector.broadcast %72 : vector<8x8x1xf32> to vector<8x8x8xf32>
    %74 = arith.mulf %69, %73 : vector<8x8x8xf32>
    %75 = arith.truncf %74 : vector<8x8x8xf32> to vector<8x8x8xbf16>
    %cst_19 = arith.constant dense<0.000000e+00> : vector<8x8x32xf32>
    %76 = tpu.matmul %75, %61, %cst_19 {dimension_numbers = #tpu.dot_dimension_numbers<[2], [1], [1], [2], [0, 0, 0, 1, 1, 2], [0], [0]>} : vector<8x8x8xbf16>, vector<8x8x32xbf16>, vector<8x8x32xf32> -> vector<8x8x32xf32>
    %77 = vector.extract_strided_slice %8 {offsets = [0, 0, 96], sizes = [8, 8, 32], strides = [1, 1, 1]} : vector<8x8x128xf32> to vector<8x8x32xf32>
    %78 = arith.truncf %77 : vector<8x8x32xf32> to vector<8x8x32xbf16>
    %79 = vector.extract_strided_slice %10 {offsets = [0, 0, 96], sizes = [8, 8, 32], strides = [1, 1, 1]} : vector<8x8x128xf32> to vector<8x8x32xf32>
    %80 = arith.truncf %79 : vector<8x8x32xf32> to vector<8x8x32xbf16>
    %81 = vector.extract_strided_slice %12 {offsets = [0, 0, 96], sizes = [8, 8, 32], strides = [1, 1, 1]} : vector<8x8x128xf32> to vector<8x8x32xf32>
    %82 = arith.truncf %81 : vector<8x8x32xf32> to vector<8x8x32xbf16>
    %cst_20 = arith.constant dense<0.000000e+00> : vector<8x8x8xf32>
    %83 = tpu.matmul %78, %80, %cst_20 {dimension_numbers = #tpu.dot_dimension_numbers<[2], [2], [1], [1], [0, 0, 0, 1, 1, 1], [0], [0]>} : vector<8x8x32xbf16>, vector<8x8x32xbf16>, vector<8x8x8xf32> -> vector<8x8x8xf32>
    %84 = vector.broadcast %13 : vector<8x1x8xf32> to vector<8x8x8xf32>
    %85 = arith.addf %83, %84 : vector<8x8x8xf32>
    %cst_21 = arith.constant dense<0xFF800000> : vector<8x8xf32>
    %86 = vector.multi_reduction <maximumf>, %85, %cst_21 [2] : vector<8x8x8xf32> to vector<8x8xf32>
    %87 = vector.shape_cast %86 : vector<8x8xf32> to vector<8x8x1xf32>
    %88 = vector.broadcast %87 : vector<8x8x1xf32> to vector<8x8x8xf32>
    %89 = arith.subf %85, %88 : vector<8x8x8xf32>
    %90 = math.exp %89 : vector<8x8x8xf32>
    %cst_22 = arith.constant dense<0.000000e+00> : vector<8x8xf32>
    %91 = vector.multi_reduction <add>, %90, %cst_22 [2] : vector<8x8x8xf32> to vector<8x8xf32>
    %92 = vector.shape_cast %91 : vector<8x8xf32> to vector<8x8x1xf32>
    %93 = tpu.reciprocal %92 {approx = true} : vector<8x8x1xf32> -> vector<8x8x1xf32>
    %94 = vector.broadcast %93 : vector<8x8x1xf32> to vector<8x8x8xf32>
    %95 = arith.mulf %90, %94 : vector<8x8x8xf32>
    %96 = arith.truncf %95 : vector<8x8x8xf32> to vector<8x8x8xbf16>
    %cst_23 = arith.constant dense<0.000000e+00> : vector<8x8x32xf32>
    %97 = tpu.matmul %96, %82, %cst_23 {dimension_numbers = #tpu.dot_dimension_numbers<[2], [1], [1], [2], [0, 0, 0, 1, 1, 2], [0], [0]>} : vector<8x8x8xbf16>, vector<8x8x32xbf16>, vector<8x8x32xf32> -> vector<8x8x32xf32>
    %98 = tpu.concatenate %34, %55, %76, %97 in 2 : vector<8x8x32xf32>, vector<8x8x32xf32>, vector<8x8x32xf32>, vector<8x8x32xf32> -> vector<8x8x128xf32>
    %99 = vector.shape_cast %98 : vector<8x8x128xf32> to vector<64x128xf32>
    %100 = arith.truncf %99 : vector<64x128xf32> to vector<64x128xbf16>
    %c0_24 = arith.constant 0 : index
    %c0_25 = arith.constant 0 : index
    %101 = vector.load %arg5[%c0_24, %c0_25] : memref<128x128xbf16, #tpu.memory_space<vmem>>, vector<128x128xbf16>
    %cst_26 = arith.constant dense<0.000000e+00> : vector<64x128xf32>
    %102 = tpu.matmul %100, %101, %cst_26 {dimension_numbers = #tpu.dot_dimension_numbers<[1], [0], [0], [1], [0, 0, 1, 1], [], []>} : vector<64x128xbf16>, vector<128x128xbf16>, vector<64x128xf32> -> vector<64x128xf32>
    %c0_27 = arith.constant 0 : index
    %c0_28 = arith.constant 0 : index
    %103 = vector.load %arg6[%c0_27, %c0_28] : memref<1x128xf32, #tpu.memory_space<vmem>>, vector<1x128xf32>
    %104 = vector.broadcast %103 : vector<1x128xf32> to vector<64x128xf32>
    %105 = arith.addf %102, %104 : vector<64x128xf32>
    %106 = arith.addf %0, %105 : vector<64x128xf32>
    %c0_29 = arith.constant 0 : index
    %c0_30 = arith.constant 0 : index
    %107 = vector.load %arg7[%c0_29, %c0_30] : memref<1x128xf32, #tpu.memory_space<vmem>>, vector<1x128xf32>
    %c0_31 = arith.constant 0 : index
    %c0_32 = arith.constant 0 : index
    %108 = vector.load %arg8[%c0_31, %c0_32] : memref<1x128xf32, #tpu.memory_space<vmem>>, vector<1x128xf32>
    %cst_33 = arith.constant dense<0.000000e+00> : vector<64xf32>
    %109 = vector.multi_reduction <add>, %106, %cst_33 [1] : vector<64x128xf32> to vector<64xf32>
    %110 = vector.shape_cast %109 : vector<64xf32> to vector<64x1xf32>
    %cst_34 = arith.constant 1.280000e+02 : f32
    %111 = vector.broadcast %cst_34 : f32 to vector<64x1xf32>
    %112 = arith.divf %110, %111 : vector<64x1xf32>
    %113 = vector.broadcast %112 : vector<64x1xf32> to vector<64x128xf32>
    %114 = arith.subf %106, %113 : vector<64x128xf32>
    %115 = arith.mulf %114, %114 : vector<64x128xf32>
    %cst_35 = arith.constant dense<0.000000e+00> : vector<64xf32>
    %116 = vector.multi_reduction <add>, %115, %cst_35 [1] : vector<64x128xf32> to vector<64xf32>
    %117 = vector.shape_cast %116 : vector<64xf32> to vector<64x1xf32>
    %cst_36 = arith.constant 1.280000e+02 : f32
    %118 = vector.broadcast %cst_36 : f32 to vector<64x1xf32>
    %119 = arith.divf %117, %118 : vector<64x1xf32>
    %cst_37 = arith.constant 9.99999974E-6 : f32
    %120 = vector.broadcast %cst_37 : f32 to vector<64x1xf32>
    %121 = arith.addf %119, %120 : vector<64x1xf32>
    %122 = math.rsqrt %121 : vector<64x1xf32>
    %123 = vector.broadcast %122 : vector<64x1xf32> to vector<64x128xf32>
    %124 = arith.mulf %114, %123 : vector<64x128xf32>
    %125 = vector.broadcast %107 : vector<1x128xf32> to vector<64x128xf32>
    %126 = arith.mulf %124, %125 : vector<64x128xf32>
    %127 = vector.broadcast %108 : vector<1x128xf32> to vector<64x128xf32>
    %128 = arith.addf %126, %127 : vector<64x128xf32>
    %129 = arith.truncf %128 : vector<64x128xf32> to vector<64x128xbf16>
    %c0_38 = arith.constant 0 : index
    %c0_39 = arith.constant 0 : index
    %130 = vector.load %arg9[%c0_38, %c0_39] : memref<128x256xbf16, #tpu.memory_space<vmem>>, vector<128x256xbf16>
    %cst_40 = arith.constant dense<0.000000e+00> : vector<64x256xf32>
    %131 = tpu.matmul %129, %130, %cst_40 {dimension_numbers = #tpu.dot_dimension_numbers<[1], [0], [0], [1], [0, 0, 1, 1], [], []>} : vector<64x128xbf16>, vector<128x256xbf16>, vector<64x256xf32> -> vector<64x256xf32>
    %c0_41 = arith.constant 0 : index
    %c0_42 = arith.constant 0 : index
    %132 = vector.load %arg10[%c0_41, %c0_42] : memref<1x256xf32, #tpu.memory_space<vmem>>, vector<1x256xf32>
    %133 = vector.broadcast %132 : vector<1x256xf32> to vector<64x256xf32>
    %134 = arith.addf %131, %133 : vector<64x256xf32>
    %cst_43 = arith.constant 0.000000e+00 : f32
    %135 = vector.broadcast %cst_43 : f32 to vector<64x256xf32>
    %136 = arith.maximumf %134, %135 : vector<64x256xf32>
    %137 = arith.truncf %136 : vector<64x256xf32> to vector<64x256xbf16>
    %c0_44 = arith.constant 0 : index
    %c0_45 = arith.constant 0 : index
    %138 = vector.load %arg11[%c0_44, %c0_45] : memref<256x128xbf16, #tpu.memory_space<vmem>>, vector<256x128xbf16>
    %cst_46 = arith.constant dense<0.000000e+00> : vector<64x128xf32>
    %139 = tpu.matmul %137, %138, %cst_46 {dimension_numbers = #tpu.dot_dimension_numbers<[1], [0], [0], [1], [0, 0, 1, 1], [], []>} : vector<64x256xbf16>, vector<256x128xbf16>, vector<64x128xf32> -> vector<64x128xf32>
    %c0_47 = arith.constant 0 : index
    %c0_48 = arith.constant 0 : index
    %140 = vector.load %arg12[%c0_47, %c0_48] : memref<1x128xf32, #tpu.memory_space<vmem>>, vector<1x128xf32>
    %141 = vector.broadcast %140 : vector<1x128xf32> to vector<64x128xf32>
    %142 = arith.addf %139, %141 : vector<64x128xf32>
    %143 = arith.addf %128, %142 : vector<64x128xf32>
    %c0_49 = arith.constant 0 : index
    %c0_50 = arith.constant 0 : index
    %144 = vector.load %arg13[%c0_49, %c0_50] : memref<1x128xf32, #tpu.memory_space<vmem>>, vector<1x128xf32>
    %c0_51 = arith.constant 0 : index
    %c0_52 = arith.constant 0 : index
    %145 = vector.load %arg14[%c0_51, %c0_52] : memref<1x128xf32, #tpu.memory_space<vmem>>, vector<1x128xf32>
    %cst_53 = arith.constant dense<0.000000e+00> : vector<64xf32>
    %146 = vector.multi_reduction <add>, %143, %cst_53 [1] : vector<64x128xf32> to vector<64xf32>
    %147 = vector.shape_cast %146 : vector<64xf32> to vector<64x1xf32>
    %cst_54 = arith.constant 1.280000e+02 : f32
    %148 = vector.broadcast %cst_54 : f32 to vector<64x1xf32>
    %149 = arith.divf %147, %148 : vector<64x1xf32>
    %150 = vector.broadcast %149 : vector<64x1xf32> to vector<64x128xf32>
    %151 = arith.subf %143, %150 : vector<64x128xf32>
    %152 = arith.mulf %151, %151 : vector<64x128xf32>
    %cst_55 = arith.constant dense<0.000000e+00> : vector<64xf32>
    %153 = vector.multi_reduction <add>, %152, %cst_55 [1] : vector<64x128xf32> to vector<64xf32>
    %154 = vector.shape_cast %153 : vector<64xf32> to vector<64x1xf32>
    %cst_56 = arith.constant 1.280000e+02 : f32
    %155 = vector.broadcast %cst_56 : f32 to vector<64x1xf32>
    %156 = arith.divf %154, %155 : vector<64x1xf32>
    %cst_57 = arith.constant 9.99999974E-6 : f32
    %157 = vector.broadcast %cst_57 : f32 to vector<64x1xf32>
    %158 = arith.addf %156, %157 : vector<64x1xf32>
    %159 = math.rsqrt %158 : vector<64x1xf32>
    %160 = vector.broadcast %159 : vector<64x1xf32> to vector<64x128xf32>
    %161 = arith.mulf %151, %160 : vector<64x128xf32>
    %162 = vector.broadcast %144 : vector<1x128xf32> to vector<64x128xf32>
    %163 = arith.mulf %161, %162 : vector<64x128xf32>
    %164 = vector.broadcast %145 : vector<1x128xf32> to vector<64x128xf32>
    %165 = arith.addf %163, %164 : vector<64x128xf32>
    %c0_58 = arith.constant 0 : index
    %c0_59 = arith.constant 0 : index
    %166 = vector.load %arg15[%c0_58, %c0_59] : memref<64x128xf32, #tpu.memory_space<vmem>>, vector<64x128xf32>
    tpu.vector_store %arg15[%c0_58, %c0_59], %165 {strides = array<i32>} : memref<64x128xf32, #tpu.memory_space<vmem>>, vector<64x128xf32>,
    return
  }
  func.func @transform_0(%arg0: i32) -> (i32, i32) {
    %c0_i32 = arith.constant 0 : i32
    %c0_i32_0 = arith.constant 0 : i32
    return %arg0, %c0_i32 : i32, i32
  }
  func.func @transform_1(%arg0: i32) -> (i32, i32, i32) {
    %c0_i32 = arith.constant 0 : i32
    %c0_i32_0 = arith.constant 0 : i32
    %c0_i32_1 = arith.constant 0 : i32
    return %arg0, %c0_i32, %c0_i32_0 : i32, i32, i32
  }
  func.func @transform_2(%arg0: i32) -> (i32, i32) {
    %c0_i32 = arith.constant 0 : i32
    %c0_i32_0 = arith.constant 0 : i32
    %c0_i32_1 = arith.constant 0 : i32
    return %c0_i32, %c0_i32_0 : i32, i32
  }
  func.func @transform_3(%arg0: i32) -> (i32, i32) {
    %c0_i32 = arith.constant 0 : i32
    %c0_i32_0 = arith.constant 0 : i32
    %c0_i32_1 = arith.constant 0 : i32
    return %c0_i32, %c0_i32_0 : i32, i32
  }
  func.func @transform_4(%arg0: i32) -> (i32, i32) {
    %c0_i32 = arith.constant 0 : i32
    %c0_i32_0 = arith.constant 0 : i32
    %c0_i32_1 = arith.constant 0 : i32
    return %c0_i32, %c0_i32_0 : i32, i32
  }
  func.func @transform_5(%arg0: i32) -> (i32, i32) {
    %c0_i32 = arith.constant 0 : i32
    %c0_i32_0 = arith.constant 0 : i32
    %c0_i32_1 = arith.constant 0 : i32
    return %c0_i32, %c0_i32_0 : i32, i32
  }
  func.func @transform_6(%arg0: i32) -> (i32, i32) {
    %c0_i32 = arith.constant 0 : i32
    %c0_i32_0 = arith.constant 0 : i32
    %c0_i32_1 = arith.constant 0 : i32
    return %c0_i32, %c0_i32_0 : i32, i32
  }
  func.func @transform_7(%arg0: i32) -> (i32, i32) {
    %c0_i32 = arith.constant 0 : i32
    %c0_i32_0 = arith.constant 0 : i32
    %c0_i32_1 = arith.constant 0 : i32
    return %c0_i32, %c0_i32_0 : i32, i32
  }
  func.func @transform_8(%arg0: i32) -> (i32, i32) {
    %c0_i32 = arith.constant 0 : i32
    %c0_i32_0 = arith.constant 0 : i32
    %c0_i32_1 = arith.constant 0 : i32
    return %c0_i32, %c0_i32_0 : i32, i32
  }
  func.func @transform_9(%arg0: i32) -> (i32, i32) {
    %c0_i32 = arith.constant 0 : i32
    %c0_i32_0 = arith.constant 0 : i32
    %c0_i32_1 = arith.constant 0 : i32
    return %c0_i32, %c0_i32_0 : i32, i32
  }
  func.func @transform_10(%arg0: i32) -> (i32, i32) {
    %c0_i32 = arith.constant 0 : i32
    %c0_i32_0 = arith.constant 0 : i32
    %c0_i32_1 = arith.constant 0 : i32
    return %c0_i32, %c0_i32_0 : i32, i32
  }
  func.func @transform_11(%arg0: i32) -> (i32, i32) {
    %c0_i32 = arith.constant 0 : i32
    %c0_i32_0 = arith.constant 0 : i32
    %c0_i32_1 = arith.constant 0 : i32
    return %c0_i32, %c0_i32_0 : i32, i32
  }
  func.func @transform_12(%arg0: i32) -> (i32, i32) {
    %c0_i32 = arith.constant 0 : i32
    %c0_i32_0 = arith.constant 0 : i32
    %c0_i32_1 = arith.constant 0 : i32
    return %c0_i32, %c0_i32_0 : i32, i32
  }
  func.func @transform_13(%arg0: i32) -> (i32, i32) {
    %c0_i32 = arith.constant 0 : i32
    %c0_i32_0 = arith.constant 0 : i32
    %c0_i32_1 = arith.constant 0 : i32
    return %c0_i32, %c0_i32_0 : i32, i32
  }
  func.func @transform_14(%arg0: i32) -> (i32, i32) {
    %c0_i32 = arith.constant 0 : i32
    %c0_i32_0 = arith.constant 0 : i32
    return %arg0, %c0_i32 : i32, i32
  }
}

</mosaic_0001>

<llo_original>
// kernel: tpu_custom_call.1
$region0: #{tpu_custom_call.1}
  #allocation0 [shape = 'u32[]', space=smem, size = 0x4, offset = 0x4, fixed_abs, tag = 'smem constant byte address 0x4 - core index']
  #allocation1 [shape = 'u32[72,128]{1,0:T(1,128)}', space=vmem, size = 0x9000, scoped, tag = 'internal scratch']
  %s0 = inlined_call_operand.hbm [shape: f32[64,128], index: 0, kind: input, shape index: {}]
  %s1 = inlined_call_operand.hbm [shape: f32[8,1,8], index: 1, kind: input, shape index: {}]
  %s2 = inlined_call_operand.hbm [shape: bf16[128,384], index: 2, kind: input, shape index: {}]
  %s3 = inlined_call_operand.hbm [shape: f32[1,384], index: 3, kind: input, shape index: {}]
  %s4 = inlined_call_operand.hbm [shape: bf16[128,128], index: 4, kind: input, shape index: {}]
  %s5 = inlined_call_operand.vmem [shape: f32[1,128], index: 5, kind: input, shape index: {}]
  %s6 = inlined_call_operand.vmem [shape: f32[1,128], index: 6, kind: input, shape index: {}]
  %s7 = inlined_call_operand.vmem [shape: f32[1,128], index: 7, kind: input, shape index: {}]
  %s8 = inlined_call_operand.hbm [shape: bf16[128,256], index: 8, kind: input, shape index: {}]
  %s9 = inlined_call_operand.vmem [shape: f32[1,256], index: 9, kind: input, shape index: {}]
  %s10 = inlined_call_operand.hbm [shape: bf16[256,128], index: 10, kind: input, shape index: {}]
  %s11 = inlined_call_operand.vmem [shape: f32[1,128], index: 11, kind: input, shape index: {}]
  %s12 = inlined_call_operand.vmem [shape: f32[1,128], index: 12, kind: input, shape index: {}]
  %s13 = inlined_call_operand.vmem [shape: f32[1,128], index: 13, kind: input, shape index: {}]
  %s14 = inlined_call_operand.hbm [shape: f32[64,128], index: 14, kind: output, shape index: {}]
  %s15 = sld [smem:[#allocation0]]
  $region94: #{tpu_custom_call.1} parent=0
    _
  %s17 = ssub.s32 1, %s15
  %s18 = scalar_select 0, %s17, %s15
  $region1: #{tpu_custom_call.1} parent=0
    #allocation2 [shape = 'u8[32768]{0}', space=vmem, size = 0x8000, scoped, tag = 'input window, operand 0, single buffered']
    #allocation3 [shape = 's32[1]{0}', space=sflag, size = 0x4, scoped, tag = 'scoped memory for tpu_custom_call.1']
    #allocation4 [shape = 's32[1]{0}', space=sflag, size = 0x4, scoped, tag = 'scoped memory for tpu_custom_call.1']
    #allocation5 [shape = 'u8[4096]{0}', space=vmem, size = 0x1000, scoped, tag = 'input window, operand 1, single buffered']
    #allocation6 [shape = 's32[1]{0}', space=sflag, size = 0x4, scoped, tag = 'scoped memory for tpu_custom_call.1']
    #allocation7 [shape = 'u8[98304]{0}', space=vmem, size = 0x18000, scoped, tag = 'input window, operand 2, single buffered']
    #allocation8 [shape = 'u8[1536]{0}', space=vmem, size = 0x800, scoped, tag = 'input window, operand 3, single buffered']
    #allocation9 [shape = 's32[1]{0}', space=sflag, size = 0x4, scoped, tag = 'scoped memory for tpu_custom_call.1']
    #allocation10 [shape = 'u8[32768]{0}', space=vmem, size = 0x8000, scoped, tag = 'input window, operand 4, single buffered']
    #allocation11 [shape = 'u8[65536]{0}', space=vmem, size = 0x10000, scoped, tag = 'input window, operand 8, single buffered']
    #allocation12 [shape = 's32[1]{0}', space=sflag, size = 0x4, scoped, tag = 'scoped memory for tpu_custom_call.1']
    #allocation13 [shape = 'u8[65536]{0}', space=vmem, size = 0x10000, scoped, tag = 'input window, operand 10, single buffered']
    #allocation14 [shape = 'u8[32768]{0}', space=vmem, size = 0x8000, scoped, tag = 'output window, operand 0, single buffered']
    %19 = vsyncpa [#allocation3], 0
    %20 = vsyncpa [#allocation6], 0
    %21 = vsyncpa [#allocation9], 0
    %22 = vsyncpa [#allocation12], 0
    %23 = vsyncpa [#allocation4], 0
    // Predicated region
    $region2: #{tpu_custom_call.1} parent=1 // pred_check
      _
    $region3: #{tpu_custom_call.1} parent=1 // pred_check_branch
      %25 = sbr.rel (0) target = $region5
    $region4: #{tpu_custom_call.1} parent=1 // pred_region
      %27 = vsyncadd [#allocation3], 0
      %s28 = sshll.u32 %s0, 4
      %s29 = int_to_ptr.hbm [resolvable:$true] %s28
      %s30 = sshll.u32 [#allocation2], 4
      %s31 = int_to_ptr.vmem [resolvable:$true] %s30
      %36 = dma.hbm_to_vmem [thread:$0]  %s29, 1024, %s31, [#allocation3], 128, 128, 8
    $region5: #{tpu_custom_call.1} parent=1 // pred_fallthru
      _
    // Predicated region
    $region6: #{tpu_custom_call.1} parent=1 // pred_check
      _
    $region7: #{tpu_custom_call.1} parent=1 // pred_check_branch
      %38 = sbr.rel (0) target = $region9
    $region8: #{tpu_custom_call.1} parent=1 // pred_region
      %40 = vsyncadd [#allocation6], 0
      %s41 = sshll.u32 %s1, 4
      %s42 = int_to_ptr.hbm [resolvable:$true] %s41
      %s43 = sshll.u32 [#allocation5], 4
      %s44 = int_to_ptr.vmem [resolvable:$true] %s43
      %49 = dma.hbm_to_vmem [thread:$0]  %s42, 128, %s44, [#allocation6], 16, 16, 1
    $region9: #{tpu_custom_call.1} parent=1 // pred_fallthru
      _
    // Predicated region
    $region10: #{tpu_custom_call.1} parent=1 // pred_check
      _
    $region11: #{tpu_custom_call.1} parent=1 // pred_check_branch
      %51 = sbr.rel (0) target = $region13
    $region12: #{tpu_custom_call.1} parent=1 // pred_region
      %53 = vsyncadd [#allocation6], 0
      %s54 = sshll.u32 %s2, 4
      %s55 = int_to_ptr.hbm [resolvable:$true] %s54
      %s56 = sshll.u32 [#allocation7], 4
      %s57 = int_to_ptr.vmem [resolvable:$true] %s56
      %62 = dma.hbm_to_vmem [thread:$0]  %s55, 3072, %s57, [#allocation6], 192, 192, 12
    $region13: #{tpu_custom_call.1} parent=1 // pred_fallthru
      _
    // Predicated region
    $region14: #{tpu_custom_call.1} parent=1 // pred_check
      _
    $region15: #{tpu_custom_call.1} parent=1 // pred_check_branch
      %64 = sbr.rel (0) target = $region17
    $region16: #{tpu_custom_call.1} parent=1 // pred_region
      %66 = vsyncadd [#allocation9], 0
      %s68 = sshll.u32 %s3, 4
      %s69 = int_to_ptr.hbm [resolvable:$true] %s68
      %s70 = sshll.u32 [#allocation8], 4
      %s71 = int_to_ptr.vmem [resolvable:$true] %s70
      %73 = dma.hbm_to_vmem [thread:$0]  %s69, 48, %s71, [#allocation9]
    $region17: #{tpu_custom_call.1} parent=1 // pred_fallthru
      _
    // Predicated region
    $region18: #{tpu_custom_call.1} parent=1 // pred_check
      _
    $region19: #{tpu_custom_call.1} parent=1 // pred_check_branch
      %75 = sbr.rel (0) target = $region21
    $region20: #{tpu_custom_call.1} parent=1 // pred_region
      %77 = vsyncadd [#allocation9], 0
      %s78 = sshll.u32 %s4, 4
      %s79 = int_to_ptr.hbm [resolvable:$true] %s78
      %s80 = sshll.u32 [#allocation10], 4
      %s81 = int_to_ptr.vmem [resolvable:$true] %s80
      %86 = dma.hbm_to_vmem [thread:$0]  %s79, 1024, %s81, [#allocation9], 64, 64, 4
    $region21: #{tpu_custom_call.1} parent=1 // pred_fallthru
      _
    // Predicated region
    $region22: #{tpu_custom_call.1} parent=1 // pred_check
      _
    $region23: #{tpu_custom_call.1} parent=1 // pred_check_branch
      %88 = sbr.rel (0) target = $region25
    $region24: #{tpu_custom_call.1} parent=1 // pred_region
      _
    $region25: #{tpu_custom_call.1} parent=1 // pred_fallthru
      _
    // Predicated region
    $region26: #{tpu_custom_call.1} parent=1 // pred_check
      _
    $region27: #{tpu_custom_call.1} parent=1 // pred_check_branch
      %90 = sbr.rel (0) target = $region29
    $region28: #{tpu_custom_call.1} parent=1 // pred_region
      _
    $region29: #{tpu_custom_call.1} parent=1 // pred_fallthru
      _
    // Predicated region
    $region30: #{tpu_custom_call.1} parent=1 // pred_check
      _
    $region31: #{tpu_custom_call.1} parent=1 // pred_check_branch
      %92 = sbr.rel (0) target = $region33
    $region32: #{tpu_custom_call.1} parent=1 // pred_region
      _
    $region33: #{tpu_custom_call.1} parent=1 // pred_fallthru
      _
    // Predicated region
    $region34: #{tpu_custom_call.1} parent=1 // pred_check
      _
    $region35: #{tpu_custom_call.1} parent=1 // pred_check_branch
      %94 = sbr.rel (0) target = $region37
    $region36: #{tpu_custom_call.1} parent=1 // pred_region
      %96 = vsyncadd [#allocation12], 0
      %s97 = sshll.u32 %s8, 4
      %s98 = int_to_ptr.hbm [resolvable:$true] %s97
      %s99 = sshll.u32 [#allocation11], 4
      %s100 = int_to_ptr.vmem [resolvable:$true] %s99
      %105 = dma.hbm_to_vmem [thread:$0]  %s98, 2048, %s100, [#allocation12], 128, 128, 8
    $region37: #{tpu_custom_call.1} parent=1 // pred_fallthru
      _
    // Predicated region
    $region38: #{tpu_custom_call.1} parent=1 // pred_check
      _
    $region39: #{tpu_custom_call.1} parent=1 // pred_check_branch
      %107 = sbr.rel (0) target = $region41
    $region40: #{tpu_custom_call.1} parent=1 // pred_region
      _
    $region41: #{tpu_custom_call.1} parent=1 // pred_fallthru
      _
    // Predicated region
    $region42: #{tpu_custom_call.1} parent=1 // pred_check
      _
    $region43: #{tpu_custom_call.1} parent=1 // pred_check_branch
      %109 = sbr.rel (0) target = $region45
    $region44: #{tpu_custom_call.1} parent=1 // pred_region
      %111 = vsyncadd [#allocation12], 0
      %s112 = sshll.u32 %s10, 4
      %s113 = int_to_ptr.hbm [resolvable:$true] %s112
      %s114 = sshll.u32 [#allocation13], 4
      %s115 = int_to_ptr.vmem [resolvable:$true] %s114
      %120 = dma.hbm_to_vmem [thread:$0]  %s113, 2048, %s115, [#allocation12], 64, 64, 4
    $region45: #{tpu_custom_call.1} parent=1 // pred_fallthru
      _
    // Predicated region
    $region46: #{tpu_custom_call.1} parent=1 // pred_check
      _
    $region47: #{tpu_custom_call.1} parent=1 // pred_check_branch
      %122 = sbr.rel (0) target = $region49
    $region48: #{tpu_custom_call.1} parent=1 // pred_region
      _
    $region49: #{tpu_custom_call.1} parent=1 // pred_fallthru
      _
    // Predicated region
    $region50: #{tpu_custom_call.1} parent=1 // pred_check
      _
    $region51: #{tpu_custom_call.1} parent=1 // pred_check_branch
      %124 = sbr.rel (0) target = $region53
    $region52: #{tpu_custom_call.1} parent=1 // pred_region
      _
    $region53: #{tpu_custom_call.1} parent=1 // pred_fallthru
      _
    // Predicated region
    $region54: #{tpu_custom_call.1} parent=1 // pred_check
      _
    $region55: #{tpu_custom_call.1} parent=1 // pred_check_branch
      %126 = sbr.rel (0) target = $region57
    $region56: #{tpu_custom_call.1} parent=1 // pred_region
      _
    $region57: #{tpu_custom_call.1} parent=1 // pred_fallthru
      _
    // Predicated region
    $region58: #{tpu_custom_call.1} parent=1 // pred_check
      _
    $region59: #{tpu_custom_call.1} parent=1 // pred_check_branch
      %128 = sbr.rel (0) target = $region61
    $region60: #{tpu_custom_call.1} parent=1 // pred_region
      %130 = dma.done [#allocation3], 1024
    $region61: #{tpu_custom_call.1} parent=1 // pred_fallthru
      _
    // Predicated region
    $region62: #{tpu_custom_call.1} parent=1 // pred_check
      _
    $region63: #{tpu_custom_call.1} parent=1 // pred_check_branch
      %132 = sbr.rel (0) target = $region65
    $region64: #{tpu_custom_call.1} parent=1 // pred_region
      %134 = dma.done [#allocation6], 128
    $region65: #{tpu_custom_call.1} parent=1 // pred_fallthru
      _
    // Predicated region
    $region66: #{tpu_custom_call.1} parent=1 // pred_check
      _
    $region67: #{tpu_custom_call.1} parent=1 // pred_check_branch
      %136 = sbr.rel (0) target = $region69
    $region68: #{tpu_custom_call.1} parent=1 // pred_region
      %138 = dma.done [#allocation6], 3072
    $region69: #{tpu_custom_call.1} parent=1 // pred_fallthru
      _
    // Predicated region
    $region70: #{tpu_custom_call.1} parent=1 // pred_check
      _
    $region71: #{tpu_custom_call.1} parent=1 // pred_check_branch
      %140 = sbr.rel (0) target = $region73
    $region72: #{tpu_custom_call.1} parent=1 // pred_region
      %142 = dma.done [#allocation9], 48
    $region73: #{tpu_custom_call.1} parent=1 // pred_fallthru
      _
    // Predicated region
    $region74: #{tpu_custom_call.1} parent=1 // pred_check
      _
    $region75: #{tpu_custom_call.1} parent=1 // pred_check_branch
      %144 = sbr.rel (0) target = $region77
    $region76: #{tpu_custom_call.1} parent=1 // pred_region
      %146 = dma.done [#allocation9], 1024
    $region77: #{tpu_custom_call.1} parent=1 // pred_fallthru
      _
    // Predicated region
    $region78: #{tpu_custom_call.1} parent=1 // pred_check
      _
    $region79: #{tpu_custom_call.1} parent=1 // pred_check_branch
      %148 = sbr.rel (0) target = $region81
    $region80: #{tpu_custom_call.1} parent=1 // pred_region
      %150 = dma.done [#allocation12], 2048
    $region81: #{tpu_custom_call.1} parent=1 // pred_fallthru
      _
    // Predicated region
    $region82: #{tpu_custom_call.1} parent=1 // pred_check
      _
    $region83: #{tpu_custom_call.1} parent=1 // pred_check_branch
      %152 = sbr.rel (0) target = $region85
    $region84: #{tpu_custom_call.1} parent=1 // pred_region
      %154 = dma.done [#allocation12], 2048
    $region85: #{tpu_custom_call.1} parent=1 // pred_fallthru
      _
    %v156 = vld [vmem:[#allocation2] sm:$0xff]
    %v157 = vld [vmem:[#allocation2 + $0x8] sm:$0xff]
    %v158 = vld [vmem:[#allocation2 + $0x10] sm:$0xff]
    %v159 = vld [vmem:[#allocation2 + $0x18] sm:$0xff]
    %v160 = vld [vmem:[#allocation2 + $0x20] sm:$0xff]
    %v161 = vld [vmem:[#allocation2 + $0x28] sm:$0xff]
    %v162 = vld [vmem:[#allocation2 + $0x30] sm:$0xff]
    %v163 = vld [vmem:[#allocation2 + $0x38] sm:$0xff]
    %v164 = vpack.c.bf16 %v157, %v156
    %v165 = vpack.c.bf16 %v159, %v158
    %v166 = vpack.c.bf16 %v161, %v160
    %v167 = vpack.c.bf16 %v163, %v162
    %v168 = vld [vmem:[#allocation7] sm:$0xff]
    %v169 = vld [vmem:[#allocation7 + $0x8] sm:$0xf]
    %v170 = vld [vmem:[#allocation7 + $0xc] sm:$0xff]
    %v171 = vld [vmem:[#allocation7 + $0x14] sm:$0xf]
    %v172 = vld [vmem:[#allocation7 + $0x18] sm:$0xff]
    %v173 = vld [vmem:[#allocation7 + $0x20] sm:$0xf]
    %v174 = vld [vmem:[#allocation7 + $0x24] sm:$0xff]
    %v175 = vld [vmem:[#allocation7 + $0x2c] sm:$0xf]
    %v176 = vld [vmem:[#allocation7 + $0x30] sm:$0xff]
    %v177 = vld [vmem:[#allocation7 + $0x38] sm:$0xf]
    %v178 = vld [vmem:[#allocation7 + $0x3c] sm:$0xff]
    %v179 = vld [vmem:[#allocation7 + $0x44] sm:$0xf]
    %v180 = vld [vmem:[#allocation7 + $0x48] sm:$0xff]
    %v181 = vld [vmem:[#allocation7 + $0x50] sm:$0xf]
    %v182 = vld [vmem:[#allocation7 + $0x54] sm:$0xff]
    %v183 = vld [vmem:[#allocation7 + $0x5c] sm:$0xf]
    %v184 = vld [vmem:[#allocation7 + $0x60] sm:$0xff]
    %v185 = vld [vmem:[#allocation7 + $0x68] sm:$0xf]
    %v186 = vld [vmem:[#allocation7 + $0x6c] sm:$0xff]
    %v187 = vld [vmem:[#allocation7 + $0x74] sm:$0xf]
    %v188 = vld [vmem:[#allocation7 + $0x78] sm:$0xff]
    %v189 = vld [vmem:[#allocation7 + $0x80] sm:$0xf]
    %v190 = vld [vmem:[#allocation7 + $0x84] sm:$0xff]
    %v191 = vld [vmem:[#allocation7 + $0x8c] sm:$0xf]
    %v192 = vld [vmem:[#allocation7 + $0x90] sm:$0xff]
    %v193 = vld [vmem:[#allocation7 + $0x98] sm:$0xf]
    %v194 = vld [vmem:[#allocation7 + $0x9c] sm:$0xff]
    %v195 = vld [vmem:[#allocation7 + $0xa4] sm:$0xf]
    %v196 = vld [vmem:[#allocation7 + $0xa8] sm:$0xff]
    %v197 = vld [vmem:[#allocation7 + $0xb0] sm:$0xf]
    %v198 = vld [vmem:[#allocation7 + $0xb4] sm:$0xff]
    %v199 = vld [vmem:[#allocation7 + $0xbc] sm:$0xf]
    %v200 = vld [vmem:[#allocation8] sm:$0x7]
    %v202 = vperm.slane %v200, 0
    %v203 = vperm.slane %v200, 1
    %v204 = vperm.slane %v200, 2
    %v240 = vunpack.c.l.b16 %v168
    %v241 = vunpack.c.h.b16 %v168
    %v242 = vunpack.c.l.b16 %v169
    %v243 = vunpack.c.l.b16 %v170
    %v244 = vunpack.c.h.b16 %v170
    %v245 = vunpack.c.l.b16 %v171
    %v246 = vunpack.c.l.b16 %v172
    %v247 = vunpack.c.h.b16 %v172
    %v248 = vunpack.c.l.b16 %v173
    %v249 = vunpack.c.l.b16 %v174
    %v250 = vunpack.c.h.b16 %v174
    %v251 = vunpack.c.l.b16 %v175
    %v252 = vunpack.c.l.b16 %v176
    %v253 = vunpack.c.h.b16 %v176
    %v254 = vunpack.c.l.b16 %v177
    %v255 = vunpack.c.l.b16 %v178
    %v256 = vunpack.c.h.b16 %v178
    %v257 = vunpack.c.l.b16 %v179
    %v258 = vunpack.c.l.b16 %v180
    %v259 = vunpack.c.h.b16 %v180
    %v260 = vunpack.c.l.b16 %v181
    %v261 = vunpack.c.l.b16 %v182
    %v262 = vunpack.c.h.b16 %v182
    %v263 = vunpack.c.l.b16 %v183
    %v264 = vunpack.c.l.b16 %v184
    %v265 = vunpack.c.h.b16 %v184
    %v266 = vunpack.c.l.b16 %v185
    %v267 = vunpack.c.l.b16 %v186
    %v268 = vunpack.c.h.b16 %v186
    %v269 = vunpack.c.l.b16 %v187
    %v270 = vunpack.c.l.b16 %v188
    %v271 = vunpack.c.h.b16 %v188
    %v272 = vunpack.c.l.b16 %v189
    %v273 = vunpack.c.l.b16 %v190
    %v274 = vunpack.c.h.b16 %v190
    %v275 = vunpack.c.l.b16 %v191
    %v276 = vunpack.c.l.b16 %v192
    %v277 = vunpack.c.h.b16 %v192
    %v278 = vunpack.c.l.b16 %v193
    %v279 = vunpack.c.l.b16 %v194
    %v280 = vunpack.c.h.b16 %v194
    %v281 = vunpack.c.l.b16 %v195
    %v282 = vunpack.c.l.b16 %v196
    %v283 = vunpack.c.h.b16 %v196
    %v284 = vunpack.c.l.b16 %v197
    %v285 = vunpack.c.l.b16 %v198
    %v286 = vunpack.c.h.b16 %v198
    %v287 = vunpack.c.l.b16 %v199
    %v288 = vpack.c.b16 %v243, %v240
    %v289 = vpack.c.b16 %v244, %v241
    %v290 = vpack.c.b16 %v245, %v242
    %v291 = vpack.c.b16 %v249, %v246
    %v292 = vpack.c.b16 %v250, %v247
    %v293 = vpack.c.b16 %v251, %v248
    %v294 = vpack.c.b16 %v255, %v252
    %v295 = vpack.c.b16 %v256, %v253
    %v296 = vpack.c.b16 %v257, %v254
    %v297 = vpack.c.b16 %v261, %v258
    %v298 = vpack.c.b16 %v262, %v259
    %v299 = vpack.c.b16 %v263, %v260
    %v300 = vpack.c.b16 %v267, %v264
    %v301 = vpack.c.b16 %v268, %v265
    %v302 = vpack.c.b16 %v269, %v266
    %v303 = vpack.c.b16 %v273, %v270
    %v304 = vpack.c.b16 %v274, %v271
    %v305 = vpack.c.b16 %v275, %v272
    %v306 = vpack.c.b16 %v279, %v276
    %v307 = vpack.c.b16 %v280, %v277
    %v308 = vpack.c.b16 %v281, %v278
    %v309 = vpack.c.b16 %v285, %v282
    %v310 = vpack.c.b16 %v286, %v283
    %v311 = vpack.c.b16 %v287, %v284
    %336 = vmatpush.bf16.msra.mxu0 %v309
    %337 = vmatpush.bf16.msra.mxu0 %v306
    %338 = vmatpush.bf16.msra.mxu0 %v303
    %339 = vmatpush.bf16.msra.mxu0 %v300
    %340 = vmatpush.bf16.msra.mxu0 %v297
    %341 = vmatpush.bf16.msra.mxu0 %v294
    %342 = vmatpush.bf16.msra.mxu0 %v291
    %343 = vmatpush.bf16.msra.mxu0 %v288
    %344 = vmatmul.bf16.gmra.mxu0 %v164
    %v345 = vpop.f32.mrf.mxu0
    %v346 = vadd.f32 %v202, %v345
    %v347 = vpop.f32.mrf.mxu0
    %v348 = vadd.f32 %v202, %v347
    %349 = vmatmul.bf16.gmra.mxu0 %v165
    %v350 = vpop.f32.mrf.mxu0
    %v351 = vadd.f32 %v202, %v350
    %v352 = vpop.f32.mrf.mxu0
    %v353 = vadd.f32 %v202, %v352
    %354 = vmatmul.bf16.gmra.mxu0 %v166
    %v355 = vpop.f32.mrf.mxu0
    %v356 = vadd.f32 %v202, %v355
    %v357 = vpop.f32.mrf.mxu0
    %v358 = vadd.f32 %v202, %v357
    %359 = vmatmul.bf16.gmra.mxu0 %v167
    %v360 = vpop.f32.mrf.mxu0
    %v361 = vadd.f32 %v202, %v360
    %v362 = vpop.f32.mrf.mxu0
    %v363 = vadd.f32 %v202, %v362
    %364 = vdwg.mxu0
    %365 = vmatpush.bf16.msra.mxu0 %v310
    %366 = vmatpush.bf16.msra.mxu0 %v307
    %367 = vmatpush.bf16.msra.mxu0 %v304
    %368 = vmatpush.bf16.msra.mxu0 %v301
    %369 = vmatpush.bf16.msra.mxu0 %v298
    %370 = vmatpush.bf16.msra.mxu0 %v295
    %371 = vmatpush.bf16.msra.mxu0 %v292
    %372 = vmatpush.bf16.msra.mxu0 %v289
    %373 = vmatmul.bf16.gmra.mxu0 %v164
    %v374 = vpop.f32.mrf.mxu0
    %v375 = vadd.f32 %v203, %v374
    %v376 = vpop.f32.mrf.mxu0
    %v377 = vadd.f32 %v203, %v376
    %378 = vmatmul.bf16.gmra.mxu0 %v165
    %v379 = vpop.f32.mrf.mxu0
    %v380 = vadd.f32 %v203, %v379
    %v381 = vpop.f32.mrf.mxu0
    %v382 = vadd.f32 %v203, %v381
    %383 = vmatmul.bf16.gmra.mxu0 %v166
    %v384 = vpop.f32.mrf.mxu0
    %v385 = vadd.f32 %v203, %v384
    %v386 = vpop.f32.mrf.mxu0
    %v387 = vadd.f32 %v203, %v386
    %388 = vmatmul.bf16.gmra.mxu0 %v167
    %v389 = vpop.f32.mrf.mxu0
    %v390 = vadd.f32 %v203, %v389
    %v391 = vpop.f32.mrf.mxu0
    %v392 = vadd.f32 %v203, %v391
    %393 = vdwg.mxu0
    %394 = vmatpush.bf16.msra.mxu0 %v311
    %395 = vmatpush.bf16.msra.mxu0 %v308
    %396 = vmatpush.bf16.msra.mxu0 %v305
    %397 = vmatpush.bf16.msra.mxu0 %v302
    %398 = vmatpush.bf16.msra.mxu0 %v299
    %399 = vmatpush.bf16.msra.mxu0 %v296
    %400 = vmatpush.bf16.msra.mxu0 %v293
    %401 = vmatpush.bf16.msra.mxu0 %v290
    %402 = vmatmul.bf16.gmra.mxu0 %v164
    %v403 = vpop.f32.mrf.mxu0
    %v404 = vadd.f32 %v204, %v403
    %v405 = vpop.f32.mrf.mxu0
    %v406 = vadd.f32 %v204, %v405
    %407 = vmatmul.bf16.gmra.mxu0 %v165
    %v408 = vpop.f32.mrf.mxu0
    %v409 = vadd.f32 %v204, %v408
    %v410 = vpop.f32.mrf.mxu0
    %v411 = vadd.f32 %v204, %v410
    %412 = vmatmul.bf16.gmra.mxu0 %v166
    %v413 = vpop.f32.mrf.mxu0
    %v414 = vadd.f32 %v204, %v413
    %v415 = vpop.f32.mrf.mxu0
    %v416 = vadd.f32 %v204, %v415
    %417 = vmatmul.bf16.gmra.mxu0 %v167
    %v418 = vpop.f32.mrf.mxu0
    %v419 = vadd.f32 %v204, %v418
    %v420 = vpop.f32.mrf.mxu0
    %v421 = vadd.f32 %v204, %v420
    %422 = vdwg.mxu0
    %v423 = vld [vmem:[#allocation5] sm:$0x1]
    %v424 = vld [vmem:[#allocation5 + $0x1] sm:$0x1]
    %v425 = vld [vmem:[#allocation5 + $0x2] sm:$0x1]
    %v426 = vld [vmem:[#allocation5 + $0x3] sm:$0x1]
    %v427 = vld [vmem:[#allocation5 + $0x4] sm:$0x1]
    %v428 = vld [vmem:[#allocation5 + $0x5] sm:$0x1]
    %v429 = vld [vmem:[#allocation5 + $0x6] sm:$0x1]
    %v430 = vld [vmem:[#allocation5 + $0x7] sm:$0x1]
    %v431 = vpack.c.bf16 %v346, %v346
    %v432 = vpack.c.bf16 %v348, %v348
    %v433 = vpack.c.bf16 %v351, %v351
    %v434 = vpack.c.bf16 %v353, %v353
    %v435 = vpack.c.bf16 %v356, %v356
    %v436 = vpack.c.bf16 %v358, %v358
    %v437 = vpack.c.bf16 %v361, %v361
    %v438 = vpack.c.bf16 %v363, %v363
    %v439 = vpack.c.bf16 %v375, %v375
    %v440 = vpack.c.bf16 %v377, %v377
    %v441 = vpack.c.bf16 %v380, %v380
    %v442 = vpack.c.bf16 %v382, %v382
    %v443 = vpack.c.bf16 %v385, %v385
    %v444 = vpack.c.bf16 %v387, %v387
    %v445 = vpack.c.bf16 %v390, %v390
    %v446 = vpack.c.bf16 %v392, %v392
    %v447 = vpack.c.bf16 %v404, %v404
    %v448 = vpack.c.bf16 %v406, %v406
    %v449 = vpack.c.bf16 %v409, %v409
    %v450 = vpack.c.bf16 %v411, %v411
    %v451 = vpack.c.bf16 %v414, %v414
    %v452 = vpack.c.bf16 %v416, %v416
    %v453 = vpack.c.bf16 %v419, %v419
    %v454 = vpack.c.bf16 %v421, %v421
    %v463 = vperm.slane %v423, 0
    %v464 = vperm.slane %v424, 0
    %v465 = vperm.slane %v425, 0
    %v466 = vperm.slane %v426, 0
    %v467 = vperm.slane %v427, 0
    %v468 = vperm.slane %v428, 0
    %v469 = vperm.slane %v429, 0
    %v470 = vperm.slane %v430, 0
    %vm479 = vcmask 261120
    %v481 = vsel %vm479, %v431, 0
    %v484 = vsel %vm479, %v439, 0
    %486 = vmatpush.bf16.xpose.msra.mxu0 0
    %487 = vmatpush.bf16.xpose.msra.mxu0 0
    %488 = vmatpush.bf16.xpose.msra.mxu0 0
    %489 = vmatpush.bf16.xpose.msra.mxu0 0
    %490 = vmatpush.bf16.xpose.msra.mxu0 0
    %491 = vmatpush.bf16.xpose.msra.mxu0 0
    %492 = vmatpush.bf16.xpose.msra.mxu0 0
    %493 = vmatpush.bf16.xpose.msra.mxu0 %v484
    %494 = vmatmul.bf16.gmra.mxu0 %v481
    %v495 = vpop.f32.mrf.mxu0
    %v496 = vadd.f32 %v463, %v495
    %v497 = vpop.f32.mrf.mxu0
    %498 = vdwg.mxu0
    %v500 = vsel %vm479, %v432, 0
    %v503 = vsel %vm479, %v440, 0
    %505 = vmatpush.bf16.xpose.msra.mxu0 0
    %506 = vmatpush.bf16.xpose.msra.mxu0 0
    %507 = vmatpush.bf16.xpose.msra.mxu0 0
    %508 = vmatpush.bf16.xpose.msra.mxu0 0
    %509 = vmatpush.bf16.xpose.msra.mxu0 0
    %510 = vmatpush.bf16.xpose.msra.mxu0 0
    %511 = vmatpush.bf16.xpose.msra.mxu0 0
    %512 = vmatpush.bf16.xpose.msra.mxu0 %v503
    %513 = vmatmul.bf16.gmra.mxu0 %v500
    %v514 = vpop.f32.mrf.mxu0
    %v515 = vadd.f32 %v464, %v514
    %v516 = vpop.f32.mrf.mxu0
    %517 = vdwg.mxu0
    %v519 = vsel %vm479, %v433, 0
    %v522 = vsel %vm479, %v441, 0
    %524 = vmatpush.bf16.xpose.msra.mxu0 0
    %525 = vmatpush.bf16.xpose.msra.mxu0 0
    %526 = vmatpush.bf16.xpose.msra.mxu0 0
    %527 = vmatpush.bf16.xpose.msra.mxu0 0
    %528 = vmatpush.bf16.xpose.msra.mxu0 0
    %529 = vmatpush.bf16.xpose.msra.mxu0 0
    %530 = vmatpush.bf16.xpose.msra.mxu0 0
    %531 = vmatpush.bf16.xpose.msra.mxu0 %v522
    %532 = vmatmul.bf16.gmra.mxu0 %v519
    %v533 = vpop.f32.mrf.mxu0
    %v534 = vadd.f32 %v465, %v533
    %v535 = vpop.f32.mrf.mxu0
    %536 = vdwg.mxu0
    %v538 = vsel %vm479, %v434, 0
    %v541 = vsel %vm479, %v442, 0
    %543 = vmatpush.bf16.xpose.msra.mxu0 0
    %544 = vmatpush.bf16.xpose.msra.mxu0 0
    %545 = vmatpush.bf16.xpose.msra.mxu0 0
    %546 = vmatpush.bf16.xpose.msra.mxu0 0
    %547 = vmatpush.bf16.xpose.msra.mxu0 0
    %548 = vmatpush.bf16.xpose.msra.mxu0 0
    %549 = vmatpush.bf16.xpose.msra.mxu0 0
    %550 = vmatpush.bf16.xpose.msra.mxu0 %v541
    %551 = vmatmul.bf16.gmra.mxu0 %v538
    %v552 = vpop.f32.mrf.mxu0
    %v553 = vadd.f32 %v466, %v552
    %v554 = vpop.f32.mrf.mxu0
    %555 = vdwg.mxu0
    %v557 = vsel %vm479, %v435, 0
    %v560 = vsel %vm479, %v443, 0
    %562 = vmatpush.bf16.xpose.msra.mxu0 0
    %563 = vmatpush.bf16.xpose.msra.mxu0 0
    %564 = vmatpush.bf16.xpose.msra.mxu0 0
    %565 = vmatpush.bf16.xpose.msra.mxu0 0
    %566 = vmatpush.bf16.xpose.msra.mxu0 0
    %567 = vmatpush.bf16.xpose.msra.mxu0 0
    %568 = vmatpush.bf16.xpose.msra.mxu0 0
    %569 = vmatpush.bf16.xpose.msra.mxu0 %v560
    %570 = vmatmul.bf16.gmra.mxu0 %v557
    %v571 = vpop.f32.mrf.mxu0
    %v572 = vadd.f32 %v467, %v571
    %v573 = vpop.f32.mrf.mxu0
    %574 = vdwg.mxu0
    %v576 = vsel %vm479, %v436, 0
    %v579 = vsel %vm479, %v444, 0
    %581 = vmatpush.bf16.xpose.msra.mxu0 0
    %582 = vmatpush.bf16.xpose.msra.mxu0 0
    %583 = vmatpush.bf16.xpose.msra.mxu0 0
    %584 = vmatpush.bf16.xpose.msra.mxu0 0
    %585 = vmatpush.bf16.xpose.msra.mxu0 0
    %586 = vmatpush.bf16.xpose.msra.mxu0 0
    %587 = vmatpush.bf16.xpose.msra.mxu0 0
    %588 = vmatpush.bf16.xpose.msra.mxu0 %v579
    %589 = vmatmul.bf16.gmra.mxu0 %v576
    %v590 = vpop.f32.mrf.mxu0
    %v591 = vadd.f32 %v468, %v590
    %v592 = vpop.f32.mrf.mxu0
    %593 = vdwg.mxu0
    %v595 = vsel %vm479, %v437, 0
    %v598 = vsel %vm479, %v445, 0
    %600 = vmatpush.bf16.xpose.msra.mxu0 0
    %601 = vmatpush.bf16.xpose.msra.mxu0 0
    %602 = vmatpush.bf16.xpose.msra.mxu0 0
    %603 = vmatpush.bf16.xpose.msra.mxu0 0
    %604 = vmatpush.bf16.xpose.msra.mxu0 0
    %605 = vmatpush.bf16.xpose.msra.mxu0 0
    %606 = vmatpush.bf16.xpose.msra.mxu0 0
    %607 = vmatpush.bf16.xpose.msra.mxu0 %v598
    %608 = vmatmul.bf16.gmra.mxu0 %v595
    %v609 = vpop.f32.mrf.mxu0
    %v610 = vadd.f32 %v469, %v609
    %v611 = vpop.f32.mrf.mxu0
    %612 = vdwg.mxu0
    %v614 = vsel %vm479, %v438, 0
    %v617 = vsel %vm479, %v446, 0
    %619 = vmatpush.bf16.xpose.msra.mxu0 0
    %620 = vmatpush.bf16.xpose.msra.mxu0 0
    %621 = vmatpush.bf16.xpose.msra.mxu0 0
    %622 = vmatpush.bf16.xpose.msra.mxu0 0
    %623 = vmatpush.bf16.xpose.msra.mxu0 0
    %624 = vmatpush.bf16.xpose.msra.mxu0 0
    %625 = vmatpush.bf16.xpose.msra.mxu0 0
    %626 = vmatpush.bf16.xpose.msra.mxu0 %v617
    %627 = vmatmul.bf16.gmra.mxu0 %v614
    %v628 = vpop.f32.mrf.mxu0
    %v629 = vadd.f32 %v470, %v628
    %v630 = vpop.f32.mrf.mxu0
    %631 = vdwg.mxu0
    %vm632 = vcmask 64512
    %v633 = vsel %vm632, %v496, -inf
    %634 = vmax.xlane.f32.xlu0 %v633
    %v635 = vpop.xlane.xlu0 %634
    %v636 = vsel %vm632, %v515, -inf
    %637 = vmax.xlane.f32.xlu0 %v636
    %v638 = vpop.xlane.xlu0 %637
    %v639 = vsel %vm632, %v534, -inf
    %640 = vmax.xlane.f32.xlu0 %v639
    %v641 = vpop.xlane.xlu0 %640
    %v642 = vsel %vm632, %v553, -inf
    %643 = vmax.xlane.f32.xlu0 %v642
    %v644 = vpop.xlane.xlu0 %643
    %v645 = vsel %vm632, %v572, -inf
    %646 = vmax.xlane.f32.xlu0 %v645
    %v647 = vpop.xlane.xlu0 %646
    %v648 = vsel %vm632, %v591, -inf
    %649 = vmax.xlane.f32.xlu0 %v648
    %v650 = vpop.xlane.xlu0 %649
    %v651 = vsel %vm632, %v610, -inf
    %652 = vmax.xlane.f32.xlu0 %v651
    %v653 = vpop.xlane.xlu0 %652
    %v654 = vsel %vm632, %v629, -inf
    %655 = vmax.xlane.f32.xlu0 %v654
    %v656 = vpop.xlane.xlu0 %655
    %v657 = vsub.f32 %v496, %v635
    %v658 = vsub.f32 %v515, %v638
    %v659 = vsub.f32 %v534, %v641
    %v660 = vsub.f32 %v553, %v644
    %v661 = vsub.f32 %v572, %v647
    %v662 = vsub.f32 %v591, %v650
    %v663 = vsub.f32 %v610, %v653
    %v664 = vsub.f32 %v629, %v656
    %v665 = vmul.f32 %v657, 1.442695
    %v666 = vpow.pop %v665
    %v667 = vmul.f32 %v658, 1.442695
    %v668 = vpow.pop %v667
    %v669 = vmul.f32 %v659, 1.442695
    %v670 = vpow.pop %v669
    %v671 = vmul.f32 %v660, 1.442695
    %v672 = vpow.pop %v671
    %v673 = vmul.f32 %v661, 1.442695
    %v674 = vpow.pop %v673
    %v675 = vmul.f32 %v662, 1.442695
    %v676 = vpow.pop %v675
    %v677 = vmul.f32 %v663, 1.442695
    %v678 = vpow.pop %v677
    %v679 = vmul.f32 %v664, 1.442695
    %v680 = vpow.pop %v679
    %v681 = vsel %vm632, %v666, 0.0
    %682 = vadd.xlane.f32.xlu0 %v681
    %v683 = vpop.xlane.xlu0 %682
    %v684 = vsel %vm632, %v668, 0.0
    %685 = vadd.xlane.f32.xlu0 %v684
    %v686 = vpop.xlane.xlu0 %685
    %v687 = vsel %vm632, %v670, 0.0
    %688 = vadd.xlane.f32.xlu0 %v687
    %v689 = vpop.xlane.xlu0 %688
    %v690 = vsel %vm632, %v672, 0.0
    %691 = vadd.xlane.f32.xlu0 %v690
    %v692 = vpop.xlane.xlu0 %691
    %v693 = vsel %vm632, %v674, 0.0
    %694 = vadd.xlane.f32.xlu0 %v693
    %v695 = vpop.xlane.xlu0 %694
    %v696 = vsel %vm632, %v676, 0.0
    %697 = vadd.xlane.f32.xlu0 %v696
    %v698 = vpop.xlane.xlu0 %697
    %v699 = vsel %vm632, %v678, 0.0
    %700 = vadd.xlane.f32.xlu0 %v699
    %v701 = vpop.xlane.xlu0 %700
    %v702 = vsel %vm632, %v680, 0.0
    %703 = vadd.xlane.f32.xlu0 %v702
    %v704 = vpop.xlane.xlu0 %703
    %v705 = vrcp.pop %v683
    %v706 = vrcp.pop %v686
    %v707 = vrcp.pop %v689
    %v708 = vrcp.pop %v692
    %v709 = vrcp.pop %v695
    %v710 = vrcp.pop %v698
    %v711 = vrcp.pop %v701
    %v712 = vrcp.pop %v704
    %v713 = vmul.f32 %v666, %v705
    %v714 = vmul.f32 %v668, %v706
    %v715 = vmul.f32 %v670, %v707
    %v716 = vmul.f32 %v672, %v708
    %v717 = vmul.f32 %v674, %v709
    %v718 = vmul.f32 %v676, %v710
    %v719 = vmul.f32 %v678, %v711
    %v720 = vmul.f32 %v680, %v712
    %v721 = vpack.c.bf16 %v713, %v713
    %v722 = vpack.c.bf16 %v714, %v714
    %v723 = vpack.c.bf16 %v715, %v715
    %v724 = vpack.c.bf16 %v716, %v716
    %v725 = vpack.c.bf16 %v717, %v717
    %v726 = vpack.c.bf16 %v718, %v718
    %v727 = vpack.c.bf16 %v719, %v719
    %v728 = vpack.c.bf16 %v720, %v720
    %v730 = vsel %vm632, %v721, 0
    %vm732 = vcmask 1043456
    %v734 = vsel %vm732, %v447, 0
    %736 = vmatpush.bf16.msra.mxu0 0
    %737 = vmatpush.bf16.msra.mxu0 0
    %738 = vmatpush.bf16.msra.mxu0 0
    %739 = vmatpush.bf16.msra.mxu0 0
    %740 = vmatpush.bf16.msra.mxu0 0
    %741 = vmatpush.bf16.msra.mxu0 0
    %742 = vmatpush.bf16.msra.mxu0 0
    %743 = vmatpush.bf16.msra.mxu0 %v734
    %744 = vmatmul.bf16.gmra.mxu0 %v730
    %v745 = vpop.f32.mrf.mxu0
    %v746 = vadd.f32 0.0, %v745
    %v747 = vpop.f32.mrf.mxu0
    %748 = vdwg.mxu0
    %v750 = vsel %vm632, %v722, 0
    %v753 = vsel %vm732, %v448, 0
    %755 = vmatpush.bf16.msra.mxu0 0
    %756 = vmatpush.bf16.msra.mxu0 0
    %757 = vmatpush.bf16.msra.mxu0 0
    %758 = vmatpush.bf16.msra.mxu0 0
    %759 = vmatpush.bf16.msra.mxu0 0
    %760 = vmatpush.bf16.msra.mxu0 0
    %761 = vmatpush.bf16.msra.mxu0 0
    %762 = vmatpush.bf16.msra.mxu0 %v753
    %763 = vmatmul.bf16.gmra.mxu0 %v750
    %v764 = vpop.f32.mrf.mxu0
    %v765 = vadd.f32 0.0, %v764
    %v766 = vpop.f32.mrf.mxu0
    %767 = vdwg.mxu0
    %v769 = vsel %vm632, %v723, 0
    %v772 = vsel %vm732, %v449, 0
    %774 = vmatpush.bf16.msra.mxu0 0
    %775 = vmatpush.bf16.msra.mxu0 0
    %776 = vmatpush.bf16.msra.mxu0 0
    %777 = vmatpush.bf16.msra.mxu0 0
    %778 = vmatpush.bf16.msra.mxu0 0
    %779 = vmatpush.bf16.msra.mxu0 0
    %780 = vmatpush.bf16.msra.mxu0 0
    %781 = vmatpush.bf16.msra.mxu0 %v772
    %782 = vmatmul.bf16.gmra.mxu0 %v769
    %v783 = vpop.f32.mrf.mxu0
    %v784 = vadd.f32 0.0, %v783
    %v785 = vpop.f32.mrf.mxu0
    %786 = vdwg.mxu0
    %v788 = vsel %vm632, %v724, 0
    %v791 = vsel %vm732, %v450, 0
    %793 = vmatpush.bf16.msra.mxu0 0
    %794 = vmatpush.bf16.msra.mxu0 0
    %795 = vmatpush.bf16.msra.mxu0 0
    %796 = vmatpush.bf16.msra.mxu0 0
    %797 = vmatpush.bf16.msra.mxu0 0
    %798 = vmatpush.bf16.msra.mxu0 0
    %799 = vmatpush.bf16.msra.mxu0 0
    %800 = vmatpush.bf16.msra.mxu0 %v791
    %801 = vmatmul.bf16.gmra.mxu0 %v788
    %v802 = vpop.f32.mrf.mxu0
    %v803 = vadd.f32 0.0, %v802
    %v804 = vpop.f32.mrf.mxu0
    %805 = vdwg.mxu0
    %v807 = vsel %vm632, %v725, 0
    %v810 = vsel %vm732, %v451, 0
    %812 = vmatpush.bf16.msra.mxu0 0
    %813 = vmatpush.bf16.msra.mxu0 0
    %814 = vmatpush.bf16.msra.mxu0 0
    %815 = vmatpush.bf16.msra.mxu0 0
    %816 = vmatpush.bf16.msra.mxu0 0
    %817 = vmatpush.bf16.msra.mxu0 0
    %818 = vmatpush.bf16.msra.mxu0 0
    %819 = vmatpush.bf16.msra.mxu0 %v810
    %820 = vmatmul.bf16.gmra.mxu0 %v807
    %v821 = vpop.f32.mrf.mxu0
    %v822 = vadd.f32 0.0, %v821
    %v823 = vpop.f32.mrf.mxu0
    %824 = vdwg.mxu0
    %v826 = vsel %vm632, %v726, 0
    %v829 = vsel %vm732, %v452, 0
    %831 = vmatpush.bf16.msra.mxu0 0
    %832 = vmatpush.bf16.msra.mxu0 0
    %833 = vmatpush.bf16.msra.mxu0 0
    %834 = vmatpush.bf16.msra.mxu0 0
    %835 = vmatpush.bf16.msra.mxu0 0
    %836 = vmatpush.bf16.msra.mxu0 0
    %837 = vmatpush.bf16.msra.mxu0 0
    %838 = vmatpush.bf16.msra.mxu0 %v829
    %839 = vmatmul.bf16.gmra.mxu0 %v826
    %v840 = vpop.f32.mrf.mxu0
    %v841 = vadd.f32 0.0, %v840
    %v842 = vpop.f32.mrf.mxu0
    %843 = vdwg.mxu0
    %v845 = vsel %vm632, %v727, 0
    %v848 = vsel %vm732, %v453, 0
    %850 = vmatpush.bf16.msra.mxu0 0
    %851 = vmatpush.bf16.msra.mxu0 0
    %852 = vmatpush.bf16.msra.mxu0 0
    %853 = vmatpush.bf16.msra.mxu0 0
    %854 = vmatpush.bf16.msra.mxu0 0
    %855 = vmatpush.bf16.msra.mxu0 0
    %856 = vmatpush.bf16.msra.mxu0 0
    %857 = vmatpush.bf16.msra.mxu0 %v848
    %858 = vmatmul.bf16.gmra.mxu0 %v845
    %v859 = vpop.f32.mrf.mxu0
    %v860 = vadd.f32 0.0, %v859
    %v861 = vpop.f32.mrf.mxu0
    %862 = vdwg.mxu0
    %v864 = vsel %vm632, %v728, 0
    %v867 = vsel %vm732, %v454, 0
    %869 = vmatpush.bf16.msra.mxu0 0
    %870 = vmatpush.bf16.msra.mxu0 0
    %871 = vmatpush.bf16.msra.mxu0 0
    %872 = vmatpush.bf16.msra.mxu0 0
    %873 = vmatpush.bf16.msra.mxu0 0
    %874 = vmatpush.bf16.msra.mxu0 0
    %875 = vmatpush.bf16.msra.mxu0 0
    %876 = vmatpush.bf16.msra.mxu0 %v867
    %877 = vmatmul.bf16.gmra.mxu0 %v864
    %v878 = vpop.f32.mrf.mxu0
    %v879 = vadd.f32 0.0, %v878
    %v880 = vpop.f32.mrf.mxu0
    %881 = vdwg.mxu0
    %v883 = vunpack.c.l.b16 %v431
    %v884 = vpack.c.b16 %v883, %v883
    %885 = vrot.lane.b32.xlu0 %v884, 96
    %v886 = vpop.permute.xlu0 %885
    %v888 = vunpack.c.l.b16 %v439
    %v889 = vpack.c.b16 %v888, %v888
    %890 = vrot.lane.b32.xlu0 %v889, 96
    %v891 = vpop.permute.xlu0 %890
    %v893 = vsel %vm479, %v886, 0
    %v896 = vsel %vm479, %v891, 0
    %898 = vmatpush.bf16.xpose.msra.mxu0 0
    %899 = vmatpush.bf16.xpose.msra.mxu0 0
    %900 = vmatpush.bf16.xpose.msra.mxu0 0
    %901 = vmatpush.bf16.xpose.msra.mxu0 0
    %902 = vmatpush.bf16.xpose.msra.mxu0 0
    %903 = vmatpush.bf16.xpose.msra.mxu0 0
    %904 = vmatpush.bf16.xpose.msra.mxu0 0
    %905 = vmatpush.bf16.xpose.msra.mxu0 %v896
    %906 = vmatmul.bf16.gmra.mxu0 %v893
    %v907 = vpop.f32.mrf.mxu0
    %v908 = vadd.f32 %v463, %v907
    %v909 = vpop.f32.mrf.mxu0
    %910 = vdwg.mxu0
    %v912 = vunpack.c.l.b16 %v432
    %v913 = vpack.c.b16 %v912, %v912
    %914 = vrot.lane.b32.xlu0 %v913, 96
    %v915 = vpop.permute.xlu0 %914
    %v917 = vunpack.c.l.b16 %v440
    %v918 = vpack.c.b16 %v917, %v917
    %919 = vrot.lane.b32.xlu0 %v918, 96
    %v920 = vpop.permute.xlu0 %919
    %v922 = vsel %vm479, %v915, 0
    %v925 = vsel %vm479, %v920, 0
    %927 = vmatpush.bf16.xpose.msra.mxu0 0
    %928 = vmatpush.bf16.xpose.msra.mxu0 0
    %929 = vmatpush.bf16.xpose.msra.mxu0 0
    %930 = vmatpush.bf16.xpose.msra.mxu0 0
    %931 = vmatpush.bf16.xpose.msra.mxu0 0
    %932 = vmatpush.bf16.xpose.msra.mxu0 0
    %933 = vmatpush.bf16.xpose.msra.mxu0 0
    %934 = vmatpush.bf16.xpose.msra.mxu0 %v925
    %935 = vmatmul.bf16.gmra.mxu0 %v922
    %v936 = vpop.f32.mrf.mxu0
    %v937 = vadd.f32 %v464, %v936
    %v938 = vpop.f32.mrf.mxu0
    %939 = vdwg.mxu0
    %v941 = vunpack.c.l.b16 %v433
    %v942 = vpack.c.b16 %v941, %v941
    %943 = vrot.lane.b32.xlu0 %v942, 96
    %v944 = vpop.permute.xlu0 %943
    %v946 = vunpack.c.l.b16 %v441
    %v947 = vpack.c.b16 %v946, %v946
    %948 = vrot.lane.b32.xlu0 %v947, 96
    %v949 = vpop.permute.xlu0 %948
    %v951 = vsel %vm479, %v944, 0
    %v954 = vsel %vm479, %v949, 0
    %956 = vmatpush.bf16.xpose.msra.mxu0 0
    %957 = vmatpush.bf16.xpose.msra.mxu0 0
    %958 = vmatpush.bf16.xpose.msra.mxu0 0
    %959 = vmatpush.bf16.xpose.msra.mxu0 0
    %960 = vmatpush.bf16.xpose.msra.mxu0 0
    %961 = vmatpush.bf16.xpose.msra.mxu0 0
    %962 = vmatpush.bf16.xpose.msra.mxu0 0
    %963 = vmatpush.bf16.xpose.msra.mxu0 %v954
    %964 = vmatmul.bf16.gmra.mxu0 %v951
    %v965 = vpop.f32.mrf.mxu0
    %v966 = vadd.f32 %v465, %v965
    %v967 = vpop.f32.mrf.mxu0
    %968 = vdwg.mxu0
    %v970 = vunpack.c.l.b16 %v434
    %v971 = vpack.c.b16 %v970, %v970
    %972 = vrot.lane.b32.xlu0 %v971, 96
    %v973 = vpop.permute.xlu0 %972
    %v975 = vunpack.c.l.b16 %v442
    %v976 = vpack.c.b16 %v975, %v975
    %977 = vrot.lane.b32.xlu0 %v976, 96
    %v978 = vpop.permute.xlu0 %977
    %v980 = vsel %vm479, %v973, 0
    %v983 = vsel %vm479, %v978, 0
    %985 = vmatpush.bf16.xpose.msra.mxu0 0
    %986 = vmatpush.bf16.xpose.msra.mxu0 0
    %987 = vmatpush.bf16.xpose.msra.mxu0 0
    %988 = vmatpush.bf16.xpose.msra.mxu0 0
    %989 = vmatpush.bf16.xpose.msra.mxu0 0
    %990 = vmatpush.bf16.xpose.msra.mxu0 0
    %991 = vmatpush.bf16.xpose.msra.mxu0 0
    %992 = vmatpush.bf16.xpose.msra.mxu0 %v983
    %993 = vmatmul.bf16.gmra.mxu0 %v980
    %v994 = vpop.f32.mrf.mxu0
    %v995 = vadd.f32 %v466, %v994
    %v996 = vpop.f32.mrf.mxu0
    %997 = vdwg.mxu0
    %v999 = vunpack.c.l.b16 %v435
    %v1000 = vpack.c.b16 %v999, %v999
    %1001 = vrot.lane.b32.xlu0 %v1000, 96
    %v1002 = vpop.permute.xlu0 %1001
    %v1004 = vunpack.c.l.b16 %v443
    %v1005 = vpack.c.b16 %v1004, %v1004
    %1006 = vrot.lane.b32.xlu0 %v1005, 96
    %v1007 = vpop.permute.xlu0 %1006
    %v1009 = vsel %vm479, %v1002, 0
    %v1012 = vsel %vm479, %v1007, 0
    %1014 = vmatpush.bf16.xpose.msra.mxu0 0
    %1015 = vmatpush.bf16.xpose.msra.mxu0 0
    %1016 = vmatpush.bf16.xpose.msra.mxu0 0
    %1017 = vmatpush.bf16.xpose.msra.mxu0 0
    %1018 = vmatpush.bf16.xpose.msra.mxu0 0
    %1019 = vmatpush.bf16.xpose.msra.mxu0 0
    %1020 = vmatpush.bf16.xpose.msra.mxu0 0
    %1021 = vmatpush.bf16.xpose.msra.mxu0 %v1012
    %1022 = vmatmul.bf16.gmra.mxu0 %v1009
    %v1023 = vpop.f32.mrf.mxu0
    %v1024 = vadd.f32 %v467, %v1023
    %v1025 = vpop.f32.mrf.mxu0
    %1026 = vdwg.mxu0
    %v1028 = vunpack.c.l.b16 %v436
    %v1029 = vpack.c.b16 %v1028, %v1028
    %1030 = vrot.lane.b32.xlu0 %v1029, 96
    %v1031 = vpop.permute.xlu0 %1030
    %v1033 = vunpack.c.l.b16 %v444
    %v1034 = vpack.c.b16 %v1033, %v1033
    %1035 = vrot.lane.b32.xlu0 %v1034, 96
    %v1036 = vpop.permute.xlu0 %1035
    %v1038 = vsel %vm479, %v1031, 0
    %v1041 = vsel %vm479, %v1036, 0
    %1043 = vmatpush.bf16.xpose.msra.mxu0 0
    %1044 = vmatpush.bf16.xpose.msra.mxu0 0
    %1045 = vmatpush.bf16.xpose.msra.mxu0 0
    %1046 = vmatpush.bf16.xpose.msra.mxu0 0
    %1047 = vmatpush.bf16.xpose.msra.mxu0 0
    %1048 = vmatpush.bf16.xpose.msra.mxu0 0
    %1049 = vmatpush.bf16.xpose.msra.mxu0 0
    %1050 = vmatpush.bf16.xpose.msra.mxu0 %v1041
    %1051 = vmatmul.bf16.gmra.mxu0 %v1038
    %v1052 = vpop.f32.mrf.mxu0
    %v1053 = vadd.f32 %v468, %v1052
    %v1054 = vpop.f32.mrf.mxu0
    %1055 = vdwg.mxu0
    %v1057 = vunpack.c.l.b16 %v437
    %v1058 = vpack.c.b16 %v1057, %v1057
    %1059 = vrot.lane.b32.xlu0 %v1058, 96
    %v1060 = vpop.permute.xlu0 %1059
    %v1062 = vunpack.c.l.b16 %v445
    %v1063 = vpack.c.b16 %v1062, %v1062
    %1064 = vrot.lane.b32.xlu0 %v1063, 96
    %v1065 = vpop.permute.xlu0 %1064
    %v1067 = vsel %vm479, %v1060, 0
    %v1070 = vsel %vm479, %v1065, 0
    %1072 = vmatpush.bf16.xpose.msra.mxu0 0
    %1073 = vmatpush.bf16.xpose.msra.mxu0 0
    %1074 = vmatpush.bf16.xpose.msra.mxu0 0
    %1075 = vmatpush.bf16.xpose.msra.mxu0 0
    %1076 = vmatpush.bf16.xpose.msra.mxu0 0
    %1077 = vmatpush.bf16.xpose.msra.mxu0 0
    %1078 = vmatpush.bf16.xpose.msra.mxu0 0
    %1079 = vmatpush.bf16.xpose.msra.mxu0 %v1070
    %1080 = vmatmul.bf16.gmra.mxu0 %v1067
    %v1081 = vpop.f32.mrf.mxu0
    %v1082 = vadd.f32 %v469, %v1081
    %v1083 = vpop.f32.mrf.mxu0
    %1084 = vdwg.mxu0
    %v1086 = vunpack.c.l.b16 %v438
    %v1087 = vpack.c.b16 %v1086, %v1086
    %1088 = vrot.lane.b32.xlu0 %v1087, 96
    %v1089 = vpop.permute.xlu0 %1088
    %v1091 = vunpack.c.l.b16 %v446
    %v1092 = vpack.c.b16 %v1091, %v1091
    %1093 = vrot.lane.b32.xlu0 %v1092, 96
    %v1094 = vpop.permute.xlu0 %1093
    %v1096 = vsel %vm479, %v1089, 0
    %v1099 = vsel %vm479, %v1094, 0
    %1101 = vmatpush.bf16.xpose.msra.mxu0 0
    %1102 = vmatpush.bf16.xpose.msra.mxu0 0
    %1103 = vmatpush.bf16.xpose.msra.mxu0 0
    %1104 = vmatpush.bf16.xpose.msra.mxu0 0
    %1105 = vmatpush.bf16.xpose.msra.mxu0 0
    %1106 = vmatpush.bf16.xpose.msra.mxu0 0
    %1107 = vmatpush.bf16.xpose.msra.mxu0 0
    %1108 = vmatpush.bf16.xpose.msra.mxu0 %v1099
    %1109 = vmatmul.bf16.gmra.mxu0 %v1096
    %v1110 = vpop.f32.mrf.mxu0
    %v1111 = vadd.f32 %v470, %v1110
    %v1112 = vpop.f32.mrf.mxu0
    %1113 = vdwg.mxu0
    %v1114 = vsel %vm632, %v908, -inf
    %1115 = vmax.xlane.f32.xlu0 %v1114
    %v1116 = vpop.xlane.xlu0 %1115
    %v1117 = vsel %vm632, %v937, -inf
    %1118 = vmax.xlane.f32.xlu0 %v1117
    %v1119 = vpop.xlane.xlu0 %1118
    %v1120 = vsel %vm632, %v966, -inf
    %1121 = vmax.xlane.f32.xlu0 %v1120
    %v1122 = vpop.xlane.xlu0 %1121
    %v1123 = vsel %vm632, %v995, -inf
    %1124 = vmax.xlane.f32.xlu0 %v1123
    %v1125 = vpop.xlane.xlu0 %1124
    %v1126 = vsel %vm632, %v1024, -inf
    %1127 = vmax.xlane.f32.xlu0 %v1126
    %v1128 = vpop.xlane.xlu0 %1127
    %v1129 = vsel %vm632, %v1053, -inf
    %1130 = vmax.xlane.f32.xlu0 %v1129
    %v1131 = vpop.xlane.xlu0 %1130
    %v1132 = vsel %vm632, %v1082, -inf
    %1133 = vmax.xlane.f32.xlu0 %v1132
    %v1134 = vpop.xlane.xlu0 %1133
    %v1135 = vsel %vm632, %v1111, -inf
    %1136 = vmax.xlane.f32.xlu0 %v1135
    %v1137 = vpop.xlane.xlu0 %1136
    %v1138 = vsub.f32 %v908, %v1116
    %v1139 = vsub.f32 %v937, %v1119
    %v1140 = vsub.f32 %v966, %v1122
    %v1141 = vsub.f32 %v995, %v1125
    %v1142 = vsub.f32 %v1024, %v1128
    %v1143 = vsub.f32 %v1053, %v1131
    %v1144 = vsub.f32 %v1082, %v1134
    %v1145 = vsub.f32 %v1111, %v1137
    %v1146 = vmul.f32 %v1138, 1.442695
    %v1147 = vpow.pop %v1146
    %v1148 = vmul.f32 %v1139, 1.442695
    %v1149 = vpow.pop %v1148
    %v1150 = vmul.f32 %v1140, 1.442695
    %v1151 = vpow.pop %v1150
    %v1152 = vmul.f32 %v1141, 1.442695
    %v1153 = vpow.pop %v1152
    %v1154 = vmul.f32 %v1142, 1.442695
    %v1155 = vpow.pop %v1154
    %v1156 = vmul.f32 %v1143, 1.442695
    %v1157 = vpow.pop %v1156
    %v1158 = vmul.f32 %v1144, 1.442695
    %v1159 = vpow.pop %v1158
    %v1160 = vmul.f32 %v1145, 1.442695
    %v1161 = vpow.pop %v1160
    %v1162 = vsel %vm632, %v1147, 0.0
    %1163 = vadd.xlane.f32.xlu0 %v1162
    %v1164 = vpop.xlane.xlu0 %1163
    %v1165 = vsel %vm632, %v1149, 0.0
    %1166 = vadd.xlane.f32.xlu0 %v1165
    %v1167 = vpop.xlane.xlu0 %1166
    %v1168 = vsel %vm632, %v1151, 0.0
    %1169 = vadd.xlane.f32.xlu0 %v1168
    %v1170 = vpop.xlane.xlu0 %1169
    %v1171 = vsel %vm632, %v1153, 0.0
    %1172 = vadd.xlane.f32.xlu0 %v1171
    %v1173 = vpop.xlane.xlu0 %1172
    %v1174 = vsel %vm632, %v1155, 0.0
    %1175 = vadd.xlane.f32.xlu0 %v1174
    %v1176 = vpop.xlane.xlu0 %1175
    %v1177 = vsel %vm632, %v1157, 0.0
    %1178 = vadd.xlane.f32.xlu0 %v1177
    %v1179 = vpop.xlane.xlu0 %1178
    %v1180 = vsel %vm632, %v1159, 0.0
    %1181 = vadd.xlane.f32.xlu0 %v1180
    %v1182 = vpop.xlane.xlu0 %1181
    %v1183 = vsel %vm632, %v1161, 0.0
    %1184 = vadd.xlane.f32.xlu0 %v1183
    %v1185 = vpop.xlane.xlu0 %1184
    %v1186 = vrcp.pop %v1164
    %v1187 = vrcp.pop %v1167
    %v1188 = vrcp.pop %v1170
    %v1189 = vrcp.pop %v1173
    %v1190 = vrcp.pop %v1176
    %v1191 = vrcp.pop %v1179
    %v1192 = vrcp.pop %v1182
    %v1193 = vrcp.pop %v1185
    %v1194 = vmul.f32 %v1147, %v1186
    %v1195 = vmul.f32 %v1149, %v1187
    %v1196 = vmul.f32 %v1151, %v1188
    %v1197 = vmul.f32 %v1153, %v1189
    %v1198 = vmul.f32 %v1155, %v1190
    %v1199 = vmul.f32 %v1157, %v1191
    %v1200 = vmul.f32 %v1159, %v1192
    %v1201 = vmul.f32 %v1161, %v1193
    %v1202 = vpack.c.bf16 %v1194, %v1194
    %v1203 = vpack.c.bf16 %v1195, %v1195
    %v1204 = vpack.c.bf16 %v1196, %v1196
    %v1205 = vpack.c.bf16 %v1197, %v1197
    %v1206 = vpack.c.bf16 %v1198, %v1198
    %v1207 = vpack.c.bf16 %v1199, %v1199
    %v1208 = vpack.c.bf16 %v1200, %v1200
    %v1209 = vpack.c.bf16 %v1201, %v1201
    %v1211 = vunpack.c.l.b16 %v447
    %v1212 = vpack.c.b16 %v1211, %v1211
    %1213 = vrot.lane.b32.xlu0 %v1212, 96
    %v1214 = vpop.permute.xlu0 %1213
    %v1216 = vsel %vm632, %v1202, 0
    %v1219 = vsel %vm732, %v1214, 0
    %1221 = vmatpush.bf16.msra.mxu0 0
    %1222 = vmatpush.bf16.msra.mxu0 0
    %1223 = vmatpush.bf16.msra.mxu0 0
    %1224 = vmatpush.bf16.msra.mxu0 0
    %1225 = vmatpush.bf16.msra.mxu0 0
    %1226 = vmatpush.bf16.msra.mxu0 0
    %1227 = vmatpush.bf16.msra.mxu0 0
    %1228 = vmatpush.bf16.msra.mxu0 %v1219
    %1229 = vmatmul.bf16.gmra.mxu0 %v1216
    %v1230 = vpop.f32.mrf.mxu0
    %v1231 = vadd.f32 0.0, %v1230
    %v1232 = vpop.f32.mrf.mxu0
    %1233 = vdwg.mxu0
    %v1235 = vunpack.c.l.b16 %v448
    %v1236 = vpack.c.b16 %v1235, %v1235
    %1237 = vrot.lane.b32.xlu0 %v1236, 96
    %v1238 = vpop.permute.xlu0 %1237
    %v1240 = vsel %vm632, %v1203, 0
    %v1243 = vsel %vm732, %v1238, 0
    %1245 = vmatpush.bf16.msra.mxu0 0
    %1246 = vmatpush.bf16.msra.mxu0 0
    %1247 = vmatpush.bf16.msra.mxu0 0
    %1248 = vmatpush.bf16.msra.mxu0 0
    %1249 = vmatpush.bf16.msra.mxu0 0
    %1250 = vmatpush.bf16.msra.mxu0 0
    %1251 = vmatpush.bf16.msra.mxu0 0
    %1252 = vmatpush.bf16.msra.mxu0 %v1243
    %1253 = vmatmul.bf16.gmra.mxu0 %v1240
    %v1254 = vpop.f32.mrf.mxu0
    %v1255 = vadd.f32 0.0, %v1254
    %v1256 = vpop.f32.mrf.mxu0
    %1257 = vdwg.mxu0
    %v1259 = vunpack.c.l.b16 %v449
    %v1260 = vpack.c.b16 %v1259, %v1259
    %1261 = vrot.lane.b32.xlu0 %v1260, 96
    %v1262 = vpop.permute.xlu0 %1261
    %v1264 = vsel %vm632, %v1204, 0
    %v1267 = vsel %vm732, %v1262, 0
    %1269 = vmatpush.bf16.msra.mxu0 0
    %1270 = vmatpush.bf16.msra.mxu0 0
    %1271 = vmatpush.bf16.msra.mxu0 0
    %1272 = vmatpush.bf16.msra.mxu0 0
    %1273 = vmatpush.bf16.msra.mxu0 0
    %1274 = vmatpush.bf16.msra.mxu0 0
    %1275 = vmatpush.bf16.msra.mxu0 0
    %1276 = vmatpush.bf16.msra.mxu0 %v1267
    %1277 = vmatmul.bf16.gmra.mxu0 %v1264
    %v1278 = vpop.f32.mrf.mxu0
    %v1279 = vadd.f32 0.0, %v1278
    %v1280 = vpop.f32.mrf.mxu0
    %1281 = vdwg.mxu0
    %v1283 = vunpack.c.l.b16 %v450
    %v1284 = vpack.c.b16 %v1283, %v1283
    %1285 = vrot.lane.b32.xlu0 %v1284, 96
    %v1286 = vpop.permute.xlu0 %1285
    %v1288 = vsel %vm632, %v1205, 0
    %v1291 = vsel %vm732, %v1286, 0
    %1293 = vmatpush.bf16.msra.mxu0 0
    %1294 = vmatpush.bf16.msra.mxu0 0
    %1295 = vmatpush.bf16.msra.mxu0 0
    %1296 = vmatpush.bf16.msra.mxu0 0
    %1297 = vmatpush.bf16.msra.mxu0 0
    %1298 = vmatpush.bf16.msra.mxu0 0
    %1299 = vmatpush.bf16.msra.mxu0 0
    %1300 = vmatpush.bf16.msra.mxu0 %v1291
    %1301 = vmatmul.bf16.gmra.mxu0 %v1288
    %v1302 = vpop.f32.mrf.mxu0
    %v1303 = vadd.f32 0.0, %v1302
    %v1304 = vpop.f32.mrf.mxu0
    %1305 = vdwg.mxu0
    %v1307 = vunpack.c.l.b16 %v451
    %v1308 = vpack.c.b16 %v1307, %v1307
    %1309 = vrot.lane.b32.xlu0 %v1308, 96
    %v1310 = vpop.permute.xlu0 %1309
    %v1312 = vsel %vm632, %v1206, 0
    %v1315 = vsel %vm732, %v1310, 0
    %1317 = vmatpush.bf16.msra.mxu0 0
    %1318 = vmatpush.bf16.msra.mxu0 0
    %1319 = vmatpush.bf16.msra.mxu0 0
    %1320 = vmatpush.bf16.msra.mxu0 0
    %1321 = vmatpush.bf16.msra.mxu0 0
    %1322 = vmatpush.bf16.msra.mxu0 0
    %1323 = vmatpush.bf16.msra.mxu0 0
    %1324 = vmatpush.bf16.msra.mxu0 %v1315
    %1325 = vmatmul.bf16.gmra.mxu0 %v1312
    %v1326 = vpop.f32.mrf.mxu0
    %v1327 = vadd.f32 0.0, %v1326
    %v1328 = vpop.f32.mrf.mxu0
    %1329 = vdwg.mxu0
    %v1331 = vunpack.c.l.b16 %v452
    %v1332 = vpack.c.b16 %v1331, %v1331
    %1333 = vrot.lane.b32.xlu0 %v1332, 96
    %v1334 = vpop.permute.xlu0 %1333
    %v1336 = vsel %vm632, %v1207, 0
    %v1339 = vsel %vm732, %v1334, 0
    %1341 = vmatpush.bf16.msra.mxu0 0
    %1342 = vmatpush.bf16.msra.mxu0 0
    %1343 = vmatpush.bf16.msra.mxu0 0
    %1344 = vmatpush.bf16.msra.mxu0 0
    %1345 = vmatpush.bf16.msra.mxu0 0
    %1346 = vmatpush.bf16.msra.mxu0 0
    %1347 = vmatpush.bf16.msra.mxu0 0
    %1348 = vmatpush.bf16.msra.mxu0 %v1339
    %1349 = vmatmul.bf16.gmra.mxu0 %v1336
    %v1350 = vpop.f32.mrf.mxu0
    %v1351 = vadd.f32 0.0, %v1350
    %v1352 = vpop.f32.mrf.mxu0
    %1353 = vdwg.mxu0
    %v1355 = vunpack.c.l.b16 %v453
    %v1356 = vpack.c.b16 %v1355, %v1355
    %1357 = vrot.lane.b32.xlu0 %v1356, 96
    %v1358 = vpop.permute.xlu0 %1357
    %v1360 = vsel %vm632, %v1208, 0
    %v1363 = vsel %vm732, %v1358, 0
    %1365 = vmatpush.bf16.msra.mxu0 0
    %1366 = vmatpush.bf16.msra.mxu0 0
    %1367 = vmatpush.bf16.msra.mxu0 0
    %1368 = vmatpush.bf16.msra.mxu0 0
    %1369 = vmatpush.bf16.msra.mxu0 0
    %1370 = vmatpush.bf16.msra.mxu0 0
    %1371 = vmatpush.bf16.msra.mxu0 0
    %1372 = vmatpush.bf16.msra.mxu0 %v1363
    %1373 = vmatmul.bf16.gmra.mxu0 %v1360
    %v1374 = vpop.f32.mrf.mxu0
    %v1375 = vadd.f32 0.0, %v1374
    %v1376 = vpop.f32.mrf.mxu0
    %1377 = vdwg.mxu0
    %v1379 = vunpack.c.l.b16 %v454
    %v1380 = vpack.c.b16 %v1379, %v1379
    %1381 = vrot.lane.b32.xlu0 %v1380, 96
    %v1382 = vpop.permute.xlu0 %1381
    %v1384 = vsel %vm632, %v1209, 0
    %v1387 = vsel %vm732, %v1382, 0
    %1389 = vmatpush.bf16.msra.mxu0 0
    %1390 = vmatpush.bf16.msra.mxu0 0
    %1391 = vmatpush.bf16.msra.mxu0 0
    %1392 = vmatpush.bf16.msra.mxu0 0
    %1393 = vmatpush.bf16.msra.mxu0 0
    %1394 = vmatpush.bf16.msra.mxu0 0
    %1395 = vmatpush.bf16.msra.mxu0 0
    %1396 = vmatpush.bf16.msra.mxu0 %v1387
    %1397 = vmatmul.bf16.gmra.mxu0 %v1384
    %v1398 = vpop.f32.mrf.mxu0
    %v1399 = vadd.f32 0.0, %v1398
    %v1400 = vpop.f32.mrf.mxu0
    %1401 = vdwg.mxu0
    %1402 = vrot.lane.b32.xlu0 %v884, 64
    %v1403 = vpop.permute.xlu0 %1402
    %1404 = vrot.lane.b32.xlu0 %v889, 64
    %v1405 = vpop.permute.xlu0 %1404
    %v1407 = vsel %vm479, %v1403, 0
    %v1410 = vsel %vm479, %v1405, 0
    %1412 = vmatpush.bf16.xpose.msra.mxu0 0
    %1413 = vmatpush.bf16.xpose.msra.mxu0 0
    %1414 = vmatpush.bf16.xpose.msra.mxu0 0
    %1415 = vmatpush.bf16.xpose.msra.mxu0 0
    %1416 = vmatpush.bf16.xpose.msra.mxu0 0
    %1417 = vmatpush.bf16.xpose.msra.mxu0 0
    %1418 = vmatpush.bf16.xpose.msra.mxu0 0
    %1419 = vmatpush.bf16.xpose.msra.mxu0 %v1410
    %1420 = vmatmul.bf16.gmra.mxu0 %v1407
    %v1421 = vpop.f32.mrf.mxu0
    %v1422 = vadd.f32 %v463, %v1421
    %v1423 = vpop.f32.mrf.mxu0
    %1424 = vdwg.mxu0
    %1425 = vrot.lane.b32.xlu0 %v913, 64
    %v1426 = vpop.permute.xlu0 %1425
    %1427 = vrot.lane.b32.xlu0 %v918, 64
    %v1428 = vpop.permute.xlu0 %1427
    %v1430 = vsel %vm479, %v1426, 0
    %v1433 = vsel %vm479, %v1428, 0
    %1435 = vmatpush.bf16.xpose.msra.mxu0 0
    %1436 = vmatpush.bf16.xpose.msra.mxu0 0
    %1437 = vmatpush.bf16.xpose.msra.mxu0 0
    %1438 = vmatpush.bf16.xpose.msra.mxu0 0
    %1439 = vmatpush.bf16.xpose.msra.mxu0 0
    %1440 = vmatpush.bf16.xpose.msra.mxu0 0
    %1441 = vmatpush.bf16.xpose.msra.mxu0 0
    %1442 = vmatpush.bf16.xpose.msra.mxu0 %v1433
    %1443 = vmatmul.bf16.gmra.mxu0 %v1430
    %v1444 = vpop.f32.mrf.mxu0
    %v1445 = vadd.f32 %v464, %v1444
    %v1446 = vpop.f32.mrf.mxu0
    %1447 = vdwg.mxu0
    %1448 = vrot.lane.b32.xlu0 %v942, 64
    %v1449 = vpop.permute.xlu0 %1448
    %1450 = vrot.lane.b32.xlu0 %v947, 64
    %v1451 = vpop.permute.xlu0 %1450
    %v1453 = vsel %vm479, %v1449, 0
    %v1456 = vsel %vm479, %v1451, 0
    %1458 = vmatpush.bf16.xpose.msra.mxu0 0
    %1459 = vmatpush.bf16.xpose.msra.mxu0 0
    %1460 = vmatpush.bf16.xpose.msra.mxu0 0
    %1461 = vmatpush.bf16.xpose.msra.mxu0 0
    %1462 = vmatpush.bf16.xpose.msra.mxu0 0
    %1463 = vmatpush.bf16.xpose.msra.mxu0 0
    %1464 = vmatpush.bf16.xpose.msra.mxu0 0
    %1465 = vmatpush.bf16.xpose.msra.mxu0 %v1456
    %1466 = vmatmul.bf16.gmra.mxu0 %v1453
    %v1467 = vpop.f32.mrf.mxu0
    %v1468 = vadd.f32 %v465, %v1467
    %v1469 = vpop.f32.mrf.mxu0
    %1470 = vdwg.mxu0
    %1471 = vrot.lane.b32.xlu0 %v971, 64
    %v1472 = vpop.permute.xlu0 %1471
    %1473 = vrot.lane.b32.xlu0 %v976, 64
    %v1474 = vpop.permute.xlu0 %1473
    %v1476 = vsel %vm479, %v1472, 0
    %v1479 = vsel %vm479, %v1474, 0
    %1481 = vmatpush.bf16.xpose.msra.mxu0 0
    %1482 = vmatpush.bf16.xpose.msra.mxu0 0
    %1483 = vmatpush.bf16.xpose.msra.mxu0 0
    %1484 = vmatpush.bf16.xpose.msra.mxu0 0
    %1485 = vmatpush.bf16.xpose.msra.mxu0 0
    %1486 = vmatpush.bf16.xpose.msra.mxu0 0
    %1487 = vmatpush.bf16.xpose.msra.mxu0 0
    %1488 = vmatpush.bf16.xpose.msra.mxu0 %v1479
    %1489 = vmatmul.bf16.gmra.mxu0 %v1476
    %v1490 = vpop.f32.mrf.mxu0
    %v1491 = vadd.f32 %v466, %v1490
    %v1492 = vpop.f32.mrf.mxu0
    %1493 = vdwg.mxu0
    %1494 = vrot.lane.b32.xlu0 %v1000, 64
    %v1495 = vpop.permute.xlu0 %1494
    %1496 = vrot.lane.b32.xlu0 %v1005, 64
    %v1497 = vpop.permute.xlu0 %1496
    %v1499 = vsel %vm479, %v1495, 0
    %v1502 = vsel %vm479, %v1497, 0
    %1504 = vmatpush.bf16.xpose.msra.mxu0 0
    %1505 = vmatpush.bf16.xpose.msra.mxu0 0
    %1506 = vmatpush.bf16.xpose.msra.mxu0 0
    %1507 = vmatpush.bf16.xpose.msra.mxu0 0
    %1508 = vmatpush.bf16.xpose.msra.mxu0 0
    %1509 = vmatpush.bf16.xpose.msra.mxu0 0
    %1510 = vmatpush.bf16.xpose.msra.mxu0 0
    %1511 = vmatpush.bf16.xpose.msra.mxu0 %v1502
    %1512 = vmatmul.bf16.gmra.mxu0 %v1499
    %v1513 = vpop.f32.mrf.mxu0
    %v1514 = vadd.f32 %v467, %v1513
    %v1515 = vpop.f32.mrf.mxu0
    %1516 = vdwg.mxu0
    %1517 = vrot.lane.b32.xlu0 %v1029, 64
    %v1518 = vpop.permute.xlu0 %1517
    %1519 = vrot.lane.b32.xlu0 %v1034, 64
    %v1520 = vpop.permute.xlu0 %1519
    %v1522 = vsel %vm479, %v1518, 0
    %v1525 = vsel %vm479, %v1520, 0
    %1527 = vmatpush.bf16.xpose.msra.mxu0 0
    %1528 = vmatpush.bf16.xpose.msra.mxu0 0
    %1529 = vmatpush.bf16.xpose.msra.mxu0 0
    %1530 = vmatpush.bf16.xpose.msra.mxu0 0
    %1531 = vmatpush.bf16.xpose.msra.mxu0 0
    %1532 = vmatpush.bf16.xpose.msra.mxu0 0
    %1533 = vmatpush.bf16.xpose.msra.mxu0 0
    %1534 = vmatpush.bf16.xpose.msra.mxu0 %v1525
    %1535 = vmatmul.bf16.gmra.mxu0 %v1522
    %v1536 = vpop.f32.mrf.mxu0
    %v1537 = vadd.f32 %v468, %v1536
    %v1538 = vpop.f32.mrf.mxu0
    %1539 = vdwg.mxu0
    %1540 = vrot.lane.b32.xlu0 %v1058, 64
    %v1541 = vpop.permute.xlu0 %1540
    %1542 = vrot.lane.b32.xlu0 %v1063, 64
    %v1543 = vpop.permute.xlu0 %1542
    %v1545 = vsel %vm479, %v1541, 0
    %v1548 = vsel %vm479, %v1543, 0
    %1550 = vmatpush.bf16.xpose.msra.mxu0 0
    %1551 = vmatpush.bf16.xpose.msra.mxu0 0
    %1552 = vmatpush.bf16.xpose.msra.mxu0 0
    %1553 = vmatpush.bf16.xpose.msra.mxu0 0
    %1554 = vmatpush.bf16.xpose.msra.mxu0 0
    %1555 = vmatpush.bf16.xpose.msra.mxu0 0
    %1556 = vmatpush.bf16.xpose.msra.mxu0 0
    %1557 = vmatpush.bf16.xpose.msra.mxu0 %v1548
    %1558 = vmatmul.bf16.gmra.mxu0 %v1545
    %v1559 = vpop.f32.mrf.mxu0
    %v1560 = vadd.f32 %v469, %v1559
    %v1561 = vpop.f32.mrf.mxu0
    %1562 = vdwg.mxu0
    %1563 = vrot.lane.b32.xlu0 %v1087, 64
    %v1564 = vpop.permute.xlu0 %1563
    %1565 = vrot.lane.b32.xlu0 %v1092, 64
    %v1566 = vpop.permute.xlu0 %1565
    %v1568 = vsel %vm479, %v1564, 0
    %v1571 = vsel %vm479, %v1566, 0
    %1573 = vmatpush.bf16.xpose.msra.mxu0 0
    %1574 = vmatpush.bf16.xpose.msra.mxu0 0
    %1575 = vmatpush.bf16.xpose.msra.mxu0 0
    %1576 = vmatpush.bf16.xpose.msra.mxu0 0
    %1577 = vmatpush.bf16.xpose.msra.mxu0 0
    %1578 = vmatpush.bf16.xpose.msra.mxu0 0
    %1579 = vmatpush.bf16.xpose.msra.mxu0 0
    %1580 = vmatpush.bf16.xpose.msra.mxu0 %v1571
    %1581 = vmatmul.bf16.gmra.mxu0 %v1568
    %v1582 = vpop.f32.mrf.mxu0
    %v1583 = vadd.f32 %v470, %v1582
    %v1584 = vpop.f32.mrf.mxu0
    %1585 = vdwg.mxu0
    %v1586 = vsel %vm632, %v1422, -inf
    %1587 = vmax.xlane.f32.xlu0 %v1586
    %v1588 = vpop.xlane.xlu0 %1587
    %v1589 = vsel %vm632, %v1445, -inf
    %1590 = vmax.xlane.f32.xlu0 %v1589
    %v1591 = vpop.xlane.xlu0 %1590
    %v1592 = vsel %vm632, %v1468, -inf
    %1593 = vmax.xlane.f32.xlu0 %v1592
    %v1594 = vpop.xlane.xlu0 %1593
    %v1595 = vsel %vm632, %v1491, -inf
    %1596 = vmax.xlane.f32.xlu0 %v1595
    %v1597 = vpop.xlane.xlu0 %1596
    %v1598 = vsel %vm632, %v1514, -inf
    %1599 = vmax.xlane.f32.xlu0 %v1598
    %v1600 = vpop.xlane.xlu0 %1599
    %v1601 = vsel %vm632, %v1537, -inf
    %1602 = vmax.xlane.f32.xlu0 %v1601
    %v1603 = vpop.xlane.xlu0 %1602
    %v1604 = vsel %vm632, %v1560, -inf
    %1605 = vmax.xlane.f32.xlu0 %v1604
    %v1606 = vpop.xlane.xlu0 %1605
    %v1607 = vsel %vm632, %v1583, -inf
    %1608 = vmax.xlane.f32.xlu0 %v1607
    %v1609 = vpop.xlane.xlu0 %1608
    %v1610 = vsub.f32 %v1422, %v1588
    %v1611 = vsub.f32 %v1445, %v1591
    %v1612 = vsub.f32 %v1468, %v1594
    %v1613 = vsub.f32 %v1491, %v1597
    %v1614 = vsub.f32 %v1514, %v1600
    %v1615 = vsub.f32 %v1537, %v1603
    %v1616 = vsub.f32 %v1560, %v1606
    %v1617 = vsub.f32 %v1583, %v1609
    %v1618 = vmul.f32 %v1610, 1.442695
    %v1619 = vpow.pop %v1618
    %v1620 = vmul.f32 %v1611, 1.442695
    %v1621 = vpow.pop %v1620
    %v1622 = vmul.f32 %v1612, 1.442695
    %v1623 = vpow.pop %v1622
    %v1624 = vmul.f32 %v1613, 1.442695
    %v1625 = vpow.pop %v1624
    %v1626 = vmul.f32 %v1614, 1.442695
    %v1627 = vpow.pop %v1626
    %v1628 = vmul.f32 %v1615, 1.442695
    %v1629 = vpow.pop %v1628
    %v1630 = vmul.f32 %v1616, 1.442695
    %v1631 = vpow.pop %v1630
    %v1632 = vmul.f32 %v1617, 1.442695
    %v1633 = vpow.pop %v1632
    %v1634 = vsel %vm632, %v1619, 0.0
    %1635 = vadd.xlane.f32.xlu0 %v1634
    %v1636 = vpop.xlane.xlu0 %1635
    %v1637 = vsel %vm632, %v1621, 0.0
    %1638 = vadd.xlane.f32.xlu0 %v1637
    %v1639 = vpop.xlane.xlu0 %1638
    %v1640 = vsel %vm632, %v1623, 0.0
    %1641 = vadd.xlane.f32.xlu0 %v1640
    %v1642 = vpop.xlane.xlu0 %1641
    %v1643 = vsel %vm632, %v1625, 0.0
    %1644 = vadd.xlane.f32.xlu0 %v1643
    %v1645 = vpop.xlane.xlu0 %1644
    %v1646 = vsel %vm632, %v1627, 0.0
    %1647 = vadd.xlane.f32.xlu0 %v1646
    %v1648 = vpop.xlane.xlu0 %1647
    %v1649 = vsel %vm632, %v1629, 0.0
    %1650 = vadd.xlane.f32.xlu0 %v1649
    %v1651 = vpop.xlane.xlu0 %1650
    %v1652 = vsel %vm632, %v1631, 0.0
    %1653 = vadd.xlane.f32.xlu0 %v1652
    %v1654 = vpop.xlane.xlu0 %1653
    %v1655 = vsel %vm632, %v1633, 0.0
    %1656 = vadd.xlane.f32.xlu0 %v1655
    %v1657 = vpop.xlane.xlu0 %1656
    %v1658 = vrcp.pop %v1636
    %v1659 = vrcp.pop %v1639
    %v1660 = vrcp.pop %v1642
    %v1661 = vrcp.pop %v1645
    %v1662 = vrcp.pop %v1648
    %v1663 = vrcp.pop %v1651
    %v1664 = vrcp.pop %v1654
    %v1665 = vrcp.pop %v1657
    %v1666 = vmul.f32 %v1619, %v1658
    %v1667 = vmul.f32 %v1621, %v1659
    %v1668 = vmul.f32 %v1623, %v1660
    %v1669 = vmul.f32 %v1625, %v1661
    %v1670 = vmul.f32 %v1627, %v1662
    %v1671 = vmul.f32 %v1629, %v1663
    %v1672 = vmul.f32 %v1631, %v1664
    %v1673 = vmul.f32 %v1633, %v1665
    %v1674 = vpack.c.bf16 %v1666, %v1666
    %v1675 = vpack.c.bf16 %v1667, %v1667
    %v1676 = vpack.c.bf16 %v1668, %v1668
    %v1677 = vpack.c.bf16 %v1669, %v1669
    %v1678 = vpack.c.bf16 %v1670, %v1670
    %v1679 = vpack.c.bf16 %v1671, %v1671
    %v1680 = vpack.c.bf16 %v1672, %v1672
    %v1681 = vpack.c.bf16 %v1673, %v1673
    %1682 = vrot.lane.b32.xlu0 %v1212, 64
    %v1683 = vpop.permute.xlu0 %1682
    %v1685 = vsel %vm632, %v1674, 0
    %v1688 = vsel %vm732, %v1683, 0
    %1690 = vmatpush.bf16.msra.mxu0 0
    %1691 = vmatpush.bf16.msra.mxu0 0
    %1692 = vmatpush.bf16.msra.mxu0 0
    %1693 = vmatpush.bf16.msra.mxu0 0
    %1694 = vmatpush.bf16.msra.mxu0 0
    %1695 = vmatpush.bf16.msra.mxu0 0
    %1696 = vmatpush.bf16.msra.mxu0 0
    %1697 = vmatpush.bf16.msra.mxu0 %v1688
    %1698 = vmatmul.bf16.gmra.mxu0 %v1685
    %v1699 = vpop.f32.mrf.mxu0
    %v1700 = vadd.f32 0.0, %v1699
    %v1701 = vpop.f32.mrf.mxu0
    %1702 = vdwg.mxu0
    %1703 = vrot.lane.b32.xlu0 %v1236, 64
    %v1704 = vpop.permute.xlu0 %1703
    %v1706 = vsel %vm632, %v1675, 0
    %v1709 = vsel %vm732, %v1704, 0
    %1711 = vmatpush.bf16.msra.mxu0 0
    %1712 = vmatpush.bf16.msra.mxu0 0
    %1713 = vmatpush.bf16.msra.mxu0 0
    %1714 = vmatpush.bf16.msra.mxu0 0
    %1715 = vmatpush.bf16.msra.mxu0 0
    %1716 = vmatpush.bf16.msra.mxu0 0
    %1717 = vmatpush.bf16.msra.mxu0 0
    %1718 = vmatpush.bf16.msra.mxu0 %v1709
    %1719 = vmatmul.bf16.gmra.mxu0 %v1706
    %v1720 = vpop.f32.mrf.mxu0
    %v1721 = vadd.f32 0.0, %v1720
    %v1722 = vpop.f32.mrf.mxu0
    %1723 = vdwg.mxu0
    %1724 = vrot.lane.b32.xlu0 %v1260, 64
    %v1725 = vpop.permute.xlu0 %1724
    %v1727 = vsel %vm632, %v1676, 0
    %v1730 = vsel %vm732, %v1725, 0
    %1732 = vmatpush.bf16.msra.mxu0 0
    %1733 = vmatpush.bf16.msra.mxu0 0
    %1734 = vmatpush.bf16.msra.mxu0 0
    %1735 = vmatpush.bf16.msra.mxu0 0
    %1736 = vmatpush.bf16.msra.mxu0 0
    %1737 = vmatpush.bf16.msra.mxu0 0
    %1738 = vmatpush.bf16.msra.mxu0 0
    %1739 = vmatpush.bf16.msra.mxu0 %v1730
    %1740 = vmatmul.bf16.gmra.mxu0 %v1727
    %v1741 = vpop.f32.mrf.mxu0
    %v1742 = vadd.f32 0.0, %v1741
    %v1743 = vpop.f32.mrf.mxu0
    %1744 = vdwg.mxu0
    %1745 = vrot.lane.b32.xlu0 %v1284, 64
    %v1746 = vpop.permute.xlu0 %1745
    %v1748 = vsel %vm632, %v1677, 0
    %v1751 = vsel %vm732, %v1746, 0
    %1753 = vmatpush.bf16.msra.mxu0 0
    %1754 = vmatpush.bf16.msra.mxu0 0
    %1755 = vmatpush.bf16.msra.mxu0 0
    %1756 = vmatpush.bf16.msra.mxu0 0
    %1757 = vmatpush.bf16.msra.mxu0 0
    %1758 = vmatpush.bf16.msra.mxu0 0
    %1759 = vmatpush.bf16.msra.mxu0 0
    %1760 = vmatpush.bf16.msra.mxu0 %v1751
    %1761 = vmatmul.bf16.gmra.mxu0 %v1748
    %v1762 = vpop.f32.mrf.mxu0
    %v1763 = vadd.f32 0.0, %v1762
    %v1764 = vpop.f32.mrf.mxu0
    %1765 = vdwg.mxu0
    %1766 = vrot.lane.b32.xlu0 %v1308, 64
    %v1767 = vpop.permute.xlu0 %1766
    %v1769 = vsel %vm632, %v1678, 0
    %v1772 = vsel %vm732, %v1767, 0
    %1774 = vmatpush.bf16.msra.mxu0 0
    %1775 = vmatpush.bf16.msra.mxu0 0
    %1776 = vmatpush.bf16.msra.mxu0 0
    %1777 = vmatpush.bf16.msra.mxu0 0
    %1778 = vmatpush.bf16.msra.mxu0 0
    %1779 = vmatpush.bf16.msra.mxu0 0
    %1780 = vmatpush.bf16.msra.mxu0 0
    %1781 = vmatpush.bf16.msra.mxu0 %v1772
    %1782 = vmatmul.bf16.gmra.mxu0 %v1769
    %v1783 = vpop.f32.mrf.mxu0
    %v1784 = vadd.f32 0.0, %v1783
    %v1785 = vpop.f32.mrf.mxu0
    %1786 = vdwg.mxu0
    %1787 = vrot.lane.b32.xlu0 %v1332, 64
    %v1788 = vpop.permute.xlu0 %1787
    %v1790 = vsel %vm632, %v1679, 0
    %v1793 = vsel %vm732, %v1788, 0
    %1795 = vmatpush.bf16.msra.mxu0 0
    %1796 = vmatpush.bf16.msra.mxu0 0
    %1797 = vmatpush.bf16.msra.mxu0 0
    %1798 = vmatpush.bf16.msra.mxu0 0
    %1799 = vmatpush.bf16.msra.mxu0 0
    %1800 = vmatpush.bf16.msra.mxu0 0
    %1801 = vmatpush.bf16.msra.mxu0 0
    %1802 = vmatpush.bf16.msra.mxu0 %v1793
    %1803 = vmatmul.bf16.gmra.mxu0 %v1790
    %v1804 = vpop.f32.mrf.mxu0
    %v1805 = vadd.f32 0.0, %v1804
    %v1806 = vpop.f32.mrf.mxu0
    %1807 = vdwg.mxu0
    %1808 = vrot.lane.b32.xlu0 %v1356, 64
    %v1809 = vpop.permute.xlu0 %1808
    %v1811 = vsel %vm632, %v1680, 0
    %v1814 = vsel %vm732, %v1809, 0
    %1816 = vmatpush.bf16.msra.mxu0 0
    %1817 = vmatpush.bf16.msra.mxu0 0
    %1818 = vmatpush.bf16.msra.mxu0 0
    %1819 = vmatpush.bf16.msra.mxu0 0
    %1820 = vmatpush.bf16.msra.mxu0 0
    %1821 = vmatpush.bf16.msra.mxu0 0
    %1822 = vmatpush.bf16.msra.mxu0 0
    %1823 = vmatpush.bf16.msra.mxu0 %v1814
    %1824 = vmatmul.bf16.gmra.mxu0 %v1811
    %v1825 = vpop.f32.mrf.mxu0
    %v1826 = vadd.f32 0.0, %v1825
    %v1827 = vpop.f32.mrf.mxu0
    %1828 = vdwg.mxu0
    %1829 = vrot.lane.b32.xlu0 %v1380, 64
    %v1830 = vpop.permute.xlu0 %1829
    %v1832 = vsel %vm632, %v1681, 0
    %v1835 = vsel %vm732, %v1830, 0
    %1837 = vmatpush.bf16.msra.mxu0 0
    %1838 = vmatpush.bf16.msra.mxu0 0
    %1839 = vmatpush.bf16.msra.mxu0 0
    %1840 = vmatpush.bf16.msra.mxu0 0
    %1841 = vmatpush.bf16.msra.mxu0 0
    %1842 = vmatpush.bf16.msra.mxu0 0
    %1843 = vmatpush.bf16.msra.mxu0 0
    %1844 = vmatpush.bf16.msra.mxu0 %v1835
    %1845 = vmatmul.bf16.gmra.mxu0 %v1832
    %v1846 = vpop.f32.mrf.mxu0
    %v1847 = vadd.f32 0.0, %v1846
    %v1848 = vpop.f32.mrf.mxu0
    %1849 = vdwg.mxu0
    %1850 = vrot.lane.b32.xlu0 %v884, 32
    %v1851 = vpop.permute.xlu0 %1850
    %1852 = vrot.lane.b32.xlu0 %v889, 32
    %v1853 = vpop.permute.xlu0 %1852
    %v1855 = vsel %vm479, %v1851, 0
    %v1858 = vsel %vm479, %v1853, 0
    %1860 = vmatpush.bf16.xpose.msra.mxu0 0
    %1861 = vmatpush.bf16.xpose.msra.mxu0 0
    %1862 = vmatpush.bf16.xpose.msra.mxu0 0
    %1863 = vmatpush.bf16.xpose.msra.mxu0 0
    %1864 = vmatpush.bf16.xpose.msra.mxu0 0
    %1865 = vmatpush.bf16.xpose.msra.mxu0 0
    %1866 = vmatpush.bf16.xpose.msra.mxu0 0
    %1867 = vmatpush.bf16.xpose.msra.mxu0 %v1858
    %1868 = vmatmul.bf16.gmra.mxu0 %v1855
    %v1869 = vpop.f32.mrf.mxu0
    %v1870 = vadd.f32 %v463, %v1869
    %v1871 = vpop.f32.mrf.mxu0
    %1872 = vdwg.mxu0
    %1873 = vrot.lane.b32.xlu0 %v913, 32
    %v1874 = vpop.permute.xlu0 %1873
    %1875 = vrot.lane.b32.xlu0 %v918, 32
    %v1876 = vpop.permute.xlu0 %1875
    %v1878 = vsel %vm479, %v1874, 0
    %v1881 = vsel %vm479, %v1876, 0
    %1883 = vmatpush.bf16.xpose.msra.mxu0 0
    %1884 = vmatpush.bf16.xpose.msra.mxu0 0
    %1885 = vmatpush.bf16.xpose.msra.mxu0 0
    %1886 = vmatpush.bf16.xpose.msra.mxu0 0
    %1887 = vmatpush.bf16.xpose.msra.mxu0 0
    %1888 = vmatpush.bf16.xpose.msra.mxu0 0
    %1889 = vmatpush.bf16.xpose.msra.mxu0 0
    %1890 = vmatpush.bf16.xpose.msra.mxu0 %v1881
    %1891 = vmatmul.bf16.gmra.mxu0 %v1878
    %v1892 = vpop.f32.mrf.mxu0
    %v1893 = vadd.f32 %v464, %v1892
    %v1894 = vpop.f32.mrf.mxu0
    %1895 = vdwg.mxu0
    %1896 = vrot.lane.b32.xlu0 %v942, 32
    %v1897 = vpop.permute.xlu0 %1896
    %1898 = vrot.lane.b32.xlu0 %v947, 32
    %v1899 = vpop.permute.xlu0 %1898
    %v1901 = vsel %vm479, %v1897, 0
    %v1904 = vsel %vm479, %v1899, 0
    %1906 = vmatpush.bf16.xpose.msra.mxu0 0
    %1907 = vmatpush.bf16.xpose.msra.mxu0 0
    %1908 = vmatpush.bf16.xpose.msra.mxu0 0
    %1909 = vmatpush.bf16.xpose.msra.mxu0 0
    %1910 = vmatpush.bf16.xpose.msra.mxu0 0
    %1911 = vmatpush.bf16.xpose.msra.mxu0 0
    %1912 = vmatpush.bf16.xpose.msra.mxu0 0
    %1913 = vmatpush.bf16.xpose.msra.mxu0 %v1904
    %1914 = vmatmul.bf16.gmra.mxu0 %v1901
    %v1915 = vpop.f32.mrf.mxu0
    %v1916 = vadd.f32 %v465, %v1915
    %v1917 = vpop.f32.mrf.mxu0
    %1918 = vdwg.mxu0
    %1919 = vrot.lane.b32.xlu0 %v971, 32
    %v1920 = vpop.permute.xlu0 %1919
    %1921 = vrot.lane.b32.xlu0 %v976, 32
    %v1922 = vpop.permute.xlu0 %1921
    %v1924 = vsel %vm479, %v1920, 0
    %v1927 = vsel %vm479, %v1922, 0
    %1929 = vmatpush.bf16.xpose.msra.mxu0 0
    %1930 = vmatpush.bf16.xpose.msra.mxu0 0
    %1931 = vmatpush.bf16.xpose.msra.mxu0 0
    %1932 = vmatpush.bf16.xpose.msra.mxu0 0
    %1933 = vmatpush.bf16.xpose.msra.mxu0 0
    %1934 = vmatpush.bf16.xpose.msra.mxu0 0
    %1935 = vmatpush.bf16.xpose.msra.mxu0 0
    %1936 = vmatpush.bf16.xpose.msra.mxu0 %v1927
    %1937 = vmatmul.bf16.gmra.mxu0 %v1924
    %v1938 = vpop.f32.mrf.mxu0
    %v1939 = vadd.f32 %v466, %v1938
    %v1940 = vpop.f32.mrf.mxu0
    %1941 = vdwg.mxu0
    %1942 = vrot.lane.b32.xlu0 %v1000, 32
    %v1943 = vpop.permute.xlu0 %1942
    %1944 = vrot.lane.b32.xlu0 %v1005, 32
    %v1945 = vpop.permute.xlu0 %1944
    %v1947 = vsel %vm479, %v1943, 0
    %v1950 = vsel %vm479, %v1945, 0
    %1952 = vmatpush.bf16.xpose.msra.mxu0 0
    %1953 = vmatpush.bf16.xpose.msra.mxu0 0
    %1954 = vmatpush.bf16.xpose.msra.mxu0 0
    %1955 = vmatpush.bf16.xpose.msra.mxu0 0
    %1956 = vmatpush.bf16.xpose.msra.mxu0 0
    %1957 = vmatpush.bf16.xpose.msra.mxu0 0
    %1958 = vmatpush.bf16.xpose.msra.mxu0 0
    %1959 = vmatpush.bf16.xpose.msra.mxu0 %v1950
    %1960 = vmatmul.bf16.gmra.mxu0 %v1947
    %v1961 = vpop.f32.mrf.mxu0
    %v1962 = vadd.f32 %v467, %v1961
    %v1963 = vpop.f32.mrf.mxu0
    %1964 = vdwg.mxu0
    %1965 = vrot.lane.b32.xlu0 %v1029, 32
    %v1966 = vpop.permute.xlu0 %1965
    %1967 = vrot.lane.b32.xlu0 %v1034, 32
    %v1968 = vpop.permute.xlu0 %1967
    %v1970 = vsel %vm479, %v1966, 0
    %v1973 = vsel %vm479, %v1968, 0
    %1975 = vmatpush.bf16.xpose.msra.mxu0 0
    %1976 = vmatpush.bf16.xpose.msra.mxu0 0
    %1977 = vmatpush.bf16.xpose.msra.mxu0 0
    %1978 = vmatpush.bf16.xpose.msra.mxu0 0
    %1979 = vmatpush.bf16.xpose.msra.mxu0 0
    %1980 = vmatpush.bf16.xpose.msra.mxu0 0
    %1981 = vmatpush.bf16.xpose.msra.mxu0 0
    %1982 = vmatpush.bf16.xpose.msra.mxu0 %v1973
    %1983 = vmatmul.bf16.gmra.mxu0 %v1970
    %v1984 = vpop.f32.mrf.mxu0
    %v1985 = vadd.f32 %v468, %v1984
    %v1986 = vpop.f32.mrf.mxu0
    %1987 = vdwg.mxu0
    %1988 = vrot.lane.b32.xlu0 %v1058, 32
    %v1989 = vpop.permute.xlu0 %1988
    %1990 = vrot.lane.b32.xlu0 %v1063, 32
    %v1991 = vpop.permute.xlu0 %1990
    %v1993 = vsel %vm479, %v1989, 0
    %v1996 = vsel %vm479, %v1991, 0
    %1998 = vmatpush.bf16.xpose.msra.mxu0 0
    %1999 = vmatpush.bf16.xpose.msra.mxu0 0
    %2000 = vmatpush.bf16.xpose.msra.mxu0 0
    %2001 = vmatpush.bf16.xpose.msra.mxu0 0
    %2002 = vmatpush.bf16.xpose.msra.mxu0 0
    %2003 = vmatpush.bf16.xpose.msra.mxu0 0
    %2004 = vmatpush.bf16.xpose.msra.mxu0 0
    %2005 = vmatpush.bf16.xpose.msra.mxu0 %v1996
    %2006 = vmatmul.bf16.gmra.mxu0 %v1993
    %v2007 = vpop.f32.mrf.mxu0
    %v2008 = vadd.f32 %v469, %v2007
    %v2009 = vpop.f32.mrf.mxu0
    %2010 = vdwg.mxu0
    %2011 = vrot.lane.b32.xlu0 %v1087, 32
    %v2012 = vpop.permute.xlu0 %2011
    %2013 = vrot.lane.b32.xlu0 %v1092, 32
    %v2014 = vpop.permute.xlu0 %2013
    %v2016 = vsel %vm479, %v2012, 0
    %v2019 = vsel %vm479, %v2014, 0
    %2021 = vmatpush.bf16.xpose.msra.mxu0 0
    %2022 = vmatpush.bf16.xpose.msra.mxu0 0
    %2023 = vmatpush.bf16.xpose.msra.mxu0 0
    %2024 = vmatpush.bf16.xpose.msra.mxu0 0
    %2025 = vmatpush.bf16.xpose.msra.mxu0 0
    %2026 = vmatpush.bf16.xpose.msra.mxu0 0
    %2027 = vmatpush.bf16.xpose.msra.mxu0 0
    %2028 = vmatpush.bf16.xpose.msra.mxu0 %v2019
    %2029 = vmatmul.bf16.gmra.mxu0 %v2016
    %v2030 = vpop.f32.mrf.mxu0
    %v2031 = vadd.f32 %v470, %v2030
    %v2032 = vpop.f32.mrf.mxu0
    %2033 = vdwg.mxu0
    %v2034 = vsel %vm632, %v1870, -inf
    %2035 = vmax.xlane.f32.xlu0 %v2034
    %v2036 = vpop.xlane.xlu0 %2035
    %v2037 = vsel %vm632, %v1893, -inf
    %2038 = vmax.xlane.f32.xlu0 %v2037
    %v2039 = vpop.xlane.xlu0 %2038
    %v2040 = vsel %vm632, %v1916, -inf
    %2041 = vmax.xlane.f32.xlu0 %v2040
    %v2042 = vpop.xlane.xlu0 %2041
    %v2043 = vsel %vm632, %v1939, -inf
    %2044 = vmax.xlane.f32.xlu0 %v2043
    %v2045 = vpop.xlane.xlu0 %2044
    %v2046 = vsel %vm632, %v1962, -inf
    %2047 = vmax.xlane.f32.xlu0 %v2046
    %v2048 = vpop.xlane.xlu0 %2047
    %v2049 = vsel %vm632, %v1985, -inf
    %2050 = vmax.xlane.f32.xlu0 %v2049
    %v2051 = vpop.xlane.xlu0 %2050
    %v2052 = vsel %vm632, %v2008, -inf
    %2053 = vmax.xlane.f32.xlu0 %v2052
    %v2054 = vpop.xlane.xlu0 %2053
    %v2055 = vsel %vm632, %v2031, -inf
    %2056 = vmax.xlane.f32.xlu0 %v2055
    %v2057 = vpop.xlane.xlu0 %2056
    %v2058 = vsub.f32 %v1870, %v2036
    %v2059 = vsub.f32 %v1893, %v2039
    %v2060 = vsub.f32 %v1916, %v2042
    %v2061 = vsub.f32 %v1939, %v2045
    %v2062 = vsub.f32 %v1962, %v2048
    %v2063 = vsub.f32 %v1985, %v2051
    %v2064 = vsub.f32 %v2008, %v2054
    %v2065 = vsub.f32 %v2031, %v2057
    %v2066 = vmul.f32 %v2058, 1.442695
    %v2067 = vpow.pop %v2066
    %v2068 = vmul.f32 %v2059, 1.442695
    %v2069 = vpow.pop %v2068
    %v2070 = vmul.f32 %v2060, 1.442695
    %v2071 = vpow.pop %v2070
    %v2072 = vmul.f32 %v2061, 1.442695
    %v2073 = vpow.pop %v2072
    %v2074 = vmul.f32 %v2062, 1.442695
    %v2075 = vpow.pop %v2074
    %v2076 = vmul.f32 %v2063, 1.442695
    %v2077 = vpow.pop %v2076
    %v2078 = vmul.f32 %v2064, 1.442695
    %v2079 = vpow.pop %v2078
    %v2080 = vmul.f32 %v2065, 1.442695
    %v2081 = vpow.pop %v2080
    %v2082 = vsel %vm632, %v2067, 0.0
    %2083 = vadd.xlane.f32.xlu0 %v2082
    %v2084 = vpop.xlane.xlu0 %2083
    %v2085 = vsel %vm632, %v2069, 0.0
    %2086 = vadd.xlane.f32.xlu0 %v2085
    %v2087 = vpop.xlane.xlu0 %2086
    %v2088 = vsel %vm632, %v2071, 0.0
    %2089 = vadd.xlane.f32.xlu0 %v2088
    %v2090 = vpop.xlane.xlu0 %2089
    %v2091 = vsel %vm632, %v2073, 0.0
    %2092 = vadd.xlane.f32.xlu0 %v2091
    %v2093 = vpop.xlane.xlu0 %2092
    %v2094 = vsel %vm632, %v2075, 0.0
    %2095 = vadd.xlane.f32.xlu0 %v2094
    %v2096 = vpop.xlane.xlu0 %2095
    %v2097 = vsel %vm632, %v2077, 0.0
    %2098 = vadd.xlane.f32.xlu0 %v2097
    %v2099 = vpop.xlane.xlu0 %2098
    %v2100 = vsel %vm632, %v2079, 0.0
    %2101 = vadd.xlane.f32.xlu0 %v2100
    %v2102 = vpop.xlane.xlu0 %2101
    %v2103 = vsel %vm632, %v2081, 0.0
    %2104 = vadd.xlane.f32.xlu0 %v2103
    %v2105 = vpop.xlane.xlu0 %2104
    %v2106 = vrcp.pop %v2084
    %v2107 = vrcp.pop %v2087
    %v2108 = vrcp.pop %v2090
    %v2109 = vrcp.pop %v2093
    %v2110 = vrcp.pop %v2096
    %v2111 = vrcp.pop %v2099
    %v2112 = vrcp.pop %v2102
    %v2113 = vrcp.pop %v2105
    %v2114 = vmul.f32 %v2067, %v2106
    %v2115 = vmul.f32 %v2069, %v2107
    %v2116 = vmul.f32 %v2071, %v2108
    %v2117 = vmul.f32 %v2073, %v2109
    %v2118 = vmul.f32 %v2075, %v2110
    %v2119 = vmul.f32 %v2077, %v2111
    %v2120 = vmul.f32 %v2079, %v2112
    %v2121 = vmul.f32 %v2081, %v2113
    %v2122 = vpack.c.bf16 %v2114, %v2114
    %v2123 = vpack.c.bf16 %v2115, %v2115
    %v2124 = vpack.c.bf16 %v2116, %v2116
    %v2125 = vpack.c.bf16 %v2117, %v2117
    %v2126 = vpack.c.bf16 %v2118, %v2118
    %v2127 = vpack.c.bf16 %v2119, %v2119
    %v2128 = vpack.c.bf16 %v2120, %v2120
    %v2129 = vpack.c.bf16 %v2121, %v2121
    %2130 = vrot.lane.b32.xlu0 %v1212, 32
    %v2131 = vpop.permute.xlu0 %2130
    %v2133 = vsel %vm632, %v2122, 0
    %v2136 = vsel %vm732, %v2131, 0
    %2138 = vmatpush.bf16.msra.mxu0 0
    %2139 = vmatpush.bf16.msra.mxu0 0
    %2140 = vmatpush.bf16.msra.mxu0 0
    %2141 = vmatpush.bf16.msra.mxu0 0
    %2142 = vmatpush.bf16.msra.mxu0 0
    %2143 = vmatpush.bf16.msra.mxu0 0
    %2144 = vmatpush.bf16.msra.mxu0 0
    %2145 = vmatpush.bf16.msra.mxu0 %v2136
    %2146 = vmatmul.bf16.gmra.mxu0 %v2133
    %v2147 = vpop.f32.mrf.mxu0
    %v2148 = vadd.f32 0.0, %v2147
    %v2149 = vpop.f32.mrf.mxu0
    %2150 = vdwg.mxu0
    %2151 = vrot.lane.b32.xlu0 %v1236, 32
    %v2152 = vpop.permute.xlu0 %2151
    %v2154 = vsel %vm632, %v2123, 0
    %v2157 = vsel %vm732, %v2152, 0
    %2159 = vmatpush.bf16.msra.mxu0 0
    %2160 = vmatpush.bf16.msra.mxu0 0
    %2161 = vmatpush.bf16.msra.mxu0 0
    %2162 = vmatpush.bf16.msra.mxu0 0
    %2163 = vmatpush.bf16.msra.mxu0 0
    %2164 = vmatpush.bf16.msra.mxu0 0
    %2165 = vmatpush.bf16.msra.mxu0 0
    %2166 = vmatpush.bf16.msra.mxu0 %v2157
    %2167 = vmatmul.bf16.gmra.mxu0 %v2154
    %v2168 = vpop.f32.mrf.mxu0
    %v2169 = vadd.f32 0.0, %v2168
    %v2170 = vpop.f32.mrf.mxu0
    %2171 = vdwg.mxu0
    %2172 = vrot.lane.b32.xlu0 %v1260, 32
    %v2173 = vpop.permute.xlu0 %2172
    %v2175 = vsel %vm632, %v2124, 0
    %v2178 = vsel %vm732, %v2173, 0
    %2180 = vmatpush.bf16.msra.mxu0 0
    %2181 = vmatpush.bf16.msra.mxu0 0
    %2182 = vmatpush.bf16.msra.mxu0 0
    %2183 = vmatpush.bf16.msra.mxu0 0
    %2184 = vmatpush.bf16.msra.mxu0 0
    %2185 = vmatpush.bf16.msra.mxu0 0
    %2186 = vmatpush.bf16.msra.mxu0 0
    %2187 = vmatpush.bf16.msra.mxu0 %v2178
    %2188 = vmatmul.bf16.gmra.mxu0 %v2175
    %v2189 = vpop.f32.mrf.mxu0
    %v2190 = vadd.f32 0.0, %v2189
    %v2191 = vpop.f32.mrf.mxu0
    %2192 = vdwg.mxu0
    %2193 = vrot.lane.b32.xlu0 %v1284, 32
    %v2194 = vpop.permute.xlu0 %2193
    %v2196 = vsel %vm632, %v2125, 0
    %v2199 = vsel %vm732, %v2194, 0
    %2201 = vmatpush.bf16.msra.mxu0 0
    %2202 = vmatpush.bf16.msra.mxu0 0
    %2203 = vmatpush.bf16.msra.mxu0 0
    %2204 = vmatpush.bf16.msra.mxu0 0
    %2205 = vmatpush.bf16.msra.mxu0 0
    %2206 = vmatpush.bf16.msra.mxu0 0
    %2207 = vmatpush.bf16.msra.mxu0 0
    %2208 = vmatpush.bf16.msra.mxu0 %v2199
    %2209 = vmatmul.bf16.gmra.mxu0 %v2196
    %v2210 = vpop.f32.mrf.mxu0
    %v2211 = vadd.f32 0.0, %v2210
    %v2212 = vpop.f32.mrf.mxu0
    %2213 = vdwg.mxu0
    %2214 = vrot.lane.b32.xlu0 %v1308, 32
    %v2215 = vpop.permute.xlu0 %2214
    %v2217 = vsel %vm632, %v2126, 0
    %v2220 = vsel %vm732, %v2215, 0
    %2222 = vmatpush.bf16.msra.mxu0 0
    %2223 = vmatpush.bf16.msra.mxu0 0
    %2224 = vmatpush.bf16.msra.mxu0 0
    %2225 = vmatpush.bf16.msra.mxu0 0
    %2226 = vmatpush.bf16.msra.mxu0 0
    %2227 = vmatpush.bf16.msra.mxu0 0
    %2228 = vmatpush.bf16.msra.mxu0 0
    %2229 = vmatpush.bf16.msra.mxu0 %v2220
    %2230 = vmatmul.bf16.gmra.mxu0 %v2217
    %v2231 = vpop.f32.mrf.mxu0
    %v2232 = vadd.f32 0.0, %v2231
    %v2233 = vpop.f32.mrf.mxu0
    %2234 = vdwg.mxu0
    %2235 = vrot.lane.b32.xlu0 %v1332, 32
    %v2236 = vpop.permute.xlu0 %2235
    %v2238 = vsel %vm632, %v2127, 0
    %v2241 = vsel %vm732, %v2236, 0
    %2243 = vmatpush.bf16.msra.mxu0 0
    %2244 = vmatpush.bf16.msra.mxu0 0
    %2245 = vmatpush.bf16.msra.mxu0 0
    %2246 = vmatpush.bf16.msra.mxu0 0
    %2247 = vmatpush.bf16.msra.mxu0 0
    %2248 = vmatpush.bf16.msra.mxu0 0
    %2249 = vmatpush.bf16.msra.mxu0 0
    %2250 = vmatpush.bf16.msra.mxu0 %v2241
    %2251 = vmatmul.bf16.gmra.mxu0 %v2238
    %v2252 = vpop.f32.mrf.mxu0
    %v2253 = vadd.f32 0.0, %v2252
    %v2254 = vpop.f32.mrf.mxu0
    %2255 = vdwg.mxu0
    %2256 = vrot.lane.b32.xlu0 %v1356, 32
    %v2257 = vpop.permute.xlu0 %2256
    %v2259 = vsel %vm632, %v2128, 0
    %v2262 = vsel %vm732, %v2257, 0
    %2264 = vmatpush.bf16.msra.mxu0 0
    %2265 = vmatpush.bf16.msra.mxu0 0
    %2266 = vmatpush.bf16.msra.mxu0 0
    %2267 = vmatpush.bf16.msra.mxu0 0
    %2268 = vmatpush.bf16.msra.mxu0 0
    %2269 = vmatpush.bf16.msra.mxu0 0
    %2270 = vmatpush.bf16.msra.mxu0 0
    %2271 = vmatpush.bf16.msra.mxu0 %v2262
    %2272 = vmatmul.bf16.gmra.mxu0 %v2259
    %v2273 = vpop.f32.mrf.mxu0
    %v2274 = vadd.f32 0.0, %v2273
    %v2275 = vpop.f32.mrf.mxu0
    %2276 = vdwg.mxu0
    %2277 = vrot.lane.b32.xlu0 %v1380, 32
    %v2278 = vpop.permute.xlu0 %2277
    %v2280 = vsel %vm632, %v2129, 0
    %v2283 = vsel %vm732, %v2278, 0
    %2285 = vmatpush.bf16.msra.mxu0 0
    %2286 = vmatpush.bf16.msra.mxu0 0
    %2287 = vmatpush.bf16.msra.mxu0 0
    %2288 = vmatpush.bf16.msra.mxu0 0
    %2289 = vmatpush.bf16.msra.mxu0 0
    %2290 = vmatpush.bf16.msra.mxu0 0
    %2291 = vmatpush.bf16.msra.mxu0 0
    %2292 = vmatpush.bf16.msra.mxu0 %v2283
    %2293 = vmatmul.bf16.gmra.mxu0 %v2280
    %v2294 = vpop.f32.mrf.mxu0
    %v2295 = vadd.f32 0.0, %v2294
    %v2296 = vpop.f32.mrf.mxu0
    %2297 = vdwg.mxu0
    %2306 = vrot.lane.b32.xlu0 %v1231, 32
    %v2307 = vpop.permute.xlu0 %2306
    %2308 = vrot.lane.b32.xlu0 %v1255, 32
    %v2309 = vpop.permute.xlu0 %2308
    %2310 = vrot.lane.b32.xlu0 %v1279, 32
    %v2311 = vpop.permute.xlu0 %2310
    %2312 = vrot.lane.b32.xlu0 %v1303, 32
    %v2313 = vpop.permute.xlu0 %2312
    %2314 = vrot.lane.b32.xlu0 %v1327, 32
    %v2315 = vpop.permute.xlu0 %2314
    %2316 = vrot.lane.b32.xlu0 %v1351, 32
    %v2317 = vpop.permute.xlu0 %2316
    %2318 = vrot.lane.b32.xlu0 %v1375, 32
    %v2319 = vpop.permute.xlu0 %2318
    %2320 = vrot.lane.b32.xlu0 %v1399, 32
    %v2321 = vpop.permute.xlu0 %2320
    %2338 = vrot.lane.b32.xlu0 %v1700, 64
    %v2339 = vpop.permute.xlu0 %2338
    %2340 = vrot.lane.b32.xlu0 %v1721, 64
    %v2341 = vpop.permute.xlu0 %2340
    %2342 = vrot.lane.b32.xlu0 %v1742, 64
    %v2343 = vpop.permute.xlu0 %2342
    %2344 = vrot.lane.b32.xlu0 %v1763, 64
    %v2345 = vpop.permute.xlu0 %2344
    %2346 = vrot.lane.b32.xlu0 %v1784, 64
    %v2347 = vpop.permute.xlu0 %2346
    %2348 = vrot.lane.b32.xlu0 %v1805, 64
    %v2349 = vpop.permute.xlu0 %2348
    %2350 = vrot.lane.b32.xlu0 %v1826, 64
    %v2351 = vpop.permute.xlu0 %2350
    %2352 = vrot.lane.b32.xlu0 %v1847, 64
    %v2353 = vpop.permute.xlu0 %2352
    %2370 = vrot.lane.b32.xlu0 %v2148, 96
    %v2371 = vpop.permute.xlu0 %2370
    %2372 = vrot.lane.b32.xlu0 %v2169, 96
    %v2373 = vpop.permute.xlu0 %2372
    %2374 = vrot.lane.b32.xlu0 %v2190, 96
    %v2375 = vpop.permute.xlu0 %2374
    %2376 = vrot.lane.b32.xlu0 %v2211, 96
    %v2377 = vpop.permute.xlu0 %2376
    %2378 = vrot.lane.b32.xlu0 %v2232, 96
    %v2379 = vpop.permute.xlu0 %2378
    %2380 = vrot.lane.b32.xlu0 %v2253, 96
    %v2381 = vpop.permute.xlu0 %2380
    %2382 = vrot.lane.b32.xlu0 %v2274, 96
    %v2383 = vpop.permute.xlu0 %2382
    %2384 = vrot.lane.b32.xlu0 %v2295, 96
    %v2385 = vpop.permute.xlu0 %2384
    %v2394 = vsel %vm479, %v746, %v2307
    %v2395 = vsel %vm479, %v765, %v2309
    %v2396 = vsel %vm479, %v784, %v2311
    %v2397 = vsel %vm479, %v803, %v2313
    %v2398 = vsel %vm479, %v822, %v2315
    %v2399 = vsel %vm479, %v841, %v2317
    %v2400 = vsel %vm479, %v860, %v2319
    %v2401 = vsel %vm479, %v879, %v2321
    %vm2402 = vcmask 523264
    %v2403 = vsel %vm2402, %v2394, %v2339
    %v2404 = vsel %vm2402, %v2395, %v2341
    %v2405 = vsel %vm2402, %v2396, %v2343
    %v2406 = vsel %vm2402, %v2397, %v2345
    %v2407 = vsel %vm2402, %v2398, %v2347
    %v2408 = vsel %vm2402, %v2399, %v2349
    %v2409 = vsel %vm2402, %v2400, %v2351
    %v2410 = vsel %vm2402, %v2401, %v2353
    %vm2411 = vcmask 785408
    %v2412 = vsel %vm2411, %v2403, %v2371
    %v2413 = vsel %vm2411, %v2404, %v2373
    %v2414 = vsel %vm2411, %v2405, %v2375
    %v2415 = vsel %vm2411, %v2406, %v2377
    %v2416 = vsel %vm2411, %v2407, %v2379
    %v2417 = vsel %vm2411, %v2408, %v2381
    %v2418 = vsel %vm2411, %v2409, %v2383
    %v2419 = vsel %vm2411, %v2410, %v2385
    %v2420 = vpack.c.bf16 %v2413, %v2412
    %v2421 = vpack.c.bf16 %v2415, %v2414
    %v2422 = vpack.c.bf16 %v2417, %v2416
    %v2423 = vpack.c.bf16 %v2419, %v2418
    %v2424 = vld [vmem:[#allocation10] sm:$0xf]
    %v2425 = vld [vmem:[#allocation10 + $0x4] sm:$0xf]
    %v2426 = vld [vmem:[#allocation10 + $0x8] sm:$0xf]
    %v2427 = vld [vmem:[#allocation10 + $0xc] sm:$0xf]
    %v2428 = vld [vmem:[#allocation10 + $0x10] sm:$0xf]
    %v2429 = vld [vmem:[#allocation10 + $0x14] sm:$0xf]
    %v2430 = vld [vmem:[#allocation10 + $0x18] sm:$0xf]
    %v2431 = vld [vmem:[#allocation10 + $0x1c] sm:$0xf]
    %v2432 = vld [vmem:[#allocation10 + $0x20] sm:$0xf]
    %v2433 = vld [vmem:[#allocation10 + $0x24] sm:$0xf]
    %v2434 = vld [vmem:[#allocation10 + $0x28] sm:$0xf]
    %v2435 = vld [vmem:[#allocation10 + $0x2c] sm:$0xf]
    %v2436 = vld [vmem:[#allocation10 + $0x30] sm:$0xf]
    %v2437 = vld [vmem:[#allocation10 + $0x34] sm:$0xf]
    %v2438 = vld [vmem:[#allocation10 + $0x38] sm:$0xf]
    %v2439 = vld [vmem:[#allocation10 + $0x3c] sm:$0xf]
    %v2440 = vld [vmem:[%s5] sm:$0x1]
    %v2442 = vperm.slane %v2440, 0
    %v2460 = vunpack.c.l.b16 %v2424
    %v2461 = vunpack.c.l.b16 %v2425
    %v2462 = vunpack.c.l.b16 %v2426
    %v2463 = vunpack.c.l.b16 %v2427
    %v2464 = vunpack.c.l.b16 %v2428
    %v2465 = vunpack.c.l.b16 %v2429
    %v2466 = vunpack.c.l.b16 %v2430
    %v2467 = vunpack.c.l.b16 %v2431
    %v2468 = vunpack.c.l.b16 %v2432
    %v2469 = vunpack.c.l.b16 %v2433
    %v2470 = vunpack.c.l.b16 %v2434
    %v2471 = vunpack.c.l.b16 %v2435
    %v2472 = vunpack.c.l.b16 %v2436
    %v2473 = vunpack.c.l.b16 %v2437
    %v2474 = vunpack.c.l.b16 %v2438
    %v2475 = vunpack.c.l.b16 %v2439
    %v2476 = vpack.c.b16 %v2461, %v2460
    %v2477 = vpack.c.b16 %v2463, %v2462
    %v2478 = vpack.c.b16 %v2465, %v2464
    %v2479 = vpack.c.b16 %v2467, %v2466
    %v2480 = vpack.c.b16 %v2469, %v2468
    %v2481 = vpack.c.b16 %v2471, %v2470
    %v2482 = vpack.c.b16 %v2473, %v2472
    %v2483 = vpack.c.b16 %v2475, %v2474
    %2492 = vmatpush.bf16.msra.mxu0 %v2483
    %2493 = vmatpush.bf16.msra.mxu0 %v2482
    %2494 = vmatpush.bf16.msra.mxu0 %v2481
    %2495 = vmatpush.bf16.msra.mxu0 %v2480
    %2496 = vmatpush.bf16.msra.mxu0 %v2479
    %2497 = vmatpush.bf16.msra.mxu0 %v2478
    %2498 = vmatpush.bf16.msra.mxu0 %v2477
    %2499 = vmatpush.bf16.msra.mxu0 %v2476
    %2500 = vmatmul.bf16.gmra.mxu0 %v2420
    %v2501 = vpop.f32.mrf.mxu0
    %v2502 = vadd.f32 %v2442, %v2501
    %v2503 = vpop.f32.mrf.mxu0
    %v2504 = vadd.f32 %v2442, %v2503
    %2505 = vmatmul.bf16.gmra.mxu0 %v2421
    %v2506 = vpop.f32.mrf.mxu0
    %v2507 = vadd.f32 %v2442, %v2506
    %v2508 = vpop.f32.mrf.mxu0
    %v2509 = vadd.f32 %v2442, %v2508
    %2510 = vmatmul.bf16.gmra.mxu0 %v2422
    %v2511 = vpop.f32.mrf.mxu0
    %v2512 = vadd.f32 %v2442, %v2511
    %v2513 = vpop.f32.mrf.mxu0
    %v2514 = vadd.f32 %v2442, %v2513
    %2515 = vmatmul.bf16.gmra.mxu0 %v2423
    %v2516 = vpop.f32.mrf.mxu0
    %v2517 = vadd.f32 %v2442, %v2516
    %v2518 = vpop.f32.mrf.mxu0
    %v2519 = vadd.f32 %v2442, %v2518
    %2520 = vdwg.mxu0
    %v2521 = vadd.f32 %v156, %v2502
    %v2522 = vadd.f32 %v157, %v2504
    %v2523 = vadd.f32 %v158, %v2507
    %v2524 = vadd.f32 %v159, %v2509
    %v2525 = vadd.f32 %v160, %v2512
    %v2526 = vadd.f32 %v161, %v2514
    %v2527 = vadd.f32 %v162, %v2517
    %v2528 = vadd.f32 %v163, %v2519
    %v2529 = vld [vmem:[%s6] sm:$0x1]
    %v2530 = vld [vmem:[%s7] sm:$0x1]
    %2531 = vadd.xlane.f32.xlu0 %v2521
    %v2532 = vpop.xlane.xlu0 %2531
    %2533 = vadd.xlane.f32.xlu0 %v2522
    %v2534 = vpop.xlane.xlu0 %2533
    %2535 = vadd.xlane.f32.xlu0 %v2523
    %v2536 = vpop.xlane.xlu0 %2535
    %2537 = vadd.xlane.f32.xlu0 %v2524
    %v2538 = vpop.xlane.xlu0 %2537
    %2539 = vadd.xlane.f32.xlu0 %v2525
    %v2540 = vpop.xlane.xlu0 %2539
    %2541 = vadd.xlane.f32.xlu0 %v2526
    %v2542 = vpop.xlane.xlu0 %2541
    %2543 = vadd.xlane.f32.xlu0 %v2527
    %v2544 = vpop.xlane.xlu0 %2543
    %2545 = vadd.xlane.f32.xlu0 %v2528
    %v2546 = vpop.xlane.xlu0 %2545
    %v2547 = vrcp.pop 128.0
    %v2548 = vmul.f32 128.0, %v2547
    %v2549 = vsub.f32 1.0, %v2548
    %v2550 = vmul.f32 %v2547, %v2549
    %v2551 = vadd.f32 %v2547, %v2550
    %vm2552 = vweird.f32 %v2547
    %v2553 = vsel %vm2552, %v2547, %v2551
    %v2554 = vmul.f32 %v2532, %v2553
    %v2555 = vmul.f32 %v2534, %v2553
    %v2556 = vmul.f32 %v2536, %v2553
    %v2557 = vmul.f32 %v2538, %v2553
    %v2558 = vmul.f32 %v2540, %v2553
    %v2559 = vmul.f32 %v2542, %v2553
    %v2560 = vmul.f32 %v2544, %v2553
    %v2561 = vmul.f32 %v2546, %v2553
    %v2562 = vsub.f32 %v2521, %v2554
    %v2563 = vsub.f32 %v2522, %v2555
    %v2564 = vsub.f32 %v2523, %v2556
    %v2565 = vsub.f32 %v2524, %v2557
    %v2566 = vsub.f32 %v2525, %v2558
    %v2567 = vsub.f32 %v2526, %v2559
    %v2568 = vsub.f32 %v2527, %v2560
    %v2569 = vsub.f32 %v2528, %v2561
    %v2570 = vmul.f32 %v2562, %v2562
    %v2571 = vmul.f32 %v2563, %v2563
    %v2572 = vmul.f32 %v2564, %v2564
    %v2573 = vmul.f32 %v2565, %v2565
    %v2574 = vmul.f32 %v2566, %v2566
    %v2575 = vmul.f32 %v2567, %v2567
    %v2576 = vmul.f32 %v2568, %v2568
    %v2577 = vmul.f32 %v2569, %v2569
    %2578 = vadd.xlane.f32.xlu0 %v2570
    %v2579 = vpop.xlane.xlu0 %2578
    %2580 = vadd.xlane.f32.xlu0 %v2571
    %v2581 = vpop.xlane.xlu0 %2580
    %2582 = vadd.xlane.f32.xlu0 %v2572
    %v2583 = vpop.xlane.xlu0 %2582
    %2584 = vadd.xlane.f32.xlu0 %v2573
    %v2585 = vpop.xlane.xlu0 %2584
    %2586 = vadd.xlane.f32.xlu0 %v2574
    %v2587 = vpop.xlane.xlu0 %2586
    %2588 = vadd.xlane.f32.xlu0 %v2575
    %v2589 = vpop.xlane.xlu0 %2588
    %2590 = vadd.xlane.f32.xlu0 %v2576
    %v2591 = vpop.xlane.xlu0 %2590
    %2592 = vadd.xlane.f32.xlu0 %v2577
    %v2593 = vpop.xlane.xlu0 %2592
    %v2594 = vmul.f32 %v2579, %v2553
    %v2595 = vmul.f32 %v2581, %v2553
    %v2596 = vmul.f32 %v2583, %v2553
    %v2597 = vmul.f32 %v2585, %v2553
    %v2598 = vmul.f32 %v2587, %v2553
    %v2599 = vmul.f32 %v2589, %v2553
    %v2600 = vmul.f32 %v2591, %v2553
    %v2601 = vmul.f32 %v2593, %v2553
    %v2602 = vadd.f32 %v2594, 1e-05
    %v2603 = vadd.f32 %v2595, 1e-05
    %v2604 = vadd.f32 %v2596, 1e-05
    %v2605 = vadd.f32 %v2597, 1e-05
    %v2606 = vadd.f32 %v2598, 1e-05
    %v2607 = vadd.f32 %v2599, 1e-05
    %v2608 = vadd.f32 %v2600, 1e-05
    %v2609 = vadd.f32 %v2601, 1e-05
    %v2610 = vrsqrt.pop %v2602
    %v2611 = vmul.f32 %v2610, %v2602
    %v2612 = vmul.f32 %v2611, %v2610
    %v2613 = vmul.f32 0.5, %v2612
    %v2614 = vsub.f32 1.5, %v2613
    %v2615 = vmul.f32 %v2610, %v2614
    %vm2616 = vweird.f32 %v2602
    %vm2617 = vweird.f32 %v2610
    %vm2618 = vmor %vm2616, %vm2617
    %v2619 = vsel %vm2618, %v2610, %v2615
    %v2620 = vrsqrt.pop %v2603
    %v2621 = vmul.f32 %v2620, %v2603
    %v2622 = vmul.f32 %v2621, %v2620
    %v2623 = vmul.f32 0.5, %v2622
    %v2624 = vsub.f32 1.5, %v2623
    %v2625 = vmul.f32 %v2620, %v2624
    %vm2626 = vweird.f32 %v2603
    %vm2627 = vweird.f32 %v2620
    %vm2628 = vmor %vm2626, %vm2627
    %v2629 = vsel %vm2628, %v2620, %v2625
    %v2630 = vrsqrt.pop %v2604
    %v2631 = vmul.f32 %v2630, %v2604
    %v2632 = vmul.f32 %v2631, %v2630
    %v2633 = vmul.f32 0.5, %v2632
    %v2634 = vsub.f32 1.5, %v2633
    %v2635 = vmul.f32 %v2630, %v2634
    %vm2636 = vweird.f32 %v2604
    %vm2637 = vweird.f32 %v2630
    %vm2638 = vmor %vm2636, %vm2637
    %v2639 = vsel %vm2638, %v2630, %v2635
    %v2640 = vrsqrt.pop %v2605
    %v2641 = vmul.f32 %v2640, %v2605
    %v2642 = vmul.f32 %v2641, %v2640
    %v2643 = vmul.f32 0.5, %v2642
    %v2644 = vsub.f32 1.5, %v2643
    %v2645 = vmul.f32 %v2640, %v2644
    %vm2646 = vweird.f32 %v2605
    %vm2647 = vweird.f32 %v2640
    %vm2648 = vmor %vm2646, %vm2647
    %v2649 = vsel %vm2648, %v2640, %v2645
    %v2650 = vrsqrt.pop %v2606
    %v2651 = vmul.f32 %v2650, %v2606
    %v2652 = vmul.f32 %v2651, %v2650
    %v2653 = vmul.f32 0.5, %v2652
    %v2654 = vsub.f32 1.5, %v2653
    %v2655 = vmul.f32 %v2650, %v2654
    %vm2656 = vweird.f32 %v2606
    %vm2657 = vweird.f32 %v2650
    %vm2658 = vmor %vm2656, %vm2657
    %v2659 = vsel %vm2658, %v2650, %v2655
    %v2660 = vrsqrt.pop %v2607
    %v2661 = vmul.f32 %v2660, %v2607
    %v2662 = vmul.f32 %v2661, %v2660
    %v2663 = vmul.f32 0.5, %v2662
    %v2664 = vsub.f32 1.5, %v2663
    %v2665 = vmul.f32 %v2660, %v2664
    %vm2666 = vweird.f32 %v2607
    %vm2667 = vweird.f32 %v2660
    %vm2668 = vmor %vm2666, %vm2667
    %v2669 = vsel %vm2668, %v2660, %v2665
    %v2670 = vrsqrt.pop %v2608
    %v2671 = vmul.f32 %v2670, %v2608
    %v2672 = vmul.f32 %v2671, %v2670
    %v2673 = vmul.f32 0.5, %v2672
    %v2674 = vsub.f32 1.5, %v2673
    %v2675 = vmul.f32 %v2670, %v2674
    %vm2676 = vweird.f32 %v2608
    %vm2677 = vweird.f32 %v2670
    %vm2678 = vmor %vm2676, %vm2677
    %v2679 = vsel %vm2678, %v2670, %v2675
    %v2680 = vrsqrt.pop %v2609
    %v2681 = vmul.f32 %v2680, %v2609
    %v2682 = vmul.f32 %v2681, %v2680
    %v2683 = vmul.f32 0.5, %v2682
    %v2684 = vsub.f32 1.5, %v2683
    %v2685 = vmul.f32 %v2680, %v2684
    %vm2686 = vweird.f32 %v2609
    %vm2687 = vweird.f32 %v2680
    %vm2688 = vmor %vm2686, %vm2687
    %v2689 = vsel %vm2688, %v2680, %v2685
    %v2690 = vmul.f32 %v2562, %v2619
    %v2691 = vmul.f32 %v2563, %v2629
    %v2692 = vmul.f32 %v2564, %v2639
    %v2693 = vmul.f32 %v2565, %v2649
    %v2694 = vmul.f32 %v2566, %v2659
    %v2695 = vmul.f32 %v2567, %v2669
    %v2696 = vmul.f32 %v2568, %v2679
    %v2697 = vmul.f32 %v2569, %v2689
    %v2699 = vperm.slane %v2529, 0
    %v2701 = vmul.f32 %v2690, %v2699
    %v2702 = vmul.f32 %v2691, %v2699
    %v2703 = vmul.f32 %v2692, %v2699
    %v2704 = vmul.f32 %v2693, %v2699
    %v2705 = vmul.f32 %v2694, %v2699
    %v2706 = vmul.f32 %v2695, %v2699
    %v2707 = vmul.f32 %v2696, %v2699
    %v2708 = vmul.f32 %v2697, %v2699
    %v2710 = vperm.slane %v2530, 0
    %v2712 = vadd.f32 %v2701, %v2710
    %v2713 = vadd.f32 %v2702, %v2710
    %v2714 = vadd.f32 %v2703, %v2710
    %v2715 = vadd.f32 %v2704, %v2710
    %v2716 = vadd.f32 %v2705, %v2710
    %v2717 = vadd.f32 %v2706, %v2710
    %v2718 = vadd.f32 %v2707, %v2710
    %v2719 = vadd.f32 %v2708, %v2710
    %v2720 = vpack.c.bf16 %v2713, %v2712
    %v2721 = vpack.c.bf16 %v2715, %v2714
    %v2722 = vpack.c.bf16 %v2717, %v2716
    %v2723 = vpack.c.bf16 %v2719, %v2718
    %v2724 = vld [vmem:[#allocation11] sm:$0xff]
    %v2725 = vld [vmem:[#allocation11 + $0x8] sm:$0xff]
    %v2726 = vld [vmem:[#allocation11 + $0x10] sm:$0xff]
    %v2727 = vld [vmem:[#allocation11 + $0x18] sm:$0xff]
    %v2728 = vld [vmem:[#allocation11 + $0x20] sm:$0xff]
    %v2729 = vld [vmem:[#allocation11 + $0x28] sm:$0xff]
    %v2730 = vld [vmem:[#allocation11 + $0x30] sm:$0xff]
    %v2731 = vld [vmem:[#allocation11 + $0x38] sm:$0xff]
    %v2732 = vld [vmem:[#allocation11 + $0x40] sm:$0xff]
    %v2733 = vld [vmem:[#allocation11 + $0x48] sm:$0xff]
    %v2734 = vld [vmem:[#allocation11 + $0x50] sm:$0xff]
    %v2735 = vld [vmem:[#allocation11 + $0x58] sm:$0xff]
    %v2736 = vld [vmem:[#allocation11 + $0x60] sm:$0xff]
    %v2737 = vld [vmem:[#allocation11 + $0x68] sm:$0xff]
    %v2738 = vld [vmem:[#allocation11 + $0x70] sm:$0xff]
    %v2739 = vld [vmem:[#allocation11 + $0x78] sm:$0xff]
    %v2740 = vld [vmem:[%s9] sm:$0x3]
    %v2742 = vperm.slane %v2740, 0
    %v2743 = vperm.slane %v2740, 1
    %v2762 = vunpack.c.l.b16 %v2724
    %v2763 = vunpack.c.h.b16 %v2724
    %v2764 = vunpack.c.l.b16 %v2725
    %v2765 = vunpack.c.h.b16 %v2725
    %v2766 = vunpack.c.l.b16 %v2726
    %v2767 = vunpack.c.h.b16 %v2726
    %v2768 = vunpack.c.l.b16 %v2727
    %v2769 = vunpack.c.h.b16 %v2727
    %v2770 = vunpack.c.l.b16 %v2728
    %v2771 = vunpack.c.h.b16 %v2728
    %v2772 = vunpack.c.l.b16 %v2729
    %v2773 = vunpack.c.h.b16 %v2729
    %v2774 = vunpack.c.l.b16 %v2730
    %v2775 = vunpack.c.h.b16 %v2730
    %v2776 = vunpack.c.l.b16 %v2731
    %v2777 = vunpack.c.h.b16 %v2731
    %v2778 = vunpack.c.l.b16 %v2732
    %v2779 = vunpack.c.h.b16 %v2732
    %v2780 = vunpack.c.l.b16 %v2733
    %v2781 = vunpack.c.h.b16 %v2733
    %v2782 = vunpack.c.l.b16 %v2734
    %v2783 = vunpack.c.h.b16 %v2734
    %v2784 = vunpack.c.l.b16 %v2735
    %v2785 = vunpack.c.h.b16 %v2735
    %v2786 = vunpack.c.l.b16 %v2736
    %v2787 = vunpack.c.h.b16 %v2736
    %v2788 = vunpack.c.l.b16 %v2737
    %v2789 = vunpack.c.h.b16 %v2737
    %v2790 = vunpack.c.l.b16 %v2738
    %v2791 = vunpack.c.h.b16 %v2738
    %v2792 = vunpack.c.l.b16 %v2739
    %v2793 = vunpack.c.h.b16 %v2739
    %v2794 = vpack.c.b16 %v2764, %v2762
    %v2795 = vpack.c.b16 %v2765, %v2763
    %v2796 = vpack.c.b16 %v2768, %v2766
    %v2797 = vpack.c.b16 %v2769, %v2767
    %v2798 = vpack.c.b16 %v2772, %v2770
    %v2799 = vpack.c.b16 %v2773, %v2771
    %v2800 = vpack.c.b16 %v2776, %v2774
    %v2801 = vpack.c.b16 %v2777, %v2775
    %v2802 = vpack.c.b16 %v2780, %v2778
    %v2803 = vpack.c.b16 %v2781, %v2779
    %v2804 = vpack.c.b16 %v2784, %v2782
    %v2805 = vpack.c.b16 %v2785, %v2783
    %v2806 = vpack.c.b16 %v2788, %v2786
    %v2807 = vpack.c.b16 %v2789, %v2787
    %v2808 = vpack.c.b16 %v2792, %v2790
    %v2809 = vpack.c.b16 %v2793, %v2791
    %2826 = vmatpush.bf16.msra.mxu0 %v2808
    %2827 = vmatpush.bf16.msra.mxu0 %v2806
    %2828 = vmatpush.bf16.msra.mxu0 %v2804
    %2829 = vmatpush.bf16.msra.mxu0 %v2802
    %2830 = vmatpush.bf16.msra.mxu0 %v2800
    %2831 = vmatpush.bf16.msra.mxu0 %v2798
    %2832 = vmatpush.bf16.msra.mxu0 %v2796
    %2833 = vmatpush.bf16.msra.mxu0 %v2794
    %2834 = vmatmul.bf16.gmra.mxu0 %v2720
    %v2835 = vpop.f32.mrf.mxu0
    %v2836 = vadd.f32 %v2742, %v2835
    %v2837 = vpop.f32.mrf.mxu0
    %v2838 = vadd.f32 %v2742, %v2837
    %2839 = vmatmul.bf16.gmra.mxu0 %v2721
    %v2840 = vpop.f32.mrf.mxu0
    %v2841 = vadd.f32 %v2742, %v2840
    %v2842 = vpop.f32.mrf.mxu0
    %v2843 = vadd.f32 %v2742, %v2842
    %2844 = vmatmul.bf16.gmra.mxu0 %v2722
    %v2845 = vpop.f32.mrf.mxu0
    %v2846 = vadd.f32 %v2742, %v2845
    %v2847 = vpop.f32.mrf.mxu0
    %v2848 = vadd.f32 %v2742, %v2847
    %2849 = vmatmul.bf16.gmra.mxu0 %v2723
    %v2850 = vpop.f32.mrf.mxu0
    %v2851 = vadd.f32 %v2742, %v2850
    %v2852 = vpop.f32.mrf.mxu0
    %v2853 = vadd.f32 %v2742, %v2852
    %2854 = vdwg.mxu0
    %2855 = vmatpush.bf16.msra.mxu0 %v2809
    %2856 = vmatpush.bf16.msra.mxu0 %v2807
    %2857 = vmatpush.bf16.msra.mxu0 %v2805
    %2858 = vmatpush.bf16.msra.mxu0 %v2803
    %2859 = vmatpush.bf16.msra.mxu0 %v2801
    %2860 = vmatpush.bf16.msra.mxu0 %v2799
    %2861 = vmatpush.bf16.msra.mxu0 %v2797
    %2862 = vmatpush.bf16.msra.mxu0 %v2795
    %2863 = vmatmul.bf16.gmra.mxu0 %v2720
    %v2864 = vpop.f32.mrf.mxu0
    %v2865 = vadd.f32 %v2743, %v2864
    %v2866 = vpop.f32.mrf.mxu0
    %v2867 = vadd.f32 %v2743, %v2866
    %2868 = vmatmul.bf16.gmra.mxu0 %v2721
    %v2869 = vpop.f32.mrf.mxu0
    %v2870 = vadd.f32 %v2743, %v2869
    %v2871 = vpop.f32.mrf.mxu0
    %v2872 = vadd.f32 %v2743, %v2871
    %2873 = vmatmul.bf16.gmra.mxu0 %v2722
    %v2874 = vpop.f32.mrf.mxu0
    %v2875 = vadd.f32 %v2743, %v2874
    %v2876 = vpop.f32.mrf.mxu0
    %v2877 = vadd.f32 %v2743, %v2876
    %2878 = vmatmul.bf16.gmra.mxu0 %v2723
    %v2879 = vpop.f32.mrf.mxu0
    %v2880 = vadd.f32 %v2743, %v2879
    %v2881 = vpop.f32.mrf.mxu0
    %v2882 = vadd.f32 %v2743, %v2881
    %2883 = vdwg.mxu0
    %v2884 = vmax.f32 %v2836, 0.0
    %v2885 = vmax.f32 %v2865, 0.0
    %v2886 = vmax.f32 %v2838, 0.0
    %v2887 = vmax.f32 %v2867, 0.0
    %v2888 = vmax.f32 %v2841, 0.0
    %v2889 = vmax.f32 %v2870, 0.0
    %v2890 = vmax.f32 %v2843, 0.0
    %v2891 = vmax.f32 %v2872, 0.0
    %v2892 = vmax.f32 %v2846, 0.0
    %v2893 = vmax.f32 %v2875, 0.0
    %v2894 = vmax.f32 %v2848, 0.0
    %v2895 = vmax.f32 %v2877, 0.0
    %v2896 = vmax.f32 %v2851, 0.0
    %v2897 = vmax.f32 %v2880, 0.0
    %v2898 = vmax.f32 %v2853, 0.0
    %v2899 = vmax.f32 %v2882, 0.0
    %v2900 = vpack.c.bf16 %v2886, %v2884
    %v2901 = vpack.c.bf16 %v2887, %v2885
    %v2902 = vpack.c.bf16 %v2890, %v2888
    %v2903 = vpack.c.bf16 %v2891, %v2889
    %v2904 = vpack.c.bf16 %v2894, %v2892
    %v2905 = vpack.c.bf16 %v2895, %v2893
    %v2906 = vpack.c.bf16 %v2898, %v2896
    %v2907 = vpack.c.bf16 %v2899, %v2897
    %v2908 = vld [vmem:[#allocation13] sm:$0xf]
    %v2909 = vld [vmem:[#allocation13 + $0x4] sm:$0xf]
    %v2910 = vld [vmem:[#allocation13 + $0x8] sm:$0xf]
    %v2911 = vld [vmem:[#allocation13 + $0xc] sm:$0xf]
    %v2912 = vld [vmem:[#allocation13 + $0x10] sm:$0xf]
    %v2913 = vld [vmem:[#allocation13 + $0x14] sm:$0xf]
    %v2914 = vld [vmem:[#allocation13 + $0x18] sm:$0xf]
    %v2915 = vld [vmem:[#allocation13 + $0x1c] sm:$0xf]
    %v2916 = vld [vmem:[#allocation13 + $0x20] sm:$0xf]
    %v2917 = vld [vmem:[#allocation13 + $0x24] sm:$0xf]
    %v2918 = vld [vmem:[#allocation13 + $0x28] sm:$0xf]
    %v2919 = vld [vmem:[#allocation13 + $0x2c] sm:$0xf]
    %v2920 = vld [vmem:[#allocation13 + $0x30] sm:$0xf]
    %v2921 = vld [vmem:[#allocation13 + $0x34] sm:$0xf]
    %v2922 = vld [vmem:[#allocation13 + $0x38] sm:$0xf]
    %v2923 = vld [vmem:[#allocation13 + $0x3c] sm:$0xf]
    %v2924 = vld [vmem:[#allocation13 + $0x40] sm:$0xf]
    %v2925 = vld [vmem:[#allocation13 + $0x44] sm:$0xf]
    %v2926 = vld [vmem:[#allocation13 + $0x48] sm:$0xf]
    %v2927 = vld [vmem:[#allocation13 + $0x4c] sm:$0xf]
    %v2928 = vld [vmem:[#allocation13 + $0x50] sm:$0xf]
    %v2929 = vld [vmem:[#allocation13 + $0x54] sm:$0xf]
    %v2930 = vld [vmem:[#allocation13 + $0x58] sm:$0xf]
    %v2931 = vld [vmem:[#allocation13 + $0x5c] sm:$0xf]
    %v2932 = vld [vmem:[#allocation13 + $0x60] sm:$0xf]
    %v2933 = vld [vmem:[#allocation13 + $0x64] sm:$0xf]
    %v2934 = vld [vmem:[#allocation13 + $0x68] sm:$0xf]
    %v2935 = vld [vmem:[#allocation13 + $0x6c] sm:$0xf]
    %v2936 = vld [vmem:[#allocation13 + $0x70] sm:$0xf]
    %v2937 = vld [vmem:[#allocation13 + $0x74] sm:$0xf]
    %v2938 = vld [vmem:[#allocation13 + $0x78] sm:$0xf]
    %v2939 = vld [vmem:[#allocation13 + $0x7c] sm:$0xf]
    %v2940 = vld [vmem:[%s11] sm:$0x1]
    %v2942 = vperm.slane %v2940, 0
    %v2976 = vunpack.c.l.b16 %v2908
    %v2977 = vunpack.c.l.b16 %v2909
    %v2978 = vunpack.c.l.b16 %v2910
    %v2979 = vunpack.c.l.b16 %v2911
    %v2980 = vunpack.c.l.b16 %v2912
    %v2981 = vunpack.c.l.b16 %v2913
    %v2982 = vunpack.c.l.b16 %v2914
    %v2983 = vunpack.c.l.b16 %v2915
    %v2984 = vunpack.c.l.b16 %v2916
    %v2985 = vunpack.c.l.b16 %v2917
    %v2986 = vunpack.c.l.b16 %v2918
    %v2987 = vunpack.c.l.b16 %v2919
    %v2988 = vunpack.c.l.b16 %v2920
    %v2989 = vunpack.c.l.b16 %v2921
    %v2990 = vunpack.c.l.b16 %v2922
    %v2991 = vunpack.c.l.b16 %v2923
    %v2992 = vunpack.c.l.b16 %v2924
    %v2993 = vunpack.c.l.b16 %v2925
    %v2994 = vunpack.c.l.b16 %v2926
    %v2995 = vunpack.c.l.b16 %v2927
    %v2996 = vunpack.c.l.b16 %v2928
    %v2997 = vunpack.c.l.b16 %v2929
    %v2998 = vunpack.c.l.b16 %v2930
    %v2999 = vunpack.c.l.b16 %v2931
    %v3000 = vunpack.c.l.b16 %v2932
    %v3001 = vunpack.c.l.b16 %v2933
    %v3002 = vunpack.c.l.b16 %v2934
    %v3003 = vunpack.c.l.b16 %v2935
    %v3004 = vunpack.c.l.b16 %v2936
    %v3005 = vunpack.c.l.b16 %v2937
    %v3006 = vunpack.c.l.b16 %v2938
    %v3007 = vunpack.c.l.b16 %v2939
    %v3008 = vpack.c.b16 %v2977, %v2976
    %v3009 = vpack.c.b16 %v2979, %v2978
    %v3010 = vpack.c.b16 %v2981, %v2980
    %v3011 = vpack.c.b16 %v2983, %v2982
    %v3012 = vpack.c.b16 %v2985, %v2984
    %v3013 = vpack.c.b16 %v2987, %v2986
    %v3014 = vpack.c.b16 %v2989, %v2988
    %v3015 = vpack.c.b16 %v2991, %v2990
    %v3016 = vpack.c.b16 %v2993, %v2992
    %v3017 = vpack.c.b16 %v2995, %v2994
    %v3018 = vpack.c.b16 %v2997, %v2996
    %v3019 = vpack.c.b16 %v2999, %v2998
    %v3020 = vpack.c.b16 %v3001, %v3000
    %v3021 = vpack.c.b16 %v3003, %v3002
    %v3022 = vpack.c.b16 %v3005, %v3004
    %v3023 = vpack.c.b16 %v3007, %v3006
    %3040 = vmatpush.bf16.msra.mxu0 %v3015
    %3041 = vmatpush.bf16.msra.mxu0 %v3014
    %3042 = vmatpush.bf16.msra.mxu0 %v3013
    %3043 = vmatpush.bf16.msra.mxu0 %v3012
    %3044 = vmatpush.bf16.msra.mxu0 %v3011
    %3045 = vmatpush.bf16.msra.mxu0 %v3010
    %3046 = vmatpush.bf16.msra.mxu0 %v3009
    %3047 = vmatpush.bf16.msra.mxu0 %v3008
    %3048 = vmatmul.bf16.gmra.mxu0 %v2900
    %v3049 = vpop.f32.mrf.mxu0
    %v3050 = vadd.f32 %v2942, %v3049
    %v3051 = vpop.f32.mrf.mxu0
    %v3052 = vadd.f32 %v2942, %v3051
    %3053 = vmatmul.bf16.gmra.mxu0 %v2902
    %v3054 = vpop.f32.mrf.mxu0
    %v3055 = vadd.f32 %v2942, %v3054
    %v3056 = vpop.f32.mrf.mxu0
    %v3057 = vadd.f32 %v2942, %v3056
    %3058 = vmatmul.bf16.gmra.mxu0 %v2904
    %v3059 = vpop.f32.mrf.mxu0
    %v3060 = vadd.f32 %v2942, %v3059
    %v3061 = vpop.f32.mrf.mxu0
    %v3062 = vadd.f32 %v2942, %v3061
    %3063 = vmatmul.bf16.gmra.mxu0 %v2906
    %v3064 = vpop.f32.mrf.mxu0
    %v3065 = vadd.f32 %v2942, %v3064
    %v3066 = vpop.f32.mrf.mxu0
    %v3067 = vadd.f32 %v2942, %v3066
    %3068 = vdwg.mxu0
    %3069 = vmatpush.bf16.msra.mxu0 %v3023
    %3070 = vmatpush.bf16.msra.mxu0 %v3022
    %3071 = vmatpush.bf16.msra.mxu0 %v3021
    %3072 = vmatpush.bf16.msra.mxu0 %v3020
    %3073 = vmatpush.bf16.msra.mxu0 %v3019
    %3074 = vmatpush.bf16.msra.mxu0 %v3018
    %3075 = vmatpush.bf16.msra.mxu0 %v3017
    %3076 = vmatpush.bf16.msra.mxu0 %v3016
    %3077 = vmatmul.bf16.gmra.mxu0 %v2901
    %v3078 = vpop.f32.mrf.mxu0
    %v3079 = vadd.f32 %v3050, %v3078
    %v3080 = vpop.f32.mrf.mxu0
    %v3081 = vadd.f32 %v3052, %v3080
    %3082 = vmatmul.bf16.gmra.mxu0 %v2903
    %v3083 = vpop.f32.mrf.mxu0
    %v3084 = vadd.f32 %v3055, %v3083
    %v3085 = vpop.f32.mrf.mxu0
    %v3086 = vadd.f32 %v3057, %v3085
    %3087 = vmatmul.bf16.gmra.mxu0 %v2905
    %v3088 = vpop.f32.mrf.mxu0
    %v3089 = vadd.f32 %v3060, %v3088
    %v3090 = vpop.f32.mrf.mxu0
    %v3091 = vadd.f32 %v3062, %v3090
    %3092 = vmatmul.bf16.gmra.mxu0 %v2907
    %v3093 = vpop.f32.mrf.mxu0
    %v3094 = vadd.f32 %v3065, %v3093
    %v3095 = vpop.f32.mrf.mxu0
    %v3096 = vadd.f32 %v3067, %v3095
    %3097 = vdwg.mxu0
    %v3098 = vadd.f32 %v2712, %v3079
    %v3099 = vadd.f32 %v2713, %v3081
    %v3100 = vadd.f32 %v2714, %v3084
    %v3101 = vadd.f32 %v2715, %v3086
    %v3102 = vadd.f32 %v2716, %v3089
    %v3103 = vadd.f32 %v2717, %v3091
    %v3104 = vadd.f32 %v2718, %v3094
    %v3105 = vadd.f32 %v2719, %v3096
    %v3106 = vld [vmem:[%s12] sm:$0x1]
    %v3107 = vld [vmem:[%s13] sm:$0x1]
    %3108 = vadd.xlane.f32.xlu0 %v3098
    %v3109 = vpop.xlane.xlu0 %3108
    %3110 = vadd.xlane.f32.xlu0 %v3099
    %v3111 = vpop.xlane.xlu0 %3110
    %3112 = vadd.xlane.f32.xlu0 %v3100
    %v3113 = vpop.xlane.xlu0 %3112
    %3114 = vadd.xlane.f32.xlu0 %v3101
    %v3115 = vpop.xlane.xlu0 %3114
    %3116 = vadd.xlane.f32.xlu0 %v3102
    %v3117 = vpop.xlane.xlu0 %3116
    %3118 = vadd.xlane.f32.xlu0 %v3103
    %v3119 = vpop.xlane.xlu0 %3118
    %3120 = vadd.xlane.f32.xlu0 %v3104
    %v3121 = vpop.xlane.xlu0 %3120
    %3122 = vadd.xlane.f32.xlu0 %v3105
    %v3123 = vpop.xlane.xlu0 %3122
    %v3124 = vmul.f32 %v3109, %v2553
    %v3125 = vmul.f32 %v3111, %v2553
    %v3126 = vmul.f32 %v3113, %v2553
    %v3127 = vmul.f32 %v3115, %v2553
    %v3128 = vmul.f32 %v3117, %v2553
    %v3129 = vmul.f32 %v3119, %v2553
    %v3130 = vmul.f32 %v3121, %v2553
    %v3131 = vmul.f32 %v3123, %v2553
    %v3132 = vsub.f32 %v3098, %v3124
    %v3133 = vsub.f32 %v3099, %v3125
    %v3134 = vsub.f32 %v3100, %v3126
    %v3135 = vsub.f32 %v3101, %v3127
    %v3136 = vsub.f32 %v3102, %v3128
    %v3137 = vsub.f32 %v3103, %v3129
    %v3138 = vsub.f32 %v3104, %v3130
    %v3139 = vsub.f32 %v3105, %v3131
    %v3140 = vmul.f32 %v3132, %v3132
    %v3141 = vmul.f32 %v3133, %v3133
    %v3142 = vmul.f32 %v3134, %v3134
    %v3143 = vmul.f32 %v3135, %v3135
    %v3144 = vmul.f32 %v3136, %v3136
    %v3145 = vmul.f32 %v3137, %v3137
    %v3146 = vmul.f32 %v3138, %v3138
    %v3147 = vmul.f32 %v3139, %v3139
    %3148 = vadd.xlane.f32.xlu0 %v3140
    %v3149 = vpop.xlane.xlu0 %3148
    %3150 = vadd.xlane.f32.xlu0 %v3141
    %v3151 = vpop.xlane.xlu0 %3150
    %3152 = vadd.xlane.f32.xlu0 %v3142
    %v3153 = vpop.xlane.xlu0 %3152
    %3154 = vadd.xlane.f32.xlu0 %v3143
    %v3155 = vpop.xlane.xlu0 %3154
    %3156 = vadd.xlane.f32.xlu0 %v3144
    %v3157 = vpop.xlane.xlu0 %3156
    %3158 = vadd.xlane.f32.xlu0 %v3145
    %v3159 = vpop.xlane.xlu0 %3158
    %3160 = vadd.xlane.f32.xlu0 %v3146
    %v3161 = vpop.xlane.xlu0 %3160
    %3162 = vadd.xlane.f32.xlu0 %v3147
    %v3163 = vpop.xlane.xlu0 %3162
    %v3164 = vmul.f32 %v3149, %v2553
    %v3165 = vmul.f32 %v3151, %v2553
    %v3166 = vmul.f32 %v3153, %v2553
    %v3167 = vmul.f32 %v3155, %v2553
    %v3168 = vmul.f32 %v3157, %v2553
    %v3169 = vmul.f32 %v3159, %v2553
    %v3170 = vmul.f32 %v3161, %v2553
    %v3171 = vmul.f32 %v3163, %v2553
    %v3172 = vadd.f32 %v3164, 1e-05
    %v3173 = vadd.f32 %v3165, 1e-05
    %v3174 = vadd.f32 %v3166, 1e-05
    %v3175 = vadd.f32 %v3167, 1e-05
    %v3176 = vadd.f32 %v3168, 1e-05
    %v3177 = vadd.f32 %v3169, 1e-05
    %v3178 = vadd.f32 %v3170, 1e-05
    %v3179 = vadd.f32 %v3171, 1e-05
    %v3180 = vrsqrt.pop %v3172
    %v3181 = vmul.f32 %v3180, %v3172
    %v3182 = vmul.f32 %v3181, %v3180
    %v3183 = vmul.f32 0.5, %v3182
    %v3184 = vsub.f32 1.5, %v3183
    %v3185 = vmul.f32 %v3180, %v3184
    %vm3186 = vweird.f32 %v3172
    %vm3187 = vweird.f32 %v3180
    %vm3188 = vmor %vm3186, %vm3187
    %v3189 = vsel %vm3188, %v3180, %v3185
    %v3190 = vrsqrt.pop %v3173
    %v3191 = vmul.f32 %v3190, %v3173
    %v3192 = vmul.f32 %v3191, %v3190
    %v3193 = vmul.f32 0.5, %v3192
    %v3194 = vsub.f32 1.5, %v3193
    %v3195 = vmul.f32 %v3190, %v3194
    %vm3196 = vweird.f32 %v3173
    %vm3197 = vweird.f32 %v3190
    %vm3198 = vmor %vm3196, %vm3197
    %v3199 = vsel %vm3198, %v3190, %v3195
    %v3200 = vrsqrt.pop %v3174
    %v3201 = vmul.f32 %v3200, %v3174
    %v3202 = vmul.f32 %v3201, %v3200
    %v3203 = vmul.f32 0.5, %v3202
    %v3204 = vsub.f32 1.5, %v3203
    %v3205 = vmul.f32 %v3200, %v3204
    %vm3206 = vweird.f32 %v3174
    %vm3207 = vweird.f32 %v3200
    %vm3208 = vmor %vm3206, %vm3207
    %v3209 = vsel %vm3208, %v3200, %v3205
    %v3210 = vrsqrt.pop %v3175
    %v3211 = vmul.f32 %v3210, %v3175
    %v3212 = vmul.f32 %v3211, %v3210
    %v3213 = vmul.f32 0.5, %v3212
    %v3214 = vsub.f32 1.5, %v3213
    %v3215 = vmul.f32 %v3210, %v3214
    %vm3216 = vweird.f32 %v3175
    %vm3217 = vweird.f32 %v3210
    %vm3218 = vmor %vm3216, %vm3217
    %v3219 = vsel %vm3218, %v3210, %v3215
    %v3220 = vrsqrt.pop %v3176
    %v3221 = vmul.f32 %v3220, %v3176
    %v3222 = vmul.f32 %v3221, %v3220
    %v3223 = vmul.f32 0.5, %v3222
    %v3224 = vsub.f32 1.5, %v3223
    %v3225 = vmul.f32 %v3220, %v3224
    %vm3226 = vweird.f32 %v3176
    %vm3227 = vweird.f32 %v3220
    %vm3228 = vmor %vm3226, %vm3227
    %v3229 = vsel %vm3228, %v3220, %v3225
    %v3230 = vrsqrt.pop %v3177
    %v3231 = vmul.f32 %v3230, %v3177
    %v3232 = vmul.f32 %v3231, %v3230
    %v3233 = vmul.f32 0.5, %v3232
    %v3234 = vsub.f32 1.5, %v3233
    %v3235 = vmul.f32 %v3230, %v3234
    %vm3236 = vweird.f32 %v3177
    %vm3237 = vweird.f32 %v3230
    %vm3238 = vmor %vm3236, %vm3237
    %v3239 = vsel %vm3238, %v3230, %v3235
    %v3240 = vrsqrt.pop %v3178
    %v3241 = vmul.f32 %v3240, %v3178
    %v3242 = vmul.f32 %v3241, %v3240
    %v3243 = vmul.f32 0.5, %v3242
    %v3244 = vsub.f32 1.5, %v3243
    %v3245 = vmul.f32 %v3240, %v3244
    %vm3246 = vweird.f32 %v3178
    %vm3247 = vweird.f32 %v3240
    %vm3248 = vmor %vm3246, %vm3247
    %v3249 = vsel %vm3248, %v3240, %v3245
    %v3250 = vrsqrt.pop %v3179
    %v3251 = vmul.f32 %v3250, %v3179
    %v3252 = vmul.f32 %v3251, %v3250
    %v3253 = vmul.f32 0.5, %v3252
    %v3254 = vsub.f32 1.5, %v3253
    %v3255 = vmul.f32 %v3250, %v3254
    %vm3256 = vweird.f32 %v3179
    %vm3257 = vweird.f32 %v3250
    %vm3258 = vmor %vm3256, %vm3257
    %v3259 = vsel %vm3258, %v3250, %v3255
    %v3260 = vmul.f32 %v3132, %v3189
    %v3261 = vmul.f32 %v3133, %v3199
    %v3262 = vmul.f32 %v3134, %v3209
    %v3263 = vmul.f32 %v3135, %v3219
    %v3264 = vmul.f32 %v3136, %v3229
    %v3265 = vmul.f32 %v3137, %v3239
    %v3266 = vmul.f32 %v3138, %v3249
    %v3267 = vmul.f32 %v3139, %v3259
    %v3269 = vperm.slane %v3106, 0
    %v3271 = vmul.f32 %v3260, %v3269
    %v3272 = vmul.f32 %v3261, %v3269
    %v3273 = vmul.f32 %v3262, %v3269
    %v3274 = vmul.f32 %v3263, %v3269
    %v3275 = vmul.f32 %v3264, %v3269
    %v3276 = vmul.f32 %v3265, %v3269
    %v3277 = vmul.f32 %v3266, %v3269
    %v3278 = vmul.f32 %v3267, %v3269
    %v3280 = vperm.slane %v3107, 0
    %v3282 = vadd.f32 %v3271, %v3280
    %v3283 = vadd.f32 %v3272, %v3280
    %v3284 = vadd.f32 %v3273, %v3280
    %v3285 = vadd.f32 %v3274, %v3280
    %v3286 = vadd.f32 %v3275, %v3280
    %v3287 = vadd.f32 %v3276, %v3280
    %v3288 = vadd.f32 %v3277, %v3280
    %v3289 = vadd.f32 %v3278, %v3280
    %3290 = vst [vmem:[#allocation14] sm:$0xff] %v3282
    %3291 = vst [vmem:[#allocation14 + $0x8] sm:$0xff] %v3283
    %3292 = vst [vmem:[#allocation14 + $0x10] sm:$0xff] %v3284
    %3293 = vst [vmem:[#allocation14 + $0x18] sm:$0xff] %v3285
    %3294 = vst [vmem:[#allocation14 + $0x20] sm:$0xff] %v3286
    %3295 = vst [vmem:[#allocation14 + $0x28] sm:$0xff] %v3287
    %3296 = vst [vmem:[#allocation14 + $0x30] sm:$0xff] %v3288
    %3297 = vst [vmem:[#allocation14 + $0x38] sm:$0xff] %v3289
    // Predicated region
    $region86: #{tpu_custom_call.1} parent=1 // pred_check
      _
    $region87: #{tpu_custom_call.1} parent=1 // pred_check_branch
      %3299 = sbr.rel (0) target = $region89
    $region88: #{tpu_custom_call.1} parent=1 // pred_region
      %3301 = vsyncadd [#allocation4], 0
      %s3302 = sshll.u32 [#allocation14], 4
      %s3303 = int_to_ptr.vmem [resolvable:$true] %s3302
      %s3304 = sshll.u32 %s14, 4
      %s3305 = int_to_ptr.hbm [resolvable:$true] %s3304
      %3310 = dma.vmem_to_hbm [thread:$0]  %s3303, 1024, %s3305, [#allocation4], 128, 128, 8
    $region89: #{tpu_custom_call.1} parent=1 // pred_fallthru
      _
    // Predicated region
    $region90: #{tpu_custom_call.1} parent=1 // pred_check
      _
    $region91: #{tpu_custom_call.1} parent=1 // pred_check_branch
      %3312 = sbr.rel (0) target = $region93
    $region92: #{tpu_custom_call.1} parent=1 // pred_region
      %3314 = dma.done [#allocation4], 1024
    $region93: #{tpu_custom_call.1} parent=1 // pred_fallthru
      _
    %3315 = vsyncpa [#allocation3], 1
    %3316 = vsyncpa [#allocation6], 1
    %3317 = vsyncpa [#allocation9], 1
    %3318 = vsyncpa [#allocation12], 1
    %3319 = vsyncpa [#allocation4], 1

</llo_original>
